<compile_context>
chip_gen: v6e
topology: v6e:2x2x1
jax: 0.10.0
libtpu: 0.0.40
codegen_flags: <defaults>
</compile_context>

<pallas_src>
import numpy as np
import jax
import jax.numpy as jnp
from jax import lax
from jax.experimental import pallas as pl
from jax.experimental.pallas import tpu as pltpu

KS = (3, 5, 7)            # branch kernel sizes (SingleBlock default)
N_PIECES = len(KS) + 1    # 3 conv branches + 1 max-pool branch
BN_EPS = 1e-5


def _elu(x):
    # ELU with alpha=1 (PyTorch default).  min() keeps the always-evaluated
    # false branch finite; exp()-1 (instead of expm1) for lowering safety.
    return jnp.where(x > 0, x, jnp.exp(jnp.minimum(x, 0.0)) - 1.0)


def _needed_shifts(ks_list):
    """Distinct nonzero half-rate shifts m used by the stride-2 conv taps."""
    s = set()
    for ks in ks_list:
        pad = ks // 2
        for k in range(ks):
            m = (k - pad) >> 1
            if m:
                s.add(m)
    return sorted(s)


def _make_shift_masks(N, Lout, shifts):
    """Stacked masks: mask[i, n*Lout + lo] = 1 iff 0 <= lo + shifts[i] < Lout."""
    lo = np.arange(Lout)
    rows = []
    for m in shifts:
        valid = ((lo + m >= 0) & (lo + m < Lout)).astype(np.float32)
        rows.append(np.tile(valid, N))
    return jnp.asarray(np.stack(rows, axis=0), dtype=jnp.bfloat16)   # (n_shift, M)


# ----------------------------------------------------------------------------
# Pallas kernel: one SingleBlock, grid step = one independent piece
# ----------------------------------------------------------------------------
def _make_block_kernel(C, M, shifts):
    n_br = len(KS)
    use_vrot = (M % 128 == 0)     # XLU vrot path only at lane-aligned sizes

    def _shift(src, m, mask):
        # result[:, j] = src[:, j + m] inside each sample segment, 0 outside.
        # Roll wrap-around and cross-sample contamination are killed by mask.
        if use_vrot:
            rolled = pltpu.roll(src, shift=(-m) % M, axis=1)   # XLU slot, co-issues
        else:
            rolled = jnp.roll(src, -m, axis=1)                 # slices+concat fallback
        return rolled * mask

    def kernel(x_ref, w1s_ref, g1s_ref, b1s_ref, w2f0_ref, w2f1_ref, w2f2_ref,
               g4_ref, b4_ref, masks_ref, out_ref):
        w2f_refs = (w2f0_ref, w2f1_ref, w2f2_ref)
        pid = pl.program_id(0)
        bf16 = jnp.bfloat16

        # x2[c, p*M + n*Lh + l] = X[n, c, 2*l + p]   (even phase lanes [0,M))
        x = x_ref[...]                                              # (C, 2M) bf16
        masks = {m: masks_ref[i:i + 1, :] for i, m in enumerate(shifts)}

        def bn4_elu_store(p, piece):
            # BatchNorm1d(4C) training-mode stats of the concat restricted to
            # this piece's channels (disjoint channels -> identical stats).
            inv_m = 1.0 / M
            pmean = jnp.sum(p, axis=1, keepdims=True) * inv_m
            cp = p - pmean
            pvar = jnp.sum(cp * cp, axis=1, keepdims=True) * inv_m
            sc = g4_ref[piece * C:(piece + 1) * C, :] * lax.rsqrt(pvar + BN_EPS)
            out_ref[0] = _elu(cp * sc
                              + b4_ref[piece * C:(piece + 1) * C, :]).astype(out_ref.dtype)

        # ---- conv branches (one grid step each) ----
        for b, ks in enumerate(KS):
            @pl.when(pid == b)
            def _(b=b, ks=ks):
                pad = ks // 2
                # 1x1 conv, both phases in one MXU dot
                y = jnp.dot(w1s_ref[b * C:(b + 1) * C, :], x,
                            preferred_element_type=jnp.float32)      # (C, 2M) f32
                # BatchNorm1d (training-mode stats over N*L = 2M) + ELU
                inv_nl = 1.0 / (2 * M)
                mean = jnp.sum(y, axis=1, keepdims=True) * inv_nl
                cy = y - mean                                         # centered (2-pass var)
                var = jnp.sum(cy * cy, axis=1, keepdims=True) * inv_nl
                scale = g1s_ref[b * C:(b + 1) * C, :] * lax.rsqrt(var + BN_EPS)
                z = _elu(cy * scale + b1s_ref[b * C:(b + 1) * C, :]).astype(bf16)
                ze, zo = z[:, :M], z[:, M:]                           # even / odd phase
                w2f = w2f_refs[b]                                     # (C, ks*C) bf16

                # stride-2 conv: center taps (no shift) read z directly; shifted
                # taps are lane shifts + boundary mask.  One (C,C)@(C,M) dot per
                # tap, accumulated in f32 (no VMEM staging of taps).
                acc = jnp.dot(w2f[:, pad * C:(pad + 1) * C], ze,
                              preferred_element_type=jnp.float32)
                acc = acc + jnp.dot(w2f[:, (pad + 1) * C:(pad + 2) * C], zo,
                                    preferred_element_type=jnp.float32)
                for k in range(ks):
                    d = k - pad                 # tap offset in the original time grid
                    m = d >> 1                  # shift in the half-rate grid
                    if m == 0:
                        continue                # center taps already handled above
                    src = _shift(zo if (d & 1) else ze, m, masks[m])
                    acc = acc + jnp.dot(w2f[:, k * C:(k + 1) * C], src,
                                        preferred_element_type=jnp.float32)
                bn4_elu_store(acc, b)

        # ---- MaxPool1d(2,2) branch: pure VPU max of the two phases ----
        @pl.when(pid == n_br)
        def _():
            pool = jnp.maximum(x[:, :M], x[:, M:]).astype(jnp.float32)
            bn4_elu_store(pool, n_br)

    return kernel


# ----------------------------------------------------------------------------
# wrappers
# ----------------------------------------------------------------------------
def single_block_forward(x2, params, N, out_dtype):
    """One SingleBlock in kernel-native layout: (C, 2*N*Lh) -> (4, C, N*Lh)."""
    C, two_m = x2.shape
    M = two_m // 2
    Lh = M // N
    shifts = _needed_shifts(KS)
    masks = _make_shift_masks(N, Lh, shifts)                          # (n_shift, M) bf16

    branches = params["branches"]
    # stacked 1x1 weights / BN1 params (conv biases intentionally dropped)
    w1s = jnp.concatenate([br[0] for br in branches], axis=0).astype(jnp.bfloat16)  # (3C, C)
    g1s = jnp.concatenate([br[2] for br in branches]).reshape(len(KS) * C, 1)
    b1s = jnp.concatenate([br[3] for br in branches]).reshape(len(KS) * C, 1)
    # per-branch tap-flattened stride-2 weights: W2f[co, k*C + ci] = W2[co, ci, k]
    w2fs = [jnp.transpose(br[4], (0, 2, 1)).reshape(C, ks * C).astype(jnp.bfloat16)
            for br, ks in zip(branches, KS)]
    g4 = params["gamma4"].reshape(N_PIECES * C, 1)
    b4 = params["beta4"].reshape(N_PIECES * C, 1)

    inputs = [x2, w1s, g1s, b1s, *w2fs, g4, b4, masks]
    # All inputs stay resident across the (small) piece grid.
    in_specs = [pl.BlockSpec(a.shape, lambda i: (0, 0)) for a in inputs]

    # Per-generation VMEM budget (v7x: 64 MiB, v5e/v6e: 128 MiB).
    in_bytes = sum(int(np.prod(a.shape)) * jnp.dtype(a.dtype).itemsize for a in inputs)
    out_bytes = N_PIECES * C * M * jnp.dtype(out_dtype).itemsize
    tmp_bytes = 24 * C * M                      # per-step f32-equivalent temporaries
    need = 2 * (in_bytes + out_bytes) + tmp_bytes
    try:
        vmem_cap = pltpu.get_tpu_info().vmem_capacity_bytes
    except Exception:
        vmem_cap = 64 << 20                     # conservative: v7x has the least VMEM
    vmem_limit = int(min(max(2 * need, 8 << 20), (3 * vmem_cap) // 4))

    return pl.pallas_call(
        _make_block_kernel(C, M, shifts),
        out_shape=jax.ShapeDtypeStruct((N_PIECES, C, M), out_dtype),
        grid=(N_PIECES,),
        in_specs=in_specs,
        out_specs=pl.BlockSpec((1, C, M), lambda i: (i, 0, 0)),
        compiler_params=pltpu.CompilerParams(
            dimension_semantics=("parallel",),      # pieces split across v7x's 2 TCs
            vmem_limit_bytes=vmem_limit),
    )(*inputs)


def multi_kernel_forward(X, all_params):
    """MultiKernel.forward: (N, C, L) -> (N, C*4**n_blocks, L//2**n_blocks)."""
    N, C, L = X.shape
    if L % 2:
        raise ValueError("sequence length must be divisible by 2**n_blocks")
    Lh = L // 2
    # phase-on-lanes, batch-folded layout: x2[c, p*(N*Lh) + n*Lh + l] = X[n, c, 2*l + p]
    x2 = X.reshape(N, C, Lh, 2).transpose(1, 3, 0, 2).reshape(C, 2 * N * Lh)
    x2 = x2.astype(jnp.bfloat16)

    out = None
    for i, p in enumerate(all_params):
        last = (i + 1 == len(all_params))
        # intermediate block outputs bf16 (halves the inter-block HBM pass), final f32
        out = single_block_forward(x2, p, N, jnp.float32 if last else jnp.bfloat16)
        C = N_PIECES * C
        out = out.reshape(C, N * Lh)                     # (4C, N*Lh), channel-major concat
        if not last:
            if Lh % 2:
                raise ValueError("sequence length must be divisible by 2**n_blocks")
            Lq = Lh // 2
            # re-split phases for the next block (wrapper-side layout plumbing)
            x2 = out.reshape(C, N, Lq, 2).transpose(0, 3, 1, 2).reshape(C, 2 * N * Lq)
            Lh = Lq
    return out.reshape(C, N, Lh).transpose(1, 0, 2)      # back to (N, C, L)


# ----------------------------------------------------------------------------
# deterministic synthetic parameters (shapes per SingleBlock.__init__)
# NOTE: SingleBlock.conv1x1 is defined but never used in forward -> omitted.
# ----------------------------------------------------------------------------
def init_single_block_params(key, C):
    branches = []
    for ks in KS:
        key, k1, k2, k3, k4, k5, k6 = jax.random.split(key, 7)
        W1 = 0.2 * jax.random.normal(k1, (C, C), jnp.float32)
        b1 = 0.05 * jax.random.normal(k2, (C,), jnp.float32)
        g1 = 1.0 + 0.1 * jax.random.normal(k3, (C,), jnp.float32)
        be1 = 0.1 * jax.random.normal(k4, (C,), jnp.float32)
        W2 = 0.2 * jax.random.normal(k5, (C, C, ks), jnp.float32)
        b2 = 0.05 * jax.random.normal(k6, (C,), jnp.float32)
        branches.append((W1, b1, g1, be1, W2, b2))
    key, kg, kb = jax.random.split(key, 3)
    gamma4 = 1.0 + 0.1 * jax.random.normal(kg, (N_PIECES * C,), jnp.float32)
    beta4 = 0.1 * jax.random.normal(kb, (N_PIECES * C,), jnp.float32)
    return {"branches": branches, "gamma4": gamma4, "beta4": beta4}


# ----------------------------------------------------------------------------
# pure-JAX reference (PyTorch training-mode semantics, with the conv biases)
# ----------------------------------------------------------------------------
def _ref_elu(x):
    return jnp.where(x > 0, x, jnp.expm1(jnp.minimum(x, 0.0)))


def ref_single_block(X, params):
    N, C, L = X.shape
    outs = []
    for (W1, b1, g1, be1, W2, b2), ks in zip(params["branches"], KS):
        y = lax.conv_general_dilated(X, W1[:, :, None], (1,), "VALID",
                                     dimension_numbers=("NCH", "OIH", "NCH"))
        y = y + b1[None, :, None]
        mean = jnp.mean(y, axis=(0, 2), keepdims=True)
        var = jnp.var(y, axis=(0, 2), keepdims=True)
        y = (y - mean) * lax.rsqrt(var + BN_EPS) * g1[None, :, None] + be1[None, :, None]
        y = _ref_elu(y)
        pad = ks // 2
        y = lax.conv_general_dilated(y, W2, (2,), [(pad, pad)],
                                     dimension_numbers=("NCH", "OIH", "NCH"))
        outs.append(y + b2[None, :, None])
    pool = jnp.max(X.reshape(N, C, L // 2, 2), axis=-1)
    cat = jnp.concatenate(outs + [pool], axis=1)
    mean = jnp.mean(cat, axis=(0, 2), keepdims=True)
    var = jnp.var(cat, axis=(0, 2), keepdims=True)
    cat = (cat - mean) * lax.rsqrt(var + BN_EPS) \
        * params["gamma4"][None, :, None] + params["beta4"][None, :, None]
    return _ref_elu(cat)


if __name__ == "__main__":
    n_filters, n_blocks = 4, 2
    N, L = 2, 16                         # L divisible by 2**n_blocks

    key = jax.random.PRNGKey(0)
    key, kx = jax.random.split(key)
    X = jax.random.normal(kx, (N, n_filters, L), jnp.float32)

    all_params = []
    for i in range(n_blocks):
        key, kb = jax.random.split(key)
        all_params.append(init_single_block_params(kb, n_filters * 4 ** i))

    fwd = jax.jit(multi_kernel_forward)
    out = jax.block_until_ready(fwd(X, all_params))
    assert out.shape == (N, n_filters * 4 ** n_blocks, L // (2 ** n_blocks))

    # correctness vs. pure-JAX reference (tolerance covers bf16 matmuls and
    # bf16 inter-block activations)
    ref = X
    for p in all_params:
        ref = ref_single_block(ref, p)
    np.testing.assert_allclose(np.asarray(out), np.asarray(ref), rtol=3e-2, atol=3e-2)

    print("KERNEL_OK")
</pallas_src>

<mosaic_0001>
module attributes {stable_mosaic.version = 11 : i64} {
  func.func @kernel(%arg0: i32, %arg1: memref<4x32xbf16, #tpu.memory_space<vmem>>, %arg2: memref<12x4xbf16, #tpu.memory_space<vmem>>, %arg3: memref<12x1xf32, #tpu.memory_space<vmem>>, %arg4: memref<12x1xf32, #tpu.memory_space<vmem>>, %arg5: memref<4x12xbf16, #tpu.memory_space<vmem>>, %arg6: memref<4x20xbf16, #tpu.memory_space<vmem>>, %arg7: memref<4x28xbf16, #tpu.memory_space<vmem>>, %arg8: memref<16x1xf32, #tpu.memory_space<vmem>>, %arg9: memref<16x1xf32, #tpu.memory_space<vmem>>, %arg10: memref<3x16xbf16, #tpu.memory_space<vmem>>, %arg11: memref<1x4x16xbf16, #tpu.memory_space<vmem>>) attributes {dimension_semantics = [#tpu.dimension_semantics<parallel>], iteration_bounds = array<i64: 4>, scalar_prefetch = 0 : i64, scratch_operands = 0 : i64, tpu.core_type = #tpu.core_type<tc>, window_params = [{pipeline_mode = #tpu.pipeline_mode<synchronous>, transform_indices = @transform_0, window_bounds = array<i64: 4, 32>}, {pipeline_mode = #tpu.pipeline_mode<synchronous>, transform_indices = @transform_1, window_bounds = array<i64: 12, 4>}, {pipeline_mode = #tpu.pipeline_mode<synchronous>, transform_indices = @transform_2, window_bounds = array<i64: 12, 1>}, {pipeline_mode = #tpu.pipeline_mode<synchronous>, transform_indices = @transform_3, window_bounds = array<i64: 12, 1>}, {pipeline_mode = #tpu.pipeline_mode<synchronous>, transform_indices = @transform_4, window_bounds = array<i64: 4, 12>}, {pipeline_mode = #tpu.pipeline_mode<synchronous>, transform_indices = @transform_5, window_bounds = array<i64: 4, 20>}, {pipeline_mode = #tpu.pipeline_mode<synchronous>, transform_indices = @transform_6, window_bounds = array<i64: 4, 28>}, {pipeline_mode = #tpu.pipeline_mode<synchronous>, transform_indices = @transform_7, window_bounds = array<i64: 16, 1>}, {pipeline_mode = #tpu.pipeline_mode<synchronous>, transform_indices = @transform_8, window_bounds = array<i64: 16, 1>}, {pipeline_mode = #tpu.pipeline_mode<synchronous>, transform_indices = @transform_9, window_bounds = array<i64: 3, 16>}, {transform_indices = @transform_10, window_bounds = array<i64: 1, 4, 16>}]} {
    %c0 = arith.constant 0 : index
    %c0_0 = arith.constant 0 : index
    %0 = vector.load %arg1[%c0, %c0_0] : memref<4x32xbf16, #tpu.memory_space<vmem>>, vector<4x32xbf16>
    %c0_1 = arith.constant 0 : index
    %c0_2 = arith.constant 0 : index
    %1 = vector.load %arg10[%c0_1, %c0_2] : memref<3x16xbf16, #tpu.memory_space<vmem>>, vector<1x16xbf16>
    %c1 = arith.constant 1 : index
    %c0_3 = arith.constant 0 : index
    %2 = vector.load %arg10[%c1, %c0_3] : memref<3x16xbf16, #tpu.memory_space<vmem>>, vector<1x16xbf16>
    %c2 = arith.constant 2 : index
    %c0_4 = arith.constant 0 : index
    %3 = vector.load %arg10[%c2, %c0_4] : memref<3x16xbf16, #tpu.memory_space<vmem>>, vector<1x16xbf16>
    %c0_i32 = arith.constant 0 : i32
    %4 = arith.cmpi eq, %arg0, %c0_i32 : i32
    %5 = arith.extui %4 : i1 to i32
    %c0_i32_5 = arith.constant 0 : i32
    %6 = arith.cmpi ne, %5, %c0_i32_5 : i32
    scf.if %6 {
      %c0_9 = arith.constant 0 : index
      %c0_10 = arith.constant 0 : index
      %16 = vector.load %arg2[%c0_9, %c0_10] : memref<12x4xbf16, #tpu.memory_space<vmem>>, vector<4x4xbf16>
      %cst = arith.constant dense<0.000000e+00> : vector<4x32xf32>
      %17 = tpu.matmul %16, %0, %cst {dimension_numbers = #tpu.dot_dimension_numbers<[1], [0], [0], [1], [0, 0, 1, 1], [], []>} : vector<4x4xbf16>, vector<4x32xbf16>, vector<4x32xf32> -> vector<4x32xf32>
      %cst_11 = arith.constant dense<0.000000e+00> : vector<4xf32>
      %18 = vector.multi_reduction <add>, %17, %cst_11 [1] : vector<4x32xf32> to vector<4xf32>
      %19 = vector.shape_cast %18 : vector<4xf32> to vector<4x1xf32>
      %cst_12 = arith.constant 3.125000e-02 : f32
      %20 = vector.broadcast %cst_12 : f32 to vector<4x1xf32>
      %21 = arith.mulf %19, %20 : vector<4x1xf32>
      %22 = vector.broadcast %21 : vector<4x1xf32> to vector<4x32xf32>
      %23 = arith.subf %17, %22 : vector<4x32xf32>
      %24 = arith.mulf %23, %23 : vector<4x32xf32>
      %cst_13 = arith.constant dense<0.000000e+00> : vector<4xf32>
      %25 = vector.multi_reduction <add>, %24, %cst_13 [1] : vector<4x32xf32> to vector<4xf32>
      %26 = vector.shape_cast %25 : vector<4xf32> to vector<4x1xf32>
      %cst_14 = arith.constant 3.125000e-02 : f32
      %27 = vector.broadcast %cst_14 : f32 to vector<4x1xf32>
      %28 = arith.mulf %26, %27 : vector<4x1xf32>
      %c0_15 = arith.constant 0 : index
      %c0_16 = arith.constant 0 : index
      %29 = vector.load %arg3[%c0_15, %c0_16] : memref<12x1xf32, #tpu.memory_space<vmem>>, vector<4x1xf32>
      %cst_17 = arith.constant 9.99999974E-6 : f32
      %30 = vector.broadcast %cst_17 : f32 to vector<4x1xf32>
      %31 = arith.addf %28, %30 : vector<4x1xf32>
      %32 = math.rsqrt %31 : vector<4x1xf32>
      %33 = arith.mulf %29, %32 : vector<4x1xf32>
      %34 = vector.broadcast %33 : vector<4x1xf32> to vector<4x32xf32>
      %35 = arith.mulf %23, %34 : vector<4x32xf32>
      %c0_18 = arith.constant 0 : index
      %c0_19 = arith.constant 0 : index
      %36 = vector.load %arg4[%c0_18, %c0_19] : memref<12x1xf32, #tpu.memory_space<vmem>>, vector<4x1xf32>
      %37 = vector.broadcast %36 : vector<4x1xf32> to vector<4x32xf32>
      %38 = arith.addf %35, %37 : vector<4x32xf32>
      %cst_20 = arith.constant 0.000000e+00 : f32
      %39 = vector.broadcast %cst_20 : f32 to vector<4x32xf32>
      %40 = arith.cmpf ogt, %38, %39 : vector<4x32xf32>
      %cst_21 = arith.constant 0.000000e+00 : f32
      %41 = vector.broadcast %cst_21 : f32 to vector<4x32xf32>
      %42 = arith.minimumf %38, %41 : vector<4x32xf32>
      %43 = math.exp %42 : vector<4x32xf32>
      %cst_22 = arith.constant 1.000000e+00 : f32
      %44 = vector.broadcast %cst_22 : f32 to vector<4x32xf32>
      %45 = arith.subf %43, %44 : vector<4x32xf32>
      %46 = arith.select %40, %38, %45 : vector<4x32xi1>, vector<4x32xf32>
      %47 = arith.truncf %46 : vector<4x32xf32> to vector<4x32xbf16>
      %48 = vector.extract_strided_slice %47 {offsets = [0, 0], sizes = [4, 16], strides = [1, 1]} : vector<4x32xbf16> to vector<4x16xbf16>
      %49 = vector.extract_strided_slice %47 {offsets = [0, 16], sizes = [4, 16], strides = [1, 1]} : vector<4x32xbf16> to vector<4x16xbf16>
      %c0_23 = arith.constant 0 : index
      %c4 = arith.constant 4 : index
      %50 = vector.load %arg5[%c0_23, %c4] : memref<4x12xbf16, #tpu.memory_space<vmem>>, vector<4x4xbf16>
      %cst_24 = arith.constant dense<0.000000e+00> : vector<4x16xf32>
      %51 = tpu.matmul %50, %48, %cst_24 {dimension_numbers = #tpu.dot_dimension_numbers<[1], [0], [0], [1], [0, 0, 1, 1], [], []>} : vector<4x4xbf16>, vector<4x16xbf16>, vector<4x16xf32> -> vector<4x16xf32>
      %c0_25 = arith.constant 0 : index
      %c8 = arith.constant 8 : index
      %52 = vector.load %arg5[%c0_25, %c8] : memref<4x12xbf16, #tpu.memory_space<vmem>>, vector<4x4xbf16>
      %cst_26 = arith.constant dense<0.000000e+00> : vector<4x16xf32>
      %53 = tpu.matmul %52, %49, %cst_26 {dimension_numbers = #tpu.dot_dimension_numbers<[1], [0], [0], [1], [0, 0, 1, 1], [], []>} : vector<4x4xbf16>, vector<4x16xbf16>, vector<4x16xf32> -> vector<4x16xf32>
      %54 = arith.addf %51, %53 : vector<4x16xf32>
      %55 = vector.extract_strided_slice %49 {offsets = [0, 15], sizes = [4, 1], strides = [1, 1]} : vector<4x16xbf16> to vector<4x1xbf16>
      %56 = vector.extract_strided_slice %49 {offsets = [0, 0], sizes = [4, 15], strides = [1, 1]} : vector<4x16xbf16> to vector<4x15xbf16>
      %57 = tpu.concatenate %55, %56 in 1 : vector<4x1xbf16>, vector<4x15xbf16> -> vector<4x16xbf16>
      %58 = vector.broadcast %2 : vector<1x16xbf16> to vector<4x16xbf16>
      %59 = arith.mulf %57, %58 : vector<4x16xbf16>
      %c0_27 = arith.constant 0 : index
      %c0_28 = arith.constant 0 : index
      %60 = vector.load %arg5[%c0_27, %c0_28] : memref<4x12xbf16, #tpu.memory_space<vmem>>, vector<4x4xbf16>
      %cst_29 = arith.constant dense<0.000000e+00> : vector<4x16xf32>
      %61 = tpu.matmul %60, %59, %cst_29 {dimension_numbers = #tpu.dot_dimension_numbers<[1], [0], [0], [1], [0, 0, 1, 1], [], []>} : vector<4x4xbf16>, vector<4x16xbf16>, vector<4x16xf32> -> vector<4x16xf32>
      %62 = arith.addf %54, %61 : vector<4x16xf32>
      %cst_30 = arith.constant dense<0.000000e+00> : vector<4xf32>
      %63 = vector.multi_reduction <add>, %62, %cst_30 [1] : vector<4x16xf32> to vector<4xf32>
      %64 = vector.shape_cast %63 : vector<4xf32> to vector<4x1xf32>
      %cst_31 = arith.constant 6.250000e-02 : f32
      %65 = vector.broadcast %cst_31 : f32 to vector<4x1xf32>
      %66 = arith.mulf %64, %65 : vector<4x1xf32>
      %67 = vector.broadcast %66 : vector<4x1xf32> to vector<4x16xf32>
      %68 = arith.subf %62, %67 : vector<4x16xf32>
      %69 = arith.mulf %68, %68 : vector<4x16xf32>
      %cst_32 = arith.constant dense<0.000000e+00> : vector<4xf32>
      %70 = vector.multi_reduction <add>, %69, %cst_32 [1] : vector<4x16xf32> to vector<4xf32>
      %71 = vector.shape_cast %70 : vector<4xf32> to vector<4x1xf32>
      %cst_33 = arith.constant 6.250000e-02 : f32
      %72 = vector.broadcast %cst_33 : f32 to vector<4x1xf32>
      %73 = arith.mulf %71, %72 : vector<4x1xf32>
      %c0_34 = arith.constant 0 : index
      %c0_35 = arith.constant 0 : index
      %74 = vector.load %arg8[%c0_34, %c0_35] : memref<16x1xf32, #tpu.memory_space<vmem>>, vector<4x1xf32>
      %cst_36 = arith.constant 9.99999974E-6 : f32
      %75 = vector.broadcast %cst_36 : f32 to vector<4x1xf32>
      %76 = arith.addf %73, %75 : vector<4x1xf32>
      %77 = math.rsqrt %76 : vector<4x1xf32>
      %78 = arith.mulf %74, %77 : vector<4x1xf32>
      %79 = vector.broadcast %78 : vector<4x1xf32> to vector<4x16xf32>
      %80 = arith.mulf %68, %79 : vector<4x16xf32>
      %c0_37 = arith.constant 0 : index
      %c0_38 = arith.constant 0 : index
      %81 = vector.load %arg9[%c0_37, %c0_38] : memref<16x1xf32, #tpu.memory_space<vmem>>, vector<4x1xf32>
      %82 = vector.broadcast %81 : vector<4x1xf32> to vector<4x16xf32>
      %83 = arith.addf %80, %82 : vector<4x16xf32>
      %cst_39 = arith.constant 0.000000e+00 : f32
      %84 = vector.broadcast %cst_39 : f32 to vector<4x16xf32>
      %85 = arith.cmpf ogt, %83, %84 : vector<4x16xf32>
      %cst_40 = arith.constant 0.000000e+00 : f32
      %86 = vector.broadcast %cst_40 : f32 to vector<4x16xf32>
      %87 = arith.minimumf %83, %86 : vector<4x16xf32>
      %88 = math.exp %87 : vector<4x16xf32>
      %cst_41 = arith.constant 1.000000e+00 : f32
      %89 = vector.broadcast %cst_41 : f32 to vector<4x16xf32>
      %90 = arith.subf %88, %89 : vector<4x16xf32>
      %91 = arith.select %85, %83, %90 : vector<4x16xi1>, vector<4x16xf32>
      %92 = arith.truncf %91 : vector<4x16xf32> to vector<4x16xbf16>
      %c0_42 = arith.constant 0 : index
      %c0_43 = arith.constant 0 : index
      %c0_44 = arith.constant 0 : index
      %93 = vector.load %arg11[%c0_42, %c0_43, %c0_44] : memref<1x4x16xbf16, #tpu.memory_space<vmem>>, vector<1x4x16xbf16>
      %94 = vector.shape_cast %93 : vector<1x4x16xbf16> to vector<4x16xbf16>
      %95 = vector.shape_cast %92 : vector<4x16xbf16> to vector<1x4x16xbf16>
      tpu.vector_store %arg11[%c0_42, %c0_43, %c0_44], %95 {strides = array<i32>} : memref<1x4x16xbf16, #tpu.memory_space<vmem>>, vector<1x4x16xbf16>,
    } else {
    }
    %c1_i32 = arith.constant 1 : i32
    %7 = arith.cmpi eq, %arg0, %c1_i32 : i32
    %8 = arith.extui %7 : i1 to i32
    %c0_i32_6 = arith.constant 0 : i32
    %9 = arith.cmpi ne, %8, %c0_i32_6 : i32
    scf.if %9 {
      %c4 = arith.constant 4 : index
      %c0_9 = arith.constant 0 : index
      %16 = vector.load %arg2[%c4, %c0_9] : memref<12x4xbf16, #tpu.memory_space<vmem>>, vector<4x4xbf16>
      %cst = arith.constant dense<0.000000e+00> : vector<4x32xf32>
      %17 = tpu.matmul %16, %0, %cst {dimension_numbers = #tpu.dot_dimension_numbers<[1], [0], [0], [1], [0, 0, 1, 1], [], []>} : vector<4x4xbf16>, vector<4x32xbf16>, vector<4x32xf32> -> vector<4x32xf32>
      %cst_10 = arith.constant dense<0.000000e+00> : vector<4xf32>
      %18 = vector.multi_reduction <add>, %17, %cst_10 [1] : vector<4x32xf32> to vector<4xf32>
      %19 = vector.shape_cast %18 : vector<4xf32> to vector<4x1xf32>
      %cst_11 = arith.constant 3.125000e-02 : f32
      %20 = vector.broadcast %cst_11 : f32 to vector<4x1xf32>
      %21 = arith.mulf %19, %20 : vector<4x1xf32>
      %22 = vector.broadcast %21 : vector<4x1xf32> to vector<4x32xf32>
      %23 = arith.subf %17, %22 : vector<4x32xf32>
      %24 = arith.mulf %23, %23 : vector<4x32xf32>
      %cst_12 = arith.constant dense<0.000000e+00> : vector<4xf32>
      %25 = vector.multi_reduction <add>, %24, %cst_12 [1] : vector<4x32xf32> to vector<4xf32>
      %26 = vector.shape_cast %25 : vector<4xf32> to vector<4x1xf32>
      %cst_13 = arith.constant 3.125000e-02 : f32
      %27 = vector.broadcast %cst_13 : f32 to vector<4x1xf32>
      %28 = arith.mulf %26, %27 : vector<4x1xf32>
      %c4_14 = arith.constant 4 : index
      %c0_15 = arith.constant 0 : index
      %29 = vector.load %arg3[%c4_14, %c0_15] : memref<12x1xf32, #tpu.memory_space<vmem>>, vector<4x1xf32>
      %cst_16 = arith.constant 9.99999974E-6 : f32
      %30 = vector.broadcast %cst_16 : f32 to vector<4x1xf32>
      %31 = arith.addf %28, %30 : vector<4x1xf32>
      %32 = math.rsqrt %31 : vector<4x1xf32>
      %33 = arith.mulf %29, %32 : vector<4x1xf32>
      %34 = vector.broadcast %33 : vector<4x1xf32> to vector<4x32xf32>
      %35 = arith.mulf %23, %34 : vector<4x32xf32>
      %c4_17 = arith.constant 4 : index
      %c0_18 = arith.constant 0 : index
      %36 = vector.load %arg4[%c4_17, %c0_18] : memref<12x1xf32, #tpu.memory_space<vmem>>, vector<4x1xf32>
      %37 = vector.broadcast %36 : vector<4x1xf32> to vector<4x32xf32>
      %38 = arith.addf %35, %37 : vector<4x32xf32>
      %cst_19 = arith.constant 0.000000e+00 : f32
      %39 = vector.broadcast %cst_19 : f32 to vector<4x32xf32>
      %40 = arith.cmpf ogt, %38, %39 : vector<4x32xf32>
      %cst_20 = arith.constant 0.000000e+00 : f32
      %41 = vector.broadcast %cst_20 : f32 to vector<4x32xf32>
      %42 = arith.minimumf %38, %41 : vector<4x32xf32>
      %43 = math.exp %42 : vector<4x32xf32>
      %cst_21 = arith.constant 1.000000e+00 : f32
      %44 = vector.broadcast %cst_21 : f32 to vector<4x32xf32>
      %45 = arith.subf %43, %44 : vector<4x32xf32>
      %46 = arith.select %40, %38, %45 : vector<4x32xi1>, vector<4x32xf32>
      %47 = arith.truncf %46 : vector<4x32xf32> to vector<4x32xbf16>
      %48 = vector.extract_strided_slice %47 {offsets = [0, 0], sizes = [4, 16], strides = [1, 1]} : vector<4x32xbf16> to vector<4x16xbf16>
      %49 = vector.extract_strided_slice %47 {offsets = [0, 16], sizes = [4, 16], strides = [1, 1]} : vector<4x32xbf16> to vector<4x16xbf16>
      %c0_22 = arith.constant 0 : index
      %c8 = arith.constant 8 : index
      %50 = vector.load %arg6[%c0_22, %c8] : memref<4x20xbf16, #tpu.memory_space<vmem>>, vector<4x4xbf16>
      %cst_23 = arith.constant dense<0.000000e+00> : vector<4x16xf32>
      %51 = tpu.matmul %50, %48, %cst_23 {dimension_numbers = #tpu.dot_dimension_numbers<[1], [0], [0], [1], [0, 0, 1, 1], [], []>} : vector<4x4xbf16>, vector<4x16xbf16>, vector<4x16xf32> -> vector<4x16xf32>
      %c0_24 = arith.constant 0 : index
      %c12 = arith.constant 12 : index
      %52 = vector.load %arg6[%c0_24, %c12] : memref<4x20xbf16, #tpu.memory_space<vmem>>, vector<4x4xbf16>
      %cst_25 = arith.constant dense<0.000000e+00> : vector<4x16xf32>
      %53 = tpu.matmul %52, %49, %cst_25 {dimension_numbers = #tpu.dot_dimension_numbers<[1], [0], [0], [1], [0, 0, 1, 1], [], []>} : vector<4x4xbf16>, vector<4x16xbf16>, vector<4x16xf32> -> vector<4x16xf32>
      %54 = arith.addf %51, %53 : vector<4x16xf32>
      %55 = vector.extract_strided_slice %48 {offsets = [0, 15], sizes = [4, 1], strides = [1, 1]} : vector<4x16xbf16> to vector<4x1xbf16>
      %56 = vector.extract_strided_slice %48 {offsets = [0, 0], sizes = [4, 15], strides = [1, 1]} : vector<4x16xbf16> to vector<4x15xbf16>
      %57 = tpu.concatenate %55, %56 in 1 : vector<4x1xbf16>, vector<4x15xbf16> -> vector<4x16xbf16>
      %58 = vector.broadcast %2 : vector<1x16xbf16> to vector<4x16xbf16>
      %59 = arith.mulf %57, %58 : vector<4x16xbf16>
      %c0_26 = arith.constant 0 : index
      %c0_27 = arith.constant 0 : index
      %60 = vector.load %arg6[%c0_26, %c0_27] : memref<4x20xbf16, #tpu.memory_space<vmem>>, vector<4x4xbf16>
      %cst_28 = arith.constant dense<0.000000e+00> : vector<4x16xf32>
      %61 = tpu.matmul %60, %59, %cst_28 {dimension_numbers = #tpu.dot_dimension_numbers<[1], [0], [0], [1], [0, 0, 1, 1], [], []>} : vector<4x4xbf16>, vector<4x16xbf16>, vector<4x16xf32> -> vector<4x16xf32>
      %62 = arith.addf %54, %61 : vector<4x16xf32>
      %63 = vector.extract_strided_slice %49 {offsets = [0, 15], sizes = [4, 1], strides = [1, 1]} : vector<4x16xbf16> to vector<4x1xbf16>
      %64 = vector.extract_strided_slice %49 {offsets = [0, 0], sizes = [4, 15], strides = [1, 1]} : vector<4x16xbf16> to vector<4x15xbf16>
      %65 = tpu.concatenate %63, %64 in 1 : vector<4x1xbf16>, vector<4x15xbf16> -> vector<4x16xbf16>
      %66 = vector.broadcast %2 : vector<1x16xbf16> to vector<4x16xbf16>
      %67 = arith.mulf %65, %66 : vector<4x16xbf16>
      %c0_29 = arith.constant 0 : index
      %c4_30 = arith.constant 4 : index
      %68 = vector.load %arg6[%c0_29, %c4_30] : memref<4x20xbf16, #tpu.memory_space<vmem>>, vector<4x4xbf16>
      %cst_31 = arith.constant dense<0.000000e+00> : vector<4x16xf32>
      %69 = tpu.matmul %68, %67, %cst_31 {dimension_numbers = #tpu.dot_dimension_numbers<[1], [0], [0], [1], [0, 0, 1, 1], [], []>} : vector<4x4xbf16>, vector<4x16xbf16>, vector<4x16xf32> -> vector<4x16xf32>
      %70 = arith.addf %62, %69 : vector<4x16xf32>
      %71 = vector.extract_strided_slice %48 {offsets = [0, 1], sizes = [4, 15], strides = [1, 1]} : vector<4x16xbf16> to vector<4x15xbf16>
      %72 = vector.extract_strided_slice %48 {offsets = [0, 0], sizes = [4, 1], strides = [1, 1]} : vector<4x16xbf16> to vector<4x1xbf16>
      %73 = tpu.concatenate %71, %72 in 1 : vector<4x15xbf16>, vector<4x1xbf16> -> vector<4x16xbf16>
      %74 = vector.broadcast %3 : vector<1x16xbf16> to vector<4x16xbf16>
      %75 = arith.mulf %73, %74 : vector<4x16xbf16>
      %c0_32 = arith.constant 0 : index
      %c16 = arith.constant 16 : index
      %76 = vector.load %arg6[%c0_32, %c16] : memref<4x20xbf16, #tpu.memory_space<vmem>>, vector<4x4xbf16>
      %cst_33 = arith.constant dense<0.000000e+00> : vector<4x16xf32>
      %77 = tpu.matmul %76, %75, %cst_33 {dimension_numbers = #tpu.dot_dimension_numbers<[1], [0], [0], [1], [0, 0, 1, 1], [], []>} : vector<4x4xbf16>, vector<4x16xbf16>, vector<4x16xf32> -> vector<4x16xf32>
      %78 = arith.addf %70, %77 : vector<4x16xf32>
      %cst_34 = arith.constant dense<0.000000e+00> : vector<4xf32>
      %79 = vector.multi_reduction <add>, %78, %cst_34 [1] : vector<4x16xf32> to vector<4xf32>
      %80 = vector.shape_cast %79 : vector<4xf32> to vector<4x1xf32>
      %cst_35 = arith.constant 6.250000e-02 : f32
      %81 = vector.broadcast %cst_35 : f32 to vector<4x1xf32>
      %82 = arith.mulf %80, %81 : vector<4x1xf32>
      %83 = vector.broadcast %82 : vector<4x1xf32> to vector<4x16xf32>
      %84 = arith.subf %78, %83 : vector<4x16xf32>
      %85 = arith.mulf %84, %84 : vector<4x16xf32>
      %cst_36 = arith.constant dense<0.000000e+00> : vector<4xf32>
      %86 = vector.multi_reduction <add>, %85, %cst_36 [1] : vector<4x16xf32> to vector<4xf32>
      %87 = vector.shape_cast %86 : vector<4xf32> to vector<4x1xf32>
      %cst_37 = arith.constant 6.250000e-02 : f32
      %88 = vector.broadcast %cst_37 : f32 to vector<4x1xf32>
      %89 = arith.mulf %87, %88 : vector<4x1xf32>
      %c4_38 = arith.constant 4 : index
      %c0_39 = arith.constant 0 : index
      %90 = vector.load %arg8[%c4_38, %c0_39] : memref<16x1xf32, #tpu.memory_space<vmem>>, vector<4x1xf32>
      %cst_40 = arith.constant 9.99999974E-6 : f32
      %91 = vector.broadcast %cst_40 : f32 to vector<4x1xf32>
      %92 = arith.addf %89, %91 : vector<4x1xf32>
      %93 = math.rsqrt %92 : vector<4x1xf32>
      %94 = arith.mulf %90, %93 : vector<4x1xf32>
      %95 = vector.broadcast %94 : vector<4x1xf32> to vector<4x16xf32>
      %96 = arith.mulf %84, %95 : vector<4x16xf32>
      %c4_41 = arith.constant 4 : index
      %c0_42 = arith.constant 0 : index
      %97 = vector.load %arg9[%c4_41, %c0_42] : memref<16x1xf32, #tpu.memory_space<vmem>>, vector<4x1xf32>
      %98 = vector.broadcast %97 : vector<4x1xf32> to vector<4x16xf32>
      %99 = arith.addf %96, %98 : vector<4x16xf32>
      %cst_43 = arith.constant 0.000000e+00 : f32
      %100 = vector.broadcast %cst_43 : f32 to vector<4x16xf32>
      %101 = arith.cmpf ogt, %99, %100 : vector<4x16xf32>
      %cst_44 = arith.constant 0.000000e+00 : f32
      %102 = vector.broadcast %cst_44 : f32 to vector<4x16xf32>
      %103 = arith.minimumf %99, %102 : vector<4x16xf32>
      %104 = math.exp %103 : vector<4x16xf32>
      %cst_45 = arith.constant 1.000000e+00 : f32
      %105 = vector.broadcast %cst_45 : f32 to vector<4x16xf32>
      %106 = arith.subf %104, %105 : vector<4x16xf32>
      %107 = arith.select %101, %99, %106 : vector<4x16xi1>, vector<4x16xf32>
      %108 = arith.truncf %107 : vector<4x16xf32> to vector<4x16xbf16>
      %c0_46 = arith.constant 0 : index
      %c0_47 = arith.constant 0 : index
      %c0_48 = arith.constant 0 : index
      %109 = vector.load %arg11[%c0_46, %c0_47, %c0_48] : memref<1x4x16xbf16, #tpu.memory_space<vmem>>, vector<1x4x16xbf16>
      %110 = vector.shape_cast %109 : vector<1x4x16xbf16> to vector<4x16xbf16>
      %111 = vector.shape_cast %108 : vector<4x16xbf16> to vector<1x4x16xbf16>
      tpu.vector_store %arg11[%c0_46, %c0_47, %c0_48], %111 {strides = array<i32>} : memref<1x4x16xbf16, #tpu.memory_space<vmem>>, vector<1x4x16xbf16>,
    } else {
    }
    %c2_i32 = arith.constant 2 : i32
    %10 = arith.cmpi eq, %arg0, %c2_i32 : i32
    %11 = arith.extui %10 : i1 to i32
    %c0_i32_7 = arith.constant 0 : i32
    %12 = arith.cmpi ne, %11, %c0_i32_7 : i32
    scf.if %12 {
      %c8 = arith.constant 8 : index
      %c0_9 = arith.constant 0 : index
      %16 = vector.load %arg2[%c8, %c0_9] : memref<12x4xbf16, #tpu.memory_space<vmem>>, vector<4x4xbf16>
      %cst = arith.constant dense<0.000000e+00> : vector<4x32xf32>
      %17 = tpu.matmul %16, %0, %cst {dimension_numbers = #tpu.dot_dimension_numbers<[1], [0], [0], [1], [0, 0, 1, 1], [], []>} : vector<4x4xbf16>, vector<4x32xbf16>, vector<4x32xf32> -> vector<4x32xf32>
      %cst_10 = arith.constant dense<0.000000e+00> : vector<4xf32>
      %18 = vector.multi_reduction <add>, %17, %cst_10 [1] : vector<4x32xf32> to vector<4xf32>
      %19 = vector.shape_cast %18 : vector<4xf32> to vector<4x1xf32>
      %cst_11 = arith.constant 3.125000e-02 : f32
      %20 = vector.broadcast %cst_11 : f32 to vector<4x1xf32>
      %21 = arith.mulf %19, %20 : vector<4x1xf32>
      %22 = vector.broadcast %21 : vector<4x1xf32> to vector<4x32xf32>
      %23 = arith.subf %17, %22 : vector<4x32xf32>
      %24 = arith.mulf %23, %23 : vector<4x32xf32>
      %cst_12 = arith.constant dense<0.000000e+00> : vector<4xf32>
      %25 = vector.multi_reduction <add>, %24, %cst_12 [1] : vector<4x32xf32> to vector<4xf32>
      %26 = vector.shape_cast %25 : vector<4xf32> to vector<4x1xf32>
      %cst_13 = arith.constant 3.125000e-02 : f32
      %27 = vector.broadcast %cst_13 : f32 to vector<4x1xf32>
      %28 = arith.mulf %26, %27 : vector<4x1xf32>
      %c8_14 = arith.constant 8 : index
      %c0_15 = arith.constant 0 : index
      %29 = vector.load %arg3[%c8_14, %c0_15] : memref<12x1xf32, #tpu.memory_space<vmem>>, vector<4x1xf32>
      %cst_16 = arith.constant 9.99999974E-6 : f32
      %30 = vector.broadcast %cst_16 : f32 to vector<4x1xf32>
      %31 = arith.addf %28, %30 : vector<4x1xf32>
      %32 = math.rsqrt %31 : vector<4x1xf32>
      %33 = arith.mulf %29, %32 : vector<4x1xf32>
      %34 = vector.broadcast %33 : vector<4x1xf32> to vector<4x32xf32>
      %35 = arith.mulf %23, %34 : vector<4x32xf32>
      %c8_17 = arith.constant 8 : index
      %c0_18 = arith.constant 0 : index
      %36 = vector.load %arg4[%c8_17, %c0_18] : memref<12x1xf32, #tpu.memory_space<vmem>>, vector<4x1xf32>
      %37 = vector.broadcast %36 : vector<4x1xf32> to vector<4x32xf32>
      %38 = arith.addf %35, %37 : vector<4x32xf32>
      %cst_19 = arith.constant 0.000000e+00 : f32
      %39 = vector.broadcast %cst_19 : f32 to vector<4x32xf32>
      %40 = arith.cmpf ogt, %38, %39 : vector<4x32xf32>
      %cst_20 = arith.constant 0.000000e+00 : f32
      %41 = vector.broadcast %cst_20 : f32 to vector<4x32xf32>
      %42 = arith.minimumf %38, %41 : vector<4x32xf32>
      %43 = math.exp %42 : vector<4x32xf32>
      %cst_21 = arith.constant 1.000000e+00 : f32
      %44 = vector.broadcast %cst_21 : f32 to vector<4x32xf32>
      %45 = arith.subf %43, %44 : vector<4x32xf32>
      %46 = arith.select %40, %38, %45 : vector<4x32xi1>, vector<4x32xf32>
      %47 = arith.truncf %46 : vector<4x32xf32> to vector<4x32xbf16>
      %48 = vector.extract_strided_slice %47 {offsets = [0, 0], sizes = [4, 16], strides = [1, 1]} : vector<4x32xbf16> to vector<4x16xbf16>
      %49 = vector.extract_strided_slice %47 {offsets = [0, 16], sizes = [4, 16], strides = [1, 1]} : vector<4x32xbf16> to vector<4x16xbf16>
      %c0_22 = arith.constant 0 : index
      %c12 = arith.constant 12 : index
      %50 = vector.load %arg7[%c0_22, %c12] : memref<4x28xbf16, #tpu.memory_space<vmem>>, vector<4x4xbf16>
      %cst_23 = arith.constant dense<0.000000e+00> : vector<4x16xf32>
      %51 = tpu.matmul %50, %48, %cst_23 {dimension_numbers = #tpu.dot_dimension_numbers<[1], [0], [0], [1], [0, 0, 1, 1], [], []>} : vector<4x4xbf16>, vector<4x16xbf16>, vector<4x16xf32> -> vector<4x16xf32>
      %c0_24 = arith.constant 0 : index
      %c16 = arith.constant 16 : index
      %52 = vector.load %arg7[%c0_24, %c16] : memref<4x28xbf16, #tpu.memory_space<vmem>>, vector<4x4xbf16>
      %cst_25 = arith.constant dense<0.000000e+00> : vector<4x16xf32>
      %53 = tpu.matmul %52, %49, %cst_25 {dimension_numbers = #tpu.dot_dimension_numbers<[1], [0], [0], [1], [0, 0, 1, 1], [], []>} : vector<4x4xbf16>, vector<4x16xbf16>, vector<4x16xf32> -> vector<4x16xf32>
      %54 = arith.addf %51, %53 : vector<4x16xf32>
      %55 = vector.extract_strided_slice %49 {offsets = [0, 14], sizes = [4, 2], strides = [1, 1]} : vector<4x16xbf16> to vector<4x2xbf16>
      %56 = vector.extract_strided_slice %49 {offsets = [0, 0], sizes = [4, 14], strides = [1, 1]} : vector<4x16xbf16> to vector<4x14xbf16>
      %57 = tpu.concatenate %55, %56 in 1 : vector<4x2xbf16>, vector<4x14xbf16> -> vector<4x16xbf16>
      %58 = vector.broadcast %1 : vector<1x16xbf16> to vector<4x16xbf16>
      %59 = arith.mulf %57, %58 : vector<4x16xbf16>
      %c0_26 = arith.constant 0 : index
      %c0_27 = arith.constant 0 : index
      %60 = vector.load %arg7[%c0_26, %c0_27] : memref<4x28xbf16, #tpu.memory_space<vmem>>, vector<4x4xbf16>
      %cst_28 = arith.constant dense<0.000000e+00> : vector<4x16xf32>
      %61 = tpu.matmul %60, %59, %cst_28 {dimension_numbers = #tpu.dot_dimension_numbers<[1], [0], [0], [1], [0, 0, 1, 1], [], []>} : vector<4x4xbf16>, vector<4x16xbf16>, vector<4x16xf32> -> vector<4x16xf32>
      %62 = arith.addf %54, %61 : vector<4x16xf32>
      %63 = vector.extract_strided_slice %48 {offsets = [0, 15], sizes = [4, 1], strides = [1, 1]} : vector<4x16xbf16> to vector<4x1xbf16>
      %64 = vector.extract_strided_slice %48 {offsets = [0, 0], sizes = [4, 15], strides = [1, 1]} : vector<4x16xbf16> to vector<4x15xbf16>
      %65 = tpu.concatenate %63, %64 in 1 : vector<4x1xbf16>, vector<4x15xbf16> -> vector<4x16xbf16>
      %66 = vector.broadcast %2 : vector<1x16xbf16> to vector<4x16xbf16>
      %67 = arith.mulf %65, %66 : vector<4x16xbf16>
      %c0_29 = arith.constant 0 : index
      %c4 = arith.constant 4 : index
      %68 = vector.load %arg7[%c0_29, %c4] : memref<4x28xbf16, #tpu.memory_space<vmem>>, vector<4x4xbf16>
      %cst_30 = arith.constant dense<0.000000e+00> : vector<4x16xf32>
      %69 = tpu.matmul %68, %67, %cst_30 {dimension_numbers = #tpu.dot_dimension_numbers<[1], [0], [0], [1], [0, 0, 1, 1], [], []>} : vector<4x4xbf16>, vector<4x16xbf16>, vector<4x16xf32> -> vector<4x16xf32>
      %70 = arith.addf %62, %69 : vector<4x16xf32>
      %71 = vector.extract_strided_slice %49 {offsets = [0, 15], sizes = [4, 1], strides = [1, 1]} : vector<4x16xbf16> to vector<4x1xbf16>
      %72 = vector.extract_strided_slice %49 {offsets = [0, 0], sizes = [4, 15], strides = [1, 1]} : vector<4x16xbf16> to vector<4x15xbf16>
      %73 = tpu.concatenate %71, %72 in 1 : vector<4x1xbf16>, vector<4x15xbf16> -> vector<4x16xbf16>
      %74 = vector.broadcast %2 : vector<1x16xbf16> to vector<4x16xbf16>
      %75 = arith.mulf %73, %74 : vector<4x16xbf16>
      %c0_31 = arith.constant 0 : index
      %c8_32 = arith.constant 8 : index
      %76 = vector.load %arg7[%c0_31, %c8_32] : memref<4x28xbf16, #tpu.memory_space<vmem>>, vector<4x4xbf16>
      %cst_33 = arith.constant dense<0.000000e+00> : vector<4x16xf32>
      %77 = tpu.matmul %76, %75, %cst_33 {dimension_numbers = #tpu.dot_dimension_numbers<[1], [0], [0], [1], [0, 0, 1, 1], [], []>} : vector<4x4xbf16>, vector<4x16xbf16>, vector<4x16xf32> -> vector<4x16xf32>
      %78 = arith.addf %70, %77 : vector<4x16xf32>
      %79 = vector.extract_strided_slice %48 {offsets = [0, 1], sizes = [4, 15], strides = [1, 1]} : vector<4x16xbf16> to vector<4x15xbf16>
      %80 = vector.extract_strided_slice %48 {offsets = [0, 0], sizes = [4, 1], strides = [1, 1]} : vector<4x16xbf16> to vector<4x1xbf16>
      %81 = tpu.concatenate %79, %80 in 1 : vector<4x15xbf16>, vector<4x1xbf16> -> vector<4x16xbf16>
      %82 = vector.broadcast %3 : vector<1x16xbf16> to vector<4x16xbf16>
      %83 = arith.mulf %81, %82 : vector<4x16xbf16>
      %c0_34 = arith.constant 0 : index
      %c20 = arith.constant 20 : index
      %84 = vector.load %arg7[%c0_34, %c20] : memref<4x28xbf16, #tpu.memory_space<vmem>>, vector<4x4xbf16>
      %cst_35 = arith.constant dense<0.000000e+00> : vector<4x16xf32>
      %85 = tpu.matmul %84, %83, %cst_35 {dimension_numbers = #tpu.dot_dimension_numbers<[1], [0], [0], [1], [0, 0, 1, 1], [], []>} : vector<4x4xbf16>, vector<4x16xbf16>, vector<4x16xf32> -> vector<4x16xf32>
      %86 = arith.addf %78, %85 : vector<4x16xf32>
      %87 = vector.extract_strided_slice %49 {offsets = [0, 1], sizes = [4, 15], strides = [1, 1]} : vector<4x16xbf16> to vector<4x15xbf16>
      %88 = vector.extract_strided_slice %49 {offsets = [0, 0], sizes = [4, 1], strides = [1, 1]} : vector<4x16xbf16> to vector<4x1xbf16>
      %89 = tpu.concatenate %87, %88 in 1 : vector<4x15xbf16>, vector<4x1xbf16> -> vector<4x16xbf16>
      %90 = vector.broadcast %3 : vector<1x16xbf16> to vector<4x16xbf16>
      %91 = arith.mulf %89, %90 : vector<4x16xbf16>
      %c0_36 = arith.constant 0 : index
      %c24 = arith.constant 24 : index
      %92 = vector.load %arg7[%c0_36, %c24] : memref<4x28xbf16, #tpu.memory_space<vmem>>, vector<4x4xbf16>
      %cst_37 = arith.constant dense<0.000000e+00> : vector<4x16xf32>
      %93 = tpu.matmul %92, %91, %cst_37 {dimension_numbers = #tpu.dot_dimension_numbers<[1], [0], [0], [1], [0, 0, 1, 1], [], []>} : vector<4x4xbf16>, vector<4x16xbf16>, vector<4x16xf32> -> vector<4x16xf32>
      %94 = arith.addf %86, %93 : vector<4x16xf32>
      %cst_38 = arith.constant dense<0.000000e+00> : vector<4xf32>
      %95 = vector.multi_reduction <add>, %94, %cst_38 [1] : vector<4x16xf32> to vector<4xf32>
      %96 = vector.shape_cast %95 : vector<4xf32> to vector<4x1xf32>
      %cst_39 = arith.constant 6.250000e-02 : f32
      %97 = vector.broadcast %cst_39 : f32 to vector<4x1xf32>
      %98 = arith.mulf %96, %97 : vector<4x1xf32>
      %99 = vector.broadcast %98 : vector<4x1xf32> to vector<4x16xf32>
      %100 = arith.subf %94, %99 : vector<4x16xf32>
      %101 = arith.mulf %100, %100 : vector<4x16xf32>
      %cst_40 = arith.constant dense<0.000000e+00> : vector<4xf32>
      %102 = vector.multi_reduction <add>, %101, %cst_40 [1] : vector<4x16xf32> to vector<4xf32>
      %103 = vector.shape_cast %102 : vector<4xf32> to vector<4x1xf32>
      %cst_41 = arith.constant 6.250000e-02 : f32
      %104 = vector.broadcast %cst_41 : f32 to vector<4x1xf32>
      %105 = arith.mulf %103, %104 : vector<4x1xf32>
      %c8_42 = arith.constant 8 : index
      %c0_43 = arith.constant 0 : index
      %106 = vector.load %arg8[%c8_42, %c0_43] : memref<16x1xf32, #tpu.memory_space<vmem>>, vector<4x1xf32>
      %cst_44 = arith.constant 9.99999974E-6 : f32
      %107 = vector.broadcast %cst_44 : f32 to vector<4x1xf32>
      %108 = arith.addf %105, %107 : vector<4x1xf32>
      %109 = math.rsqrt %108 : vector<4x1xf32>
      %110 = arith.mulf %106, %109 : vector<4x1xf32>
      %111 = vector.broadcast %110 : vector<4x1xf32> to vector<4x16xf32>
      %112 = arith.mulf %100, %111 : vector<4x16xf32>
      %c8_45 = arith.constant 8 : index
      %c0_46 = arith.constant 0 : index
      %113 = vector.load %arg9[%c8_45, %c0_46] : memref<16x1xf32, #tpu.memory_space<vmem>>, vector<4x1xf32>
      %114 = vector.broadcast %113 : vector<4x1xf32> to vector<4x16xf32>
      %115 = arith.addf %112, %114 : vector<4x16xf32>
      %cst_47 = arith.constant 0.000000e+00 : f32
      %116 = vector.broadcast %cst_47 : f32 to vector<4x16xf32>
      %117 = arith.cmpf ogt, %115, %116 : vector<4x16xf32>
      %cst_48 = arith.constant 0.000000e+00 : f32
      %118 = vector.broadcast %cst_48 : f32 to vector<4x16xf32>
      %119 = arith.minimumf %115, %118 : vector<4x16xf32>
      %120 = math.exp %119 : vector<4x16xf32>
      %cst_49 = arith.constant 1.000000e+00 : f32
      %121 = vector.broadcast %cst_49 : f32 to vector<4x16xf32>
      %122 = arith.subf %120, %121 : vector<4x16xf32>
      %123 = arith.select %117, %115, %122 : vector<4x16xi1>, vector<4x16xf32>
      %124 = arith.truncf %123 : vector<4x16xf32> to vector<4x16xbf16>
      %c0_50 = arith.constant 0 : index
      %c0_51 = arith.constant 0 : index
      %c0_52 = arith.constant 0 : index
      %125 = vector.load %arg11[%c0_50, %c0_51, %c0_52] : memref<1x4x16xbf16, #tpu.memory_space<vmem>>, vector<1x4x16xbf16>
      %126 = vector.shape_cast %125 : vector<1x4x16xbf16> to vector<4x16xbf16>
      %127 = vector.shape_cast %124 : vector<4x16xbf16> to vector<1x4x16xbf16>
      tpu.vector_store %arg11[%c0_50, %c0_51, %c0_52], %127 {strides = array<i32>} : memref<1x4x16xbf16, #tpu.memory_space<vmem>>, vector<1x4x16xbf16>,
    } else {
    }
    %c3_i32 = arith.constant 3 : i32
    %13 = arith.cmpi eq, %arg0, %c3_i32 : i32
    %14 = arith.extui %13 : i1 to i32
    %c0_i32_8 = arith.constant 0 : i32
    %15 = arith.cmpi ne, %14, %c0_i32_8 : i32
    scf.if %15 {
      %16 = vector.extract_strided_slice %0 {offsets = [0, 0], sizes = [4, 16], strides = [1, 1]} : vector<4x32xbf16> to vector<4x16xbf16>
      %17 = vector.extract_strided_slice %0 {offsets = [0, 16], sizes = [4, 16], strides = [1, 1]} : vector<4x32xbf16> to vector<4x16xbf16>
      %18 = arith.maximumf %16, %17 : vector<4x16xbf16>
      %19 = arith.extf %18 : vector<4x16xbf16> to vector<4x16xf32>
      %cst = arith.constant dense<0.000000e+00> : vector<4xf32>
      %20 = vector.multi_reduction <add>, %19, %cst [1] : vector<4x16xf32> to vector<4xf32>
      %21 = vector.shape_cast %20 : vector<4xf32> to vector<4x1xf32>
      %cst_9 = arith.constant 6.250000e-02 : f32
      %22 = vector.broadcast %cst_9 : f32 to vector<4x1xf32>
      %23 = arith.mulf %21, %22 : vector<4x1xf32>
      %24 = vector.broadcast %23 : vector<4x1xf32> to vector<4x16xf32>
      %25 = arith.subf %19, %24 : vector<4x16xf32>
      %26 = arith.mulf %25, %25 : vector<4x16xf32>
      %cst_10 = arith.constant dense<0.000000e+00> : vector<4xf32>
      %27 = vector.multi_reduction <add>, %26, %cst_10 [1] : vector<4x16xf32> to vector<4xf32>
      %28 = vector.shape_cast %27 : vector<4xf32> to vector<4x1xf32>
      %cst_11 = arith.constant 6.250000e-02 : f32
      %29 = vector.broadcast %cst_11 : f32 to vector<4x1xf32>
      %30 = arith.mulf %28, %29 : vector<4x1xf32>
      %c12 = arith.constant 12 : index
      %c0_12 = arith.constant 0 : index
      %31 = vector.load %arg8[%c12, %c0_12] : memref<16x1xf32, #tpu.memory_space<vmem>>, vector<4x1xf32>
      %cst_13 = arith.constant 9.99999974E-6 : f32
      %32 = vector.broadcast %cst_13 : f32 to vector<4x1xf32>
      %33 = arith.addf %30, %32 : vector<4x1xf32>
      %34 = math.rsqrt %33 : vector<4x1xf32>
      %35 = arith.mulf %31, %34 : vector<4x1xf32>
      %36 = vector.broadcast %35 : vector<4x1xf32> to vector<4x16xf32>
      %37 = arith.mulf %25, %36 : vector<4x16xf32>
      %c12_14 = arith.constant 12 : index
      %c0_15 = arith.constant 0 : index
      %38 = vector.load %arg9[%c12_14, %c0_15] : memref<16x1xf32, #tpu.memory_space<vmem>>, vector<4x1xf32>
      %39 = vector.broadcast %38 : vector<4x1xf32> to vector<4x16xf32>
      %40 = arith.addf %37, %39 : vector<4x16xf32>
      %cst_16 = arith.constant 0.000000e+00 : f32
      %41 = vector.broadcast %cst_16 : f32 to vector<4x16xf32>
      %42 = arith.cmpf ogt, %40, %41 : vector<4x16xf32>
      %cst_17 = arith.constant 0.000000e+00 : f32
      %43 = vector.broadcast %cst_17 : f32 to vector<4x16xf32>
      %44 = arith.minimumf %40, %43 : vector<4x16xf32>
      %45 = math.exp %44 : vector<4x16xf32>
      %cst_18 = arith.constant 1.000000e+00 : f32
      %46 = vector.broadcast %cst_18 : f32 to vector<4x16xf32>
      %47 = arith.subf %45, %46 : vector<4x16xf32>
      %48 = arith.select %42, %40, %47 : vector<4x16xi1>, vector<4x16xf32>
      %49 = arith.truncf %48 : vector<4x16xf32> to vector<4x16xbf16>
      %c0_19 = arith.constant 0 : index
      %c0_20 = arith.constant 0 : index
      %c0_21 = arith.constant 0 : index
      %50 = vector.load %arg11[%c0_19, %c0_20, %c0_21] : memref<1x4x16xbf16, #tpu.memory_space<vmem>>, vector<1x4x16xbf16>
      %51 = vector.shape_cast %50 : vector<1x4x16xbf16> to vector<4x16xbf16>
      %52 = vector.shape_cast %49 : vector<4x16xbf16> to vector<1x4x16xbf16>
      tpu.vector_store %arg11[%c0_19, %c0_20, %c0_21], %52 {strides = array<i32>} : memref<1x4x16xbf16, #tpu.memory_space<vmem>>, vector<1x4x16xbf16>,
    } else {
    }
    return
  }
  func.func @transform_0(%arg0: i32) -> (i32, i32) {
    %c0_i32 = arith.constant 0 : i32
    %c0_i32_0 = arith.constant 0 : i32
    %c0_i32_1 = arith.constant 0 : i32
    return %c0_i32, %c0_i32_0 : i32, i32
  }
  func.func @transform_1(%arg0: i32) -> (i32, i32) {
    %c0_i32 = arith.constant 0 : i32
    %c0_i32_0 = arith.constant 0 : i32
    %c0_i32_1 = arith.constant 0 : i32
    return %c0_i32, %c0_i32_0 : i32, i32
  }
  func.func @transform_2(%arg0: i32) -> (i32, i32) {
    %c0_i32 = arith.constant 0 : i32
    %c0_i32_0 = arith.constant 0 : i32
    %c0_i32_1 = arith.constant 0 : i32
    return %c0_i32, %c0_i32_0 : i32, i32
  }
  func.func @transform_3(%arg0: i32) -> (i32, i32) {
    %c0_i32 = arith.constant 0 : i32
    %c0_i32_0 = arith.constant 0 : i32
    %c0_i32_1 = arith.constant 0 : i32
    return %c0_i32, %c0_i32_0 : i32, i32
  }
  func.func @transform_4(%arg0: i32) -> (i32, i32) {
    %c0_i32 = arith.constant 0 : i32
    %c0_i32_0 = arith.constant 0 : i32
    %c0_i32_1 = arith.constant 0 : i32
    return %c0_i32, %c0_i32_0 : i32, i32
  }
  func.func @transform_5(%arg0: i32) -> (i32, i32) {
    %c0_i32 = arith.constant 0 : i32
    %c0_i32_0 = arith.constant 0 : i32
    %c0_i32_1 = arith.constant 0 : i32
    return %c0_i32, %c0_i32_0 : i32, i32
  }
  func.func @transform_6(%arg0: i32) -> (i32, i32) {
    %c0_i32 = arith.constant 0 : i32
    %c0_i32_0 = arith.constant 0 : i32
    %c0_i32_1 = arith.constant 0 : i32
    return %c0_i32, %c0_i32_0 : i32, i32
  }
  func.func @transform_7(%arg0: i32) -> (i32, i32) {
    %c0_i32 = arith.constant 0 : i32
    %c0_i32_0 = arith.constant 0 : i32
    %c0_i32_1 = arith.constant 0 : i32
    return %c0_i32, %c0_i32_0 : i32, i32
  }
  func.func @transform_8(%arg0: i32) -> (i32, i32) {
    %c0_i32 = arith.constant 0 : i32
    %c0_i32_0 = arith.constant 0 : i32
    %c0_i32_1 = arith.constant 0 : i32
    return %c0_i32, %c0_i32_0 : i32, i32
  }
  func.func @transform_9(%arg0: i32) -> (i32, i32) {
    %c0_i32 = arith.constant 0 : i32
    %c0_i32_0 = arith.constant 0 : i32
    %c0_i32_1 = arith.constant 0 : i32
    return %c0_i32, %c0_i32_0 : i32, i32
  }
  func.func @transform_10(%arg0: i32) -> (i32, i32, i32) {
    %c0_i32 = arith.constant 0 : i32
    %c0_i32_0 = arith.constant 0 : i32
    %c0_i32_1 = arith.constant 0 : i32
    return %arg0, %c0_i32, %c0_i32_0 : i32, i32, i32
  }
}

module attributes {stable_mosaic.version = 11 : i64} {
  func.func @kernel(%arg0: i32, %arg1: memref<16x16xbf16, #tpu.memory_space<vmem>>, %arg2: memref<48x16xbf16, #tpu.memory_space<vmem>>, %arg3: memref<48x1xf32, #tpu.memory_space<vmem>>, %arg4: memref<48x1xf32, #tpu.memory_space<vmem>>, %arg5: memref<16x48xbf16, #tpu.memory_space<vmem>>, %arg6: memref<16x80xbf16, #tpu.memory_space<vmem>>, %arg7: memref<16x112xbf16, #tpu.memory_space<vmem>>, %arg8: memref<64x1xf32, #tpu.memory_space<vmem>>, %arg9: memref<64x1xf32, #tpu.memory_space<vmem>>, %arg10: memref<3x8xbf16, #tpu.memory_space<vmem>>, %arg11: memref<1x16x8xf32, #tpu.memory_space<vmem>>) attributes {dimension_semantics = [#tpu.dimension_semantics<parallel>], iteration_bounds = array<i64: 4>, scalar_prefetch = 0 : i64, scratch_operands = 0 : i64, tpu.core_type = #tpu.core_type<tc>, window_params = [{pipeline_mode = #tpu.pipeline_mode<synchronous>, transform_indices = @transform_0, window_bounds = array<i64: 16, 16>}, {pipeline_mode = #tpu.pipeline_mode<synchronous>, transform_indices = @transform_1, window_bounds = array<i64: 48, 16>}, {pipeline_mode = #tpu.pipeline_mode<synchronous>, transform_indices = @transform_2, window_bounds = array<i64: 48, 1>}, {pipeline_mode = #tpu.pipeline_mode<synchronous>, transform_indices = @transform_3, window_bounds = array<i64: 48, 1>}, {pipeline_mode = #tpu.pipeline_mode<synchronous>, transform_indices = @transform_4, window_bounds = array<i64: 16, 48>}, {pipeline_mode = #tpu.pipeline_mode<synchronous>, transform_indices = @transform_5, window_bounds = array<i64: 16, 80>}, {pipeline_mode = #tpu.pipeline_mode<synchronous>, transform_indices = @transform_6, window_bounds = array<i64: 16, 112>}, {pipeline_mode = #tpu.pipeline_mode<synchronous>, transform_indices = @transform_7, window_bounds = array<i64: 64, 1>}, {pipeline_mode = #tpu.pipeline_mode<synchronous>, transform_indices = @transform_8, window_bounds = array<i64: 64, 1>}, {pipeline_mode = #tpu.pipeline_mode<synchronous>, transform_indices = @transform_9, window_bounds = array<i64: 3, 8>}, {transform_indices = @transform_10, window_bounds = array<i64: 1, 16, 8>}]} {
    %c0 = arith.constant 0 : index
    %c0_0 = arith.constant 0 : index
    %0 = vector.load %arg1[%c0, %c0_0] : memref<16x16xbf16, #tpu.memory_space<vmem>>, vector<16x16xbf16>
    %c0_1 = arith.constant 0 : index
    %c0_2 = arith.constant 0 : index
    %1 = vector.load %arg10[%c0_1, %c0_2] : memref<3x8xbf16, #tpu.memory_space<vmem>>, vector<1x8xbf16>
    %c1 = arith.constant 1 : index
    %c0_3 = arith.constant 0 : index
    %2 = vector.load %arg10[%c1, %c0_3] : memref<3x8xbf16, #tpu.memory_space<vmem>>, vector<1x8xbf16>
    %c2 = arith.constant 2 : index
    %c0_4 = arith.constant 0 : index
    %3 = vector.load %arg10[%c2, %c0_4] : memref<3x8xbf16, #tpu.memory_space<vmem>>, vector<1x8xbf16>
    %c0_i32 = arith.constant 0 : i32
    %4 = arith.cmpi eq, %arg0, %c0_i32 : i32
    %5 = arith.extui %4 : i1 to i32
    %c0_i32_5 = arith.constant 0 : i32
    %6 = arith.cmpi ne, %5, %c0_i32_5 : i32
    scf.if %6 {
      %c0_9 = arith.constant 0 : index
      %c0_10 = arith.constant 0 : index
      %16 = vector.load %arg2[%c0_9, %c0_10] : memref<48x16xbf16, #tpu.memory_space<vmem>>, vector<16x16xbf16>
      %cst = arith.constant dense<0.000000e+00> : vector<16x16xf32>
      %17 = tpu.matmul %16, %0, %cst {dimension_numbers = #tpu.dot_dimension_numbers<[1], [0], [0], [1], [0, 0, 1, 1], [], []>} : vector<16x16xbf16>, vector<16x16xbf16>, vector<16x16xf32> -> vector<16x16xf32>
      %cst_11 = arith.constant dense<0.000000e+00> : vector<16xf32>
      %18 = vector.multi_reduction <add>, %17, %cst_11 [1] : vector<16x16xf32> to vector<16xf32>
      %19 = vector.shape_cast %18 : vector<16xf32> to vector<16x1xf32>
      %cst_12 = arith.constant 6.250000e-02 : f32
      %20 = vector.broadcast %cst_12 : f32 to vector<16x1xf32>
      %21 = arith.mulf %19, %20 : vector<16x1xf32>
      %22 = vector.broadcast %21 : vector<16x1xf32> to vector<16x16xf32>
      %23 = arith.subf %17, %22 : vector<16x16xf32>
      %24 = arith.mulf %23, %23 : vector<16x16xf32>
      %cst_13 = arith.constant dense<0.000000e+00> : vector<16xf32>
      %25 = vector.multi_reduction <add>, %24, %cst_13 [1] : vector<16x16xf32> to vector<16xf32>
      %26 = vector.shape_cast %25 : vector<16xf32> to vector<16x1xf32>
      %cst_14 = arith.constant 6.250000e-02 : f32
      %27 = vector.broadcast %cst_14 : f32 to vector<16x1xf32>
      %28 = arith.mulf %26, %27 : vector<16x1xf32>
      %c0_15 = arith.constant 0 : index
      %c0_16 = arith.constant 0 : index
      %29 = vector.load %arg3[%c0_15, %c0_16] : memref<48x1xf32, #tpu.memory_space<vmem>>, vector<16x1xf32>
      %cst_17 = arith.constant 9.99999974E-6 : f32
      %30 = vector.broadcast %cst_17 : f32 to vector<16x1xf32>
      %31 = arith.addf %28, %30 : vector<16x1xf32>
      %32 = math.rsqrt %31 : vector<16x1xf32>
      %33 = arith.mulf %29, %32 : vector<16x1xf32>
      %34 = vector.broadcast %33 : vector<16x1xf32> to vector<16x16xf32>
      %35 = arith.mulf %23, %34 : vector<16x16xf32>
      %c0_18 = arith.constant 0 : index
      %c0_19 = arith.constant 0 : index
      %36 = vector.load %arg4[%c0_18, %c0_19] : memref<48x1xf32, #tpu.memory_space<vmem>>, vector<16x1xf32>
      %37 = vector.broadcast %36 : vector<16x1xf32> to vector<16x16xf32>
      %38 = arith.addf %35, %37 : vector<16x16xf32>
      %cst_20 = arith.constant 0.000000e+00 : f32
      %39 = vector.broadcast %cst_20 : f32 to vector<16x16xf32>
      %40 = arith.cmpf ogt, %38, %39 : vector<16x16xf32>
      %cst_21 = arith.constant 0.000000e+00 : f32
      %41 = vector.broadcast %cst_21 : f32 to vector<16x16xf32>
      %42 = arith.minimumf %38, %41 : vector<16x16xf32>
      %43 = math.exp %42 : vector<16x16xf32>
      %cst_22 = arith.constant 1.000000e+00 : f32
      %44 = vector.broadcast %cst_22 : f32 to vector<16x16xf32>
      %45 = arith.subf %43, %44 : vector<16x16xf32>
      %46 = arith.select %40, %38, %45 : vector<16x16xi1>, vector<16x16xf32>
      %47 = arith.truncf %46 : vector<16x16xf32> to vector<16x16xbf16>
      %48 = vector.extract_strided_slice %47 {offsets = [0, 0], sizes = [16, 8], strides = [1, 1]} : vector<16x16xbf16> to vector<16x8xbf16>
      %49 = vector.extract_strided_slice %47 {offsets = [0, 8], sizes = [16, 8], strides = [1, 1]} : vector<16x16xbf16> to vector<16x8xbf16>
      %c0_23 = arith.constant 0 : index
      %c16 = arith.constant 16 : index
      %50 = vector.load %arg5[%c0_23, %c16] : memref<16x48xbf16, #tpu.memory_space<vmem>>, vector<16x16xbf16>
      %cst_24 = arith.constant dense<0.000000e+00> : vector<16x8xf32>
      %51 = tpu.matmul %50, %48, %cst_24 {dimension_numbers = #tpu.dot_dimension_numbers<[1], [0], [0], [1], [0, 0, 1, 1], [], []>} : vector<16x16xbf16>, vector<16x8xbf16>, vector<16x8xf32> -> vector<16x8xf32>
      %c0_25 = arith.constant 0 : index
      %c32 = arith.constant 32 : index
      %52 = vector.load %arg5[%c0_25, %c32] : memref<16x48xbf16, #tpu.memory_space<vmem>>, vector<16x16xbf16>
      %cst_26 = arith.constant dense<0.000000e+00> : vector<16x8xf32>
      %53 = tpu.matmul %52, %49, %cst_26 {dimension_numbers = #tpu.dot_dimension_numbers<[1], [0], [0], [1], [0, 0, 1, 1], [], []>} : vector<16x16xbf16>, vector<16x8xbf16>, vector<16x8xf32> -> vector<16x8xf32>
      %54 = arith.addf %51, %53 : vector<16x8xf32>
      %55 = vector.extract_strided_slice %49 {offsets = [0, 7], sizes = [16, 1], strides = [1, 1]} : vector<16x8xbf16> to vector<16x1xbf16>
      %56 = vector.extract_strided_slice %49 {offsets = [0, 0], sizes = [16, 7], strides = [1, 1]} : vector<16x8xbf16> to vector<16x7xbf16>
      %57 = tpu.concatenate %55, %56 in 1 : vector<16x1xbf16>, vector<16x7xbf16> -> vector<16x8xbf16>
      %58 = vector.broadcast %2 : vector<1x8xbf16> to vector<16x8xbf16>
      %59 = arith.mulf %57, %58 : vector<16x8xbf16>
      %c0_27 = arith.constant 0 : index
      %c0_28 = arith.constant 0 : index
      %60 = vector.load %arg5[%c0_27, %c0_28] : memref<16x48xbf16, #tpu.memory_space<vmem>>, vector<16x16xbf16>
      %cst_29 = arith.constant dense<0.000000e+00> : vector<16x8xf32>
      %61 = tpu.matmul %60, %59, %cst_29 {dimension_numbers = #tpu.dot_dimension_numbers<[1], [0], [0], [1], [0, 0, 1, 1], [], []>} : vector<16x16xbf16>, vector<16x8xbf16>, vector<16x8xf32> -> vector<16x8xf32>
      %62 = arith.addf %54, %61 : vector<16x8xf32>
      %cst_30 = arith.constant dense<0.000000e+00> : vector<16xf32>
      %63 = vector.multi_reduction <add>, %62, %cst_30 [1] : vector<16x8xf32> to vector<16xf32>
      %64 = vector.shape_cast %63 : vector<16xf32> to vector<16x1xf32>
      %cst_31 = arith.constant 1.250000e-01 : f32
      %65 = vector.broadcast %cst_31 : f32 to vector<16x1xf32>
      %66 = arith.mulf %64, %65 : vector<16x1xf32>
      %67 = vector.broadcast %66 : vector<16x1xf32> to vector<16x8xf32>
      %68 = arith.subf %62, %67 : vector<16x8xf32>
      %69 = arith.mulf %68, %68 : vector<16x8xf32>
      %cst_32 = arith.constant dense<0.000000e+00> : vector<16xf32>
      %70 = vector.multi_reduction <add>, %69, %cst_32 [1] : vector<16x8xf32> to vector<16xf32>
      %71 = vector.shape_cast %70 : vector<16xf32> to vector<16x1xf32>
      %cst_33 = arith.constant 1.250000e-01 : f32
      %72 = vector.broadcast %cst_33 : f32 to vector<16x1xf32>
      %73 = arith.mulf %71, %72 : vector<16x1xf32>
      %c0_34 = arith.constant 0 : index
      %c0_35 = arith.constant 0 : index
      %74 = vector.load %arg8[%c0_34, %c0_35] : memref<64x1xf32, #tpu.memory_space<vmem>>, vector<16x1xf32>
      %cst_36 = arith.constant 9.99999974E-6 : f32
      %75 = vector.broadcast %cst_36 : f32 to vector<16x1xf32>
      %76 = arith.addf %73, %75 : vector<16x1xf32>
      %77 = math.rsqrt %76 : vector<16x1xf32>
      %78 = arith.mulf %74, %77 : vector<16x1xf32>
      %79 = vector.broadcast %78 : vector<16x1xf32> to vector<16x8xf32>
      %80 = arith.mulf %68, %79 : vector<16x8xf32>
      %c0_37 = arith.constant 0 : index
      %c0_38 = arith.constant 0 : index
      %81 = vector.load %arg9[%c0_37, %c0_38] : memref<64x1xf32, #tpu.memory_space<vmem>>, vector<16x1xf32>
      %82 = vector.broadcast %81 : vector<16x1xf32> to vector<16x8xf32>
      %83 = arith.addf %80, %82 : vector<16x8xf32>
      %cst_39 = arith.constant 0.000000e+00 : f32
      %84 = vector.broadcast %cst_39 : f32 to vector<16x8xf32>
      %85 = arith.cmpf ogt, %83, %84 : vector<16x8xf32>
      %cst_40 = arith.constant 0.000000e+00 : f32
      %86 = vector.broadcast %cst_40 : f32 to vector<16x8xf32>
      %87 = arith.minimumf %83, %86 : vector<16x8xf32>
      %88 = math.exp %87 : vector<16x8xf32>
      %cst_41 = arith.constant 1.000000e+00 : f32
      %89 = vector.broadcast %cst_41 : f32 to vector<16x8xf32>
      %90 = arith.subf %88, %89 : vector<16x8xf32>
      %91 = arith.select %85, %83, %90 : vector<16x8xi1>, vector<16x8xf32>
      %c0_42 = arith.constant 0 : index
      %c0_43 = arith.constant 0 : index
      %c0_44 = arith.constant 0 : index
      %92 = vector.load %arg11[%c0_42, %c0_43, %c0_44] : memref<1x16x8xf32, #tpu.memory_space<vmem>>, vector<1x16x8xf32>
      %93 = vector.shape_cast %92 : vector<1x16x8xf32> to vector<16x8xf32>
      %94 = vector.shape_cast %91 : vector<16x8xf32> to vector<1x16x8xf32>
      tpu.vector_store %arg11[%c0_42, %c0_43, %c0_44], %94 {strides = array<i32>} : memref<1x16x8xf32, #tpu.memory_space<vmem>>, vector<1x16x8xf32>,
    } else {
    }
    %c1_i32 = arith.constant 1 : i32
    %7 = arith.cmpi eq, %arg0, %c1_i32 : i32
    %8 = arith.extui %7 : i1 to i32
    %c0_i32_6 = arith.constant 0 : i32
    %9 = arith.cmpi ne, %8, %c0_i32_6 : i32
    scf.if %9 {
      %c16 = arith.constant 16 : index
      %c0_9 = arith.constant 0 : index
      %16 = vector.load %arg2[%c16, %c0_9] : memref<48x16xbf16, #tpu.memory_space<vmem>>, vector<16x16xbf16>
      %cst = arith.constant dense<0.000000e+00> : vector<16x16xf32>
      %17 = tpu.matmul %16, %0, %cst {dimension_numbers = #tpu.dot_dimension_numbers<[1], [0], [0], [1], [0, 0, 1, 1], [], []>} : vector<16x16xbf16>, vector<16x16xbf16>, vector<16x16xf32> -> vector<16x16xf32>
      %cst_10 = arith.constant dense<0.000000e+00> : vector<16xf32>
      %18 = vector.multi_reduction <add>, %17, %cst_10 [1] : vector<16x16xf32> to vector<16xf32>
      %19 = vector.shape_cast %18 : vector<16xf32> to vector<16x1xf32>
      %cst_11 = arith.constant 6.250000e-02 : f32
      %20 = vector.broadcast %cst_11 : f32 to vector<16x1xf32>
      %21 = arith.mulf %19, %20 : vector<16x1xf32>
      %22 = vector.broadcast %21 : vector<16x1xf32> to vector<16x16xf32>
      %23 = arith.subf %17, %22 : vector<16x16xf32>
      %24 = arith.mulf %23, %23 : vector<16x16xf32>
      %cst_12 = arith.constant dense<0.000000e+00> : vector<16xf32>
      %25 = vector.multi_reduction <add>, %24, %cst_12 [1] : vector<16x16xf32> to vector<16xf32>
      %26 = vector.shape_cast %25 : vector<16xf32> to vector<16x1xf32>
      %cst_13 = arith.constant 6.250000e-02 : f32
      %27 = vector.broadcast %cst_13 : f32 to vector<16x1xf32>
      %28 = arith.mulf %26, %27 : vector<16x1xf32>
      %c16_14 = arith.constant 16 : index
      %c0_15 = arith.constant 0 : index
      %29 = vector.load %arg3[%c16_14, %c0_15] : memref<48x1xf32, #tpu.memory_space<vmem>>, vector<16x1xf32>
      %cst_16 = arith.constant 9.99999974E-6 : f32
      %30 = vector.broadcast %cst_16 : f32 to vector<16x1xf32>
      %31 = arith.addf %28, %30 : vector<16x1xf32>
      %32 = math.rsqrt %31 : vector<16x1xf32>
      %33 = arith.mulf %29, %32 : vector<16x1xf32>
      %34 = vector.broadcast %33 : vector<16x1xf32> to vector<16x16xf32>
      %35 = arith.mulf %23, %34 : vector<16x16xf32>
      %c16_17 = arith.constant 16 : index
      %c0_18 = arith.constant 0 : index
      %36 = vector.load %arg4[%c16_17, %c0_18] : memref<48x1xf32, #tpu.memory_space<vmem>>, vector<16x1xf32>
      %37 = vector.broadcast %36 : vector<16x1xf32> to vector<16x16xf32>
      %38 = arith.addf %35, %37 : vector<16x16xf32>
      %cst_19 = arith.constant 0.000000e+00 : f32
      %39 = vector.broadcast %cst_19 : f32 to vector<16x16xf32>
      %40 = arith.cmpf ogt, %38, %39 : vector<16x16xf32>
      %cst_20 = arith.constant 0.000000e+00 : f32
      %41 = vector.broadcast %cst_20 : f32 to vector<16x16xf32>
      %42 = arith.minimumf %38, %41 : vector<16x16xf32>
      %43 = math.exp %42 : vector<16x16xf32>
      %cst_21 = arith.constant 1.000000e+00 : f32
      %44 = vector.broadcast %cst_21 : f32 to vector<16x16xf32>
      %45 = arith.subf %43, %44 : vector<16x16xf32>
      %46 = arith.select %40, %38, %45 : vector<16x16xi1>, vector<16x16xf32>
      %47 = arith.truncf %46 : vector<16x16xf32> to vector<16x16xbf16>
      %48 = vector.extract_strided_slice %47 {offsets = [0, 0], sizes = [16, 8], strides = [1, 1]} : vector<16x16xbf16> to vector<16x8xbf16>
      %49 = vector.extract_strided_slice %47 {offsets = [0, 8], sizes = [16, 8], strides = [1, 1]} : vector<16x16xbf16> to vector<16x8xbf16>
      %c0_22 = arith.constant 0 : index
      %c32 = arith.constant 32 : index
      %50 = vector.load %arg6[%c0_22, %c32] : memref<16x80xbf16, #tpu.memory_space<vmem>>, vector<16x16xbf16>
      %cst_23 = arith.constant dense<0.000000e+00> : vector<16x8xf32>
      %51 = tpu.matmul %50, %48, %cst_23 {dimension_numbers = #tpu.dot_dimension_numbers<[1], [0], [0], [1], [0, 0, 1, 1], [], []>} : vector<16x16xbf16>, vector<16x8xbf16>, vector<16x8xf32> -> vector<16x8xf32>
      %c0_24 = arith.constant 0 : index
      %c48 = arith.constant 48 : index
      %52 = vector.load %arg6[%c0_24, %c48] : memref<16x80xbf16, #tpu.memory_space<vmem>>, vector<16x16xbf16>
      %cst_25 = arith.constant dense<0.000000e+00> : vector<16x8xf32>
      %53 = tpu.matmul %52, %49, %cst_25 {dimension_numbers = #tpu.dot_dimension_numbers<[1], [0], [0], [1], [0, 0, 1, 1], [], []>} : vector<16x16xbf16>, vector<16x8xbf16>, vector<16x8xf32> -> vector<16x8xf32>
      %54 = arith.addf %51, %53 : vector<16x8xf32>
      %55 = vector.extract_strided_slice %48 {offsets = [0, 7], sizes = [16, 1], strides = [1, 1]} : vector<16x8xbf16> to vector<16x1xbf16>
      %56 = vector.extract_strided_slice %48 {offsets = [0, 0], sizes = [16, 7], strides = [1, 1]} : vector<16x8xbf16> to vector<16x7xbf16>
      %57 = tpu.concatenate %55, %56 in 1 : vector<16x1xbf16>, vector<16x7xbf16> -> vector<16x8xbf16>
      %58 = vector.broadcast %2 : vector<1x8xbf16> to vector<16x8xbf16>
      %59 = arith.mulf %57, %58 : vector<16x8xbf16>
      %c0_26 = arith.constant 0 : index
      %c0_27 = arith.constant 0 : index
      %60 = vector.load %arg6[%c0_26, %c0_27] : memref<16x80xbf16, #tpu.memory_space<vmem>>, vector<16x16xbf16>
      %cst_28 = arith.constant dense<0.000000e+00> : vector<16x8xf32>
      %61 = tpu.matmul %60, %59, %cst_28 {dimension_numbers = #tpu.dot_dimension_numbers<[1], [0], [0], [1], [0, 0, 1, 1], [], []>} : vector<16x16xbf16>, vector<16x8xbf16>, vector<16x8xf32> -> vector<16x8xf32>
      %62 = arith.addf %54, %61 : vector<16x8xf32>
      %63 = vector.extract_strided_slice %49 {offsets = [0, 7], sizes = [16, 1], strides = [1, 1]} : vector<16x8xbf16> to vector<16x1xbf16>
      %64 = vector.extract_strided_slice %49 {offsets = [0, 0], sizes = [16, 7], strides = [1, 1]} : vector<16x8xbf16> to vector<16x7xbf16>
      %65 = tpu.concatenate %63, %64 in 1 : vector<16x1xbf16>, vector<16x7xbf16> -> vector<16x8xbf16>
      %66 = vector.broadcast %2 : vector<1x8xbf16> to vector<16x8xbf16>
      %67 = arith.mulf %65, %66 : vector<16x8xbf16>
      %c0_29 = arith.constant 0 : index
      %c16_30 = arith.constant 16 : index
      %68 = vector.load %arg6[%c0_29, %c16_30] : memref<16x80xbf16, #tpu.memory_space<vmem>>, vector<16x16xbf16>
      %cst_31 = arith.constant dense<0.000000e+00> : vector<16x8xf32>
      %69 = tpu.matmul %68, %67, %cst_31 {dimension_numbers = #tpu.dot_dimension_numbers<[1], [0], [0], [1], [0, 0, 1, 1], [], []>} : vector<16x16xbf16>, vector<16x8xbf16>, vector<16x8xf32> -> vector<16x8xf32>
      %70 = arith.addf %62, %69 : vector<16x8xf32>
      %71 = vector.extract_strided_slice %48 {offsets = [0, 1], sizes = [16, 7], strides = [1, 1]} : vector<16x8xbf16> to vector<16x7xbf16>
      %72 = vector.extract_strided_slice %48 {offsets = [0, 0], sizes = [16, 1], strides = [1, 1]} : vector<16x8xbf16> to vector<16x1xbf16>
      %73 = tpu.concatenate %71, %72 in 1 : vector<16x7xbf16>, vector<16x1xbf16> -> vector<16x8xbf16>
      %74 = vector.broadcast %3 : vector<1x8xbf16> to vector<16x8xbf16>
      %75 = arith.mulf %73, %74 : vector<16x8xbf16>
      %c0_32 = arith.constant 0 : index
      %c64 = arith.constant 64 : index
      %76 = vector.load %arg6[%c0_32, %c64] : memref<16x80xbf16, #tpu.memory_space<vmem>>, vector<16x16xbf16>
      %cst_33 = arith.constant dense<0.000000e+00> : vector<16x8xf32>
      %77 = tpu.matmul %76, %75, %cst_33 {dimension_numbers = #tpu.dot_dimension_numbers<[1], [0], [0], [1], [0, 0, 1, 1], [], []>} : vector<16x16xbf16>, vector<16x8xbf16>, vector<16x8xf32> -> vector<16x8xf32>
      %78 = arith.addf %70, %77 : vector<16x8xf32>
      %cst_34 = arith.constant dense<0.000000e+00> : vector<16xf32>
      %79 = vector.multi_reduction <add>, %78, %cst_34 [1] : vector<16x8xf32> to vector<16xf32>
      %80 = vector.shape_cast %79 : vector<16xf32> to vector<16x1xf32>
      %cst_35 = arith.constant 1.250000e-01 : f32
      %81 = vector.broadcast %cst_35 : f32 to vector<16x1xf32>
      %82 = arith.mulf %80, %81 : vector<16x1xf32>
      %83 = vector.broadcast %82 : vector<16x1xf32> to vector<16x8xf32>
      %84 = arith.subf %78, %83 : vector<16x8xf32>
      %85 = arith.mulf %84, %84 : vector<16x8xf32>
      %cst_36 = arith.constant dense<0.000000e+00> : vector<16xf32>
      %86 = vector.multi_reduction <add>, %85, %cst_36 [1] : vector<16x8xf32> to vector<16xf32>
      %87 = vector.shape_cast %86 : vector<16xf32> to vector<16x1xf32>
      %cst_37 = arith.constant 1.250000e-01 : f32
      %88 = vector.broadcast %cst_37 : f32 to vector<16x1xf32>
      %89 = arith.mulf %87, %88 : vector<16x1xf32>
      %c16_38 = arith.constant 16 : index
      %c0_39 = arith.constant 0 : index
      %90 = vector.load %arg8[%c16_38, %c0_39] : memref<64x1xf32, #tpu.memory_space<vmem>>, vector<16x1xf32>
      %cst_40 = arith.constant 9.99999974E-6 : f32
      %91 = vector.broadcast %cst_40 : f32 to vector<16x1xf32>
      %92 = arith.addf %89, %91 : vector<16x1xf32>
      %93 = math.rsqrt %92 : vector<16x1xf32>
      %94 = arith.mulf %90, %93 : vector<16x1xf32>
      %95 = vector.broadcast %94 : vector<16x1xf32> to vector<16x8xf32>
      %96 = arith.mulf %84, %95 : vector<16x8xf32>
      %c16_41 = arith.constant 16 : index
      %c0_42 = arith.constant 0 : index
      %97 = vector.load %arg9[%c16_41, %c0_42] : memref<64x1xf32, #tpu.memory_space<vmem>>, vector<16x1xf32>
      %98 = vector.broadcast %97 : vector<16x1xf32> to vector<16x8xf32>
      %99 = arith.addf %96, %98 : vector<16x8xf32>
      %cst_43 = arith.constant 0.000000e+00 : f32
      %100 = vector.broadcast %cst_43 : f32 to vector<16x8xf32>
      %101 = arith.cmpf ogt, %99, %100 : vector<16x8xf32>
      %cst_44 = arith.constant 0.000000e+00 : f32
      %102 = vector.broadcast %cst_44 : f32 to vector<16x8xf32>
      %103 = arith.minimumf %99, %102 : vector<16x8xf32>
      %104 = math.exp %103 : vector<16x8xf32>
      %cst_45 = arith.constant 1.000000e+00 : f32
      %105 = vector.broadcast %cst_45 : f32 to vector<16x8xf32>
      %106 = arith.subf %104, %105 : vector<16x8xf32>
      %107 = arith.select %101, %99, %106 : vector<16x8xi1>, vector<16x8xf32>
      %c0_46 = arith.constant 0 : index
      %c0_47 = arith.constant 0 : index
      %c0_48 = arith.constant 0 : index
      %108 = vector.load %arg11[%c0_46, %c0_47, %c0_48] : memref<1x16x8xf32, #tpu.memory_space<vmem>>, vector<1x16x8xf32>
      %109 = vector.shape_cast %108 : vector<1x16x8xf32> to vector<16x8xf32>
      %110 = vector.shape_cast %107 : vector<16x8xf32> to vector<1x16x8xf32>
      tpu.vector_store %arg11[%c0_46, %c0_47, %c0_48], %110 {strides = array<i32>} : memref<1x16x8xf32, #tpu.memory_space<vmem>>, vector<1x16x8xf32>,
    } else {
    }
    %c2_i32 = arith.constant 2 : i32
    %10 = arith.cmpi eq, %arg0, %c2_i32 : i32
    %11 = arith.extui %10 : i1 to i32
    %c0_i32_7 = arith.constant 0 : i32
    %12 = arith.cmpi ne, %11, %c0_i32_7 : i32
    scf.if %12 {
      %c32 = arith.constant 32 : index
      %c0_9 = arith.constant 0 : index
      %16 = vector.load %arg2[%c32, %c0_9] : memref<48x16xbf16, #tpu.memory_space<vmem>>, vector<16x16xbf16>
      %cst = arith.constant dense<0.000000e+00> : vector<16x16xf32>
      %17 = tpu.matmul %16, %0, %cst {dimension_numbers = #tpu.dot_dimension_numbers<[1], [0], [0], [1], [0, 0, 1, 1], [], []>} : vector<16x16xbf16>, vector<16x16xbf16>, vector<16x16xf32> -> vector<16x16xf32>
      %cst_10 = arith.constant dense<0.000000e+00> : vector<16xf32>
      %18 = vector.multi_reduction <add>, %17, %cst_10 [1] : vector<16x16xf32> to vector<16xf32>
      %19 = vector.shape_cast %18 : vector<16xf32> to vector<16x1xf32>
      %cst_11 = arith.constant 6.250000e-02 : f32
      %20 = vector.broadcast %cst_11 : f32 to vector<16x1xf32>
      %21 = arith.mulf %19, %20 : vector<16x1xf32>
      %22 = vector.broadcast %21 : vector<16x1xf32> to vector<16x16xf32>
      %23 = arith.subf %17, %22 : vector<16x16xf32>
      %24 = arith.mulf %23, %23 : vector<16x16xf32>
      %cst_12 = arith.constant dense<0.000000e+00> : vector<16xf32>
      %25 = vector.multi_reduction <add>, %24, %cst_12 [1] : vector<16x16xf32> to vector<16xf32>
      %26 = vector.shape_cast %25 : vector<16xf32> to vector<16x1xf32>
      %cst_13 = arith.constant 6.250000e-02 : f32
      %27 = vector.broadcast %cst_13 : f32 to vector<16x1xf32>
      %28 = arith.mulf %26, %27 : vector<16x1xf32>
      %c32_14 = arith.constant 32 : index
      %c0_15 = arith.constant 0 : index
      %29 = vector.load %arg3[%c32_14, %c0_15] : memref<48x1xf32, #tpu.memory_space<vmem>>, vector<16x1xf32>
      %cst_16 = arith.constant 9.99999974E-6 : f32
      %30 = vector.broadcast %cst_16 : f32 to vector<16x1xf32>
      %31 = arith.addf %28, %30 : vector<16x1xf32>
      %32 = math.rsqrt %31 : vector<16x1xf32>
      %33 = arith.mulf %29, %32 : vector<16x1xf32>
      %34 = vector.broadcast %33 : vector<16x1xf32> to vector<16x16xf32>
      %35 = arith.mulf %23, %34 : vector<16x16xf32>
      %c32_17 = arith.constant 32 : index
      %c0_18 = arith.constant 0 : index
      %36 = vector.load %arg4[%c32_17, %c0_18] : memref<48x1xf32, #tpu.memory_space<vmem>>, vector<16x1xf32>
      %37 = vector.broadcast %36 : vector<16x1xf32> to vector<16x16xf32>
      %38 = arith.addf %35, %37 : vector<16x16xf32>
      %cst_19 = arith.constant 0.000000e+00 : f32
      %39 = vector.broadcast %cst_19 : f32 to vector<16x16xf32>
      %40 = arith.cmpf ogt, %38, %39 : vector<16x16xf32>
      %cst_20 = arith.constant 0.000000e+00 : f32
      %41 = vector.broadcast %cst_20 : f32 to vector<16x16xf32>
      %42 = arith.minimumf %38, %41 : vector<16x16xf32>
      %43 = math.exp %42 : vector<16x16xf32>
      %cst_21 = arith.constant 1.000000e+00 : f32
      %44 = vector.broadcast %cst_21 : f32 to vector<16x16xf32>
      %45 = arith.subf %43, %44 : vector<16x16xf32>
      %46 = arith.select %40, %38, %45 : vector<16x16xi1>, vector<16x16xf32>
      %47 = arith.truncf %46 : vector<16x16xf32> to vector<16x16xbf16>
      %48 = vector.extract_strided_slice %47 {offsets = [0, 0], sizes = [16, 8], strides = [1, 1]} : vector<16x16xbf16> to vector<16x8xbf16>
      %49 = vector.extract_strided_slice %47 {offsets = [0, 8], sizes = [16, 8], strides = [1, 1]} : vector<16x16xbf16> to vector<16x8xbf16>
      %c0_22 = arith.constant 0 : index
      %c48 = arith.constant 48 : index
      %50 = vector.load %arg7[%c0_22, %c48] : memref<16x112xbf16, #tpu.memory_space<vmem>>, vector<16x16xbf16>
      %cst_23 = arith.constant dense<0.000000e+00> : vector<16x8xf32>
      %51 = tpu.matmul %50, %48, %cst_23 {dimension_numbers = #tpu.dot_dimension_numbers<[1], [0], [0], [1], [0, 0, 1, 1], [], []>} : vector<16x16xbf16>, vector<16x8xbf16>, vector<16x8xf32> -> vector<16x8xf32>
      %c0_24 = arith.constant 0 : index
      %c64 = arith.constant 64 : index
      %52 = vector.load %arg7[%c0_24, %c64] : memref<16x112xbf16, #tpu.memory_space<vmem>>, vector<16x16xbf16>
      %cst_25 = arith.constant dense<0.000000e+00> : vector<16x8xf32>
      %53 = tpu.matmul %52, %49, %cst_25 {dimension_numbers = #tpu.dot_dimension_numbers<[1], [0], [0], [1], [0, 0, 1, 1], [], []>} : vector<16x16xbf16>, vector<16x8xbf16>, vector<16x8xf32> -> vector<16x8xf32>
      %54 = arith.addf %51, %53 : vector<16x8xf32>
      %55 = vector.extract_strided_slice %49 {offsets = [0, 6], sizes = [16, 2], strides = [1, 1]} : vector<16x8xbf16> to vector<16x2xbf16>
      %56 = vector.extract_strided_slice %49 {offsets = [0, 0], sizes = [16, 6], strides = [1, 1]} : vector<16x8xbf16> to vector<16x6xbf16>
      %57 = tpu.concatenate %55, %56 in 1 : vector<16x2xbf16>, vector<16x6xbf16> -> vector<16x8xbf16>
      %58 = vector.broadcast %1 : vector<1x8xbf16> to vector<16x8xbf16>
      %59 = arith.mulf %57, %58 : vector<16x8xbf16>
      %c0_26 = arith.constant 0 : index
      %c0_27 = arith.constant 0 : index
      %60 = vector.load %arg7[%c0_26, %c0_27] : memref<16x112xbf16, #tpu.memory_space<vmem>>, vector<16x16xbf16>
      %cst_28 = arith.constant dense<0.000000e+00> : vector<16x8xf32>
      %61 = tpu.matmul %60, %59, %cst_28 {dimension_numbers = #tpu.dot_dimension_numbers<[1], [0], [0], [1], [0, 0, 1, 1], [], []>} : vector<16x16xbf16>, vector<16x8xbf16>, vector<16x8xf32> -> vector<16x8xf32>
      %62 = arith.addf %54, %61 : vector<16x8xf32>
      %63 = vector.extract_strided_slice %48 {offsets = [0, 7], sizes = [16, 1], strides = [1, 1]} : vector<16x8xbf16> to vector<16x1xbf16>
      %64 = vector.extract_strided_slice %48 {offsets = [0, 0], sizes = [16, 7], strides = [1, 1]} : vector<16x8xbf16> to vector<16x7xbf16>
      %65 = tpu.concatenate %63, %64 in 1 : vector<16x1xbf16>, vector<16x7xbf16> -> vector<16x8xbf16>
      %66 = vector.broadcast %2 : vector<1x8xbf16> to vector<16x8xbf16>
      %67 = arith.mulf %65, %66 : vector<16x8xbf16>
      %c0_29 = arith.constant 0 : index
      %c16 = arith.constant 16 : index
      %68 = vector.load %arg7[%c0_29, %c16] : memref<16x112xbf16, #tpu.memory_space<vmem>>, vector<16x16xbf16>
      %cst_30 = arith.constant dense<0.000000e+00> : vector<16x8xf32>
      %69 = tpu.matmul %68, %67, %cst_30 {dimension_numbers = #tpu.dot_dimension_numbers<[1], [0], [0], [1], [0, 0, 1, 1], [], []>} : vector<16x16xbf16>, vector<16x8xbf16>, vector<16x8xf32> -> vector<16x8xf32>
      %70 = arith.addf %62, %69 : vector<16x8xf32>
      %71 = vector.extract_strided_slice %49 {offsets = [0, 7], sizes = [16, 1], strides = [1, 1]} : vector<16x8xbf16> to vector<16x1xbf16>
      %72 = vector.extract_strided_slice %49 {offsets = [0, 0], sizes = [16, 7], strides = [1, 1]} : vector<16x8xbf16> to vector<16x7xbf16>
      %73 = tpu.concatenate %71, %72 in 1 : vector<16x1xbf16>, vector<16x7xbf16> -> vector<16x8xbf16>
      %74 = vector.broadcast %2 : vector<1x8xbf16> to vector<16x8xbf16>
      %75 = arith.mulf %73, %74 : vector<16x8xbf16>
      %c0_31 = arith.constant 0 : index
      %c32_32 = arith.constant 32 : index
      %76 = vector.load %arg7[%c0_31, %c32_32] : memref<16x112xbf16, #tpu.memory_space<vmem>>, vector<16x16xbf16>
      %cst_33 = arith.constant dense<0.000000e+00> : vector<16x8xf32>
      %77 = tpu.matmul %76, %75, %cst_33 {dimension_numbers = #tpu.dot_dimension_numbers<[1], [0], [0], [1], [0, 0, 1, 1], [], []>} : vector<16x16xbf16>, vector<16x8xbf16>, vector<16x8xf32> -> vector<16x8xf32>
      %78 = arith.addf %70, %77 : vector<16x8xf32>
      %79 = vector.extract_strided_slice %48 {offsets = [0, 1], sizes = [16, 7], strides = [1, 1]} : vector<16x8xbf16> to vector<16x7xbf16>
      %80 = vector.extract_strided_slice %48 {offsets = [0, 0], sizes = [16, 1], strides = [1, 1]} : vector<16x8xbf16> to vector<16x1xbf16>
      %81 = tpu.concatenate %79, %80 in 1 : vector<16x7xbf16>, vector<16x1xbf16> -> vector<16x8xbf16>
      %82 = vector.broadcast %3 : vector<1x8xbf16> to vector<16x8xbf16>
      %83 = arith.mulf %81, %82 : vector<16x8xbf16>
      %c0_34 = arith.constant 0 : index
      %c80 = arith.constant 80 : index
      %84 = vector.load %arg7[%c0_34, %c80] : memref<16x112xbf16, #tpu.memory_space<vmem>>, vector<16x16xbf16>
      %cst_35 = arith.constant dense<0.000000e+00> : vector<16x8xf32>
      %85 = tpu.matmul %84, %83, %cst_35 {dimension_numbers = #tpu.dot_dimension_numbers<[1], [0], [0], [1], [0, 0, 1, 1], [], []>} : vector<16x16xbf16>, vector<16x8xbf16>, vector<16x8xf32> -> vector<16x8xf32>
      %86 = arith.addf %78, %85 : vector<16x8xf32>
      %87 = vector.extract_strided_slice %49 {offsets = [0, 1], sizes = [16, 7], strides = [1, 1]} : vector<16x8xbf16> to vector<16x7xbf16>
      %88 = vector.extract_strided_slice %49 {offsets = [0, 0], sizes = [16, 1], strides = [1, 1]} : vector<16x8xbf16> to vector<16x1xbf16>
      %89 = tpu.concatenate %87, %88 in 1 : vector<16x7xbf16>, vector<16x1xbf16> -> vector<16x8xbf16>
      %90 = vector.broadcast %3 : vector<1x8xbf16> to vector<16x8xbf16>
      %91 = arith.mulf %89, %90 : vector<16x8xbf16>
      %c0_36 = arith.constant 0 : index
      %c96 = arith.constant 96 : index
      %92 = vector.load %arg7[%c0_36, %c96] : memref<16x112xbf16, #tpu.memory_space<vmem>>, vector<16x16xbf16>
      %cst_37 = arith.constant dense<0.000000e+00> : vector<16x8xf32>
      %93 = tpu.matmul %92, %91, %cst_37 {dimension_numbers = #tpu.dot_dimension_numbers<[1], [0], [0], [1], [0, 0, 1, 1], [], []>} : vector<16x16xbf16>, vector<16x8xbf16>, vector<16x8xf32> -> vector<16x8xf32>
      %94 = arith.addf %86, %93 : vector<16x8xf32>
      %cst_38 = arith.constant dense<0.000000e+00> : vector<16xf32>
      %95 = vector.multi_reduction <add>, %94, %cst_38 [1] : vector<16x8xf32> to vector<16xf32>
      %96 = vector.shape_cast %95 : vector<16xf32> to vector<16x1xf32>
      %cst_39 = arith.constant 1.250000e-01 : f32
      %97 = vector.broadcast %cst_39 : f32 to vector<16x1xf32>
      %98 = arith.mulf %96, %97 : vector<16x1xf32>
      %99 = vector.broadcast %98 : vector<16x1xf32> to vector<16x8xf32>
      %100 = arith.subf %94, %99 : vector<16x8xf32>
      %101 = arith.mulf %100, %100 : vector<16x8xf32>
      %cst_40 = arith.constant dense<0.000000e+00> : vector<16xf32>
      %102 = vector.multi_reduction <add>, %101, %cst_40 [1] : vector<16x8xf32> to vector<16xf32>
      %103 = vector.shape_cast %102 : vector<16xf32> to vector<16x1xf32>
      %cst_41 = arith.constant 1.250000e-01 : f32
      %104 = vector.broadcast %cst_41 : f32 to vector<16x1xf32>
      %105 = arith.mulf %103, %104 : vector<16x1xf32>
      %c32_42 = arith.constant 32 : index
      %c0_43 = arith.constant 0 : index
      %106 = vector.load %arg8[%c32_42, %c0_43] : memref<64x1xf32, #tpu.memory_space<vmem>>, vector<16x1xf32>
      %cst_44 = arith.constant 9.99999974E-6 : f32
      %107 = vector.broadcast %cst_44 : f32 to vector<16x1xf32>
      %108 = arith.addf %105, %107 : vector<16x1xf32>
      %109 = math.rsqrt %108 : vector<16x1xf32>
      %110 = arith.mulf %106, %109 : vector<16x1xf32>
      %111 = vector.broadcast %110 : vector<16x1xf32> to vector<16x8xf32>
      %112 = arith.mulf %100, %111 : vector<16x8xf32>
      %c32_45 = arith.constant 32 : index
      %c0_46 = arith.constant 0 : index
      %113 = vector.load %arg9[%c32_45, %c0_46] : memref<64x1xf32, #tpu.memory_space<vmem>>, vector<16x1xf32>
      %114 = vector.broadcast %113 : vector<16x1xf32> to vector<16x8xf32>
      %115 = arith.addf %112, %114 : vector<16x8xf32>
      %cst_47 = arith.constant 0.000000e+00 : f32
      %116 = vector.broadcast %cst_47 : f32 to vector<16x8xf32>
      %117 = arith.cmpf ogt, %115, %116 : vector<16x8xf32>
      %cst_48 = arith.constant 0.000000e+00 : f32
      %118 = vector.broadcast %cst_48 : f32 to vector<16x8xf32>
      %119 = arith.minimumf %115, %118 : vector<16x8xf32>
      %120 = math.exp %119 : vector<16x8xf32>
      %cst_49 = arith.constant 1.000000e+00 : f32
      %121 = vector.broadcast %cst_49 : f32 to vector<16x8xf32>
      %122 = arith.subf %120, %121 : vector<16x8xf32>
      %123 = arith.select %117, %115, %122 : vector<16x8xi1>, vector<16x8xf32>
      %c0_50 = arith.constant 0 : index
      %c0_51 = arith.constant 0 : index
      %c0_52 = arith.constant 0 : index
      %124 = vector.load %arg11[%c0_50, %c0_51, %c0_52] : memref<1x16x8xf32, #tpu.memory_space<vmem>>, vector<1x16x8xf32>
      %125 = vector.shape_cast %124 : vector<1x16x8xf32> to vector<16x8xf32>
      %126 = vector.shape_cast %123 : vector<16x8xf32> to vector<1x16x8xf32>
      tpu.vector_store %arg11[%c0_50, %c0_51, %c0_52], %126 {strides = array<i32>} : memref<1x16x8xf32, #tpu.memory_space<vmem>>, vector<1x16x8xf32>,
    } else {
    }
    %c3_i32 = arith.constant 3 : i32
    %13 = arith.cmpi eq, %arg0, %c3_i32 : i32
    %14 = arith.extui %13 : i1 to i32
    %c0_i32_8 = arith.constant 0 : i32
    %15 = arith.cmpi ne, %14, %c0_i32_8 : i32
    scf.if %15 {
      %16 = vector.extract_strided_slice %0 {offsets = [0, 0], sizes = [16, 8], strides = [1, 1]} : vector<16x16xbf16> to vector<16x8xbf16>
      %17 = vector.extract_strided_slice %0 {offsets = [0, 8], sizes = [16, 8], strides = [1, 1]} : vector<16x16xbf16> to vector<16x8xbf16>
      %18 = arith.maximumf %16, %17 : vector<16x8xbf16>
      %19 = arith.extf %18 : vector<16x8xbf16> to vector<16x8xf32>
      %cst = arith.constant dense<0.000000e+00> : vector<16xf32>
      %20 = vector.multi_reduction <add>, %19, %cst [1] : vector<16x8xf32> to vector<16xf32>
      %21 = vector.shape_cast %20 : vector<16xf32> to vector<16x1xf32>
      %cst_9 = arith.constant 1.250000e-01 : f32
      %22 = vector.broadcast %cst_9 : f32 to vector<16x1xf32>
      %23 = arith.mulf %21, %22 : vector<16x1xf32>
      %24 = vector.broadcast %23 : vector<16x1xf32> to vector<16x8xf32>
      %25 = arith.subf %19, %24 : vector<16x8xf32>
      %26 = arith.mulf %25, %25 : vector<16x8xf32>
      %cst_10 = arith.constant dense<0.000000e+00> : vector<16xf32>
      %27 = vector.multi_reduction <add>, %26, %cst_10 [1] : vector<16x8xf32> to vector<16xf32>
      %28 = vector.shape_cast %27 : vector<16xf32> to vector<16x1xf32>
      %cst_11 = arith.constant 1.250000e-01 : f32
      %29 = vector.broadcast %cst_11 : f32 to vector<16x1xf32>
      %30 = arith.mulf %28, %29 : vector<16x1xf32>
      %c48 = arith.constant 48 : index
      %c0_12 = arith.constant 0 : index
      %31 = vector.load %arg8[%c48, %c0_12] : memref<64x1xf32, #tpu.memory_space<vmem>>, vector<16x1xf32>
      %cst_13 = arith.constant 9.99999974E-6 : f32
      %32 = vector.broadcast %cst_13 : f32 to vector<16x1xf32>
      %33 = arith.addf %30, %32 : vector<16x1xf32>
      %34 = math.rsqrt %33 : vector<16x1xf32>
      %35 = arith.mulf %31, %34 : vector<16x1xf32>
      %36 = vector.broadcast %35 : vector<16x1xf32> to vector<16x8xf32>
      %37 = arith.mulf %25, %36 : vector<16x8xf32>
      %c48_14 = arith.constant 48 : index
      %c0_15 = arith.constant 0 : index
      %38 = vector.load %arg9[%c48_14, %c0_15] : memref<64x1xf32, #tpu.memory_space<vmem>>, vector<16x1xf32>
      %39 = vector.broadcast %38 : vector<16x1xf32> to vector<16x8xf32>
      %40 = arith.addf %37, %39 : vector<16x8xf32>
      %cst_16 = arith.constant 0.000000e+00 : f32
      %41 = vector.broadcast %cst_16 : f32 to vector<16x8xf32>
      %42 = arith.cmpf ogt, %40, %41 : vector<16x8xf32>
      %cst_17 = arith.constant 0.000000e+00 : f32
      %43 = vector.broadcast %cst_17 : f32 to vector<16x8xf32>
      %44 = arith.minimumf %40, %43 : vector<16x8xf32>
      %45 = math.exp %44 : vector<16x8xf32>
      %cst_18 = arith.constant 1.000000e+00 : f32
      %46 = vector.broadcast %cst_18 : f32 to vector<16x8xf32>
      %47 = arith.subf %45, %46 : vector<16x8xf32>
      %48 = arith.select %42, %40, %47 : vector<16x8xi1>, vector<16x8xf32>
      %c0_19 = arith.constant 0 : index
      %c0_20 = arith.constant 0 : index
      %c0_21 = arith.constant 0 : index
      %49 = vector.load %arg11[%c0_19, %c0_20, %c0_21] : memref<1x16x8xf32, #tpu.memory_space<vmem>>, vector<1x16x8xf32>
      %50 = vector.shape_cast %49 : vector<1x16x8xf32> to vector<16x8xf32>
      %51 = vector.shape_cast %48 : vector<16x8xf32> to vector<1x16x8xf32>
      tpu.vector_store %arg11[%c0_19, %c0_20, %c0_21], %51 {strides = array<i32>} : memref<1x16x8xf32, #tpu.memory_space<vmem>>, vector<1x16x8xf32>,
    } else {
    }
    return
  }
  func.func @transform_0(%arg0: i32) -> (i32, i32) {
    %c0_i32 = arith.constant 0 : i32
    %c0_i32_0 = arith.constant 0 : i32
    %c0_i32_1 = arith.constant 0 : i32
    return %c0_i32, %c0_i32_0 : i32, i32
  }
  func.func @transform_1(%arg0: i32) -> (i32, i32) {
    %c0_i32 = arith.constant 0 : i32
    %c0_i32_0 = arith.constant 0 : i32
    %c0_i32_1 = arith.constant 0 : i32
    return %c0_i32, %c0_i32_0 : i32, i32
  }
  func.func @transform_2(%arg0: i32) -> (i32, i32) {
    %c0_i32 = arith.constant 0 : i32
    %c0_i32_0 = arith.constant 0 : i32
    %c0_i32_1 = arith.constant 0 : i32
    return %c0_i32, %c0_i32_0 : i32, i32
  }
  func.func @transform_3(%arg0: i32) -> (i32, i32) {
    %c0_i32 = arith.constant 0 : i32
    %c0_i32_0 = arith.constant 0 : i32
    %c0_i32_1 = arith.constant 0 : i32
    return %c0_i32, %c0_i32_0 : i32, i32
  }
  func.func @transform_4(%arg0: i32) -> (i32, i32) {
    %c0_i32 = arith.constant 0 : i32
    %c0_i32_0 = arith.constant 0 : i32
    %c0_i32_1 = arith.constant 0 : i32
    return %c0_i32, %c0_i32_0 : i32, i32
  }
  func.func @transform_5(%arg0: i32) -> (i32, i32) {
    %c0_i32 = arith.constant 0 : i32
    %c0_i32_0 = arith.constant 0 : i32
    %c0_i32_1 = arith.constant 0 : i32
    return %c0_i32, %c0_i32_0 : i32, i32
  }
  func.func @transform_6(%arg0: i32) -> (i32, i32) {
    %c0_i32 = arith.constant 0 : i32
    %c0_i32_0 = arith.constant 0 : i32
    %c0_i32_1 = arith.constant 0 : i32
    return %c0_i32, %c0_i32_0 : i32, i32
  }
  func.func @transform_7(%arg0: i32) -> (i32, i32) {
    %c0_i32 = arith.constant 0 : i32
    %c0_i32_0 = arith.constant 0 : i32
    %c0_i32_1 = arith.constant 0 : i32
    return %c0_i32, %c0_i32_0 : i32, i32
  }
  func.func @transform_8(%arg0: i32) -> (i32, i32) {
    %c0_i32 = arith.constant 0 : i32
    %c0_i32_0 = arith.constant 0 : i32
    %c0_i32_1 = arith.constant 0 : i32
    return %c0_i32, %c0_i32_0 : i32, i32
  }
  func.func @transform_9(%arg0: i32) -> (i32, i32) {
    %c0_i32 = arith.constant 0 : i32
    %c0_i32_0 = arith.constant 0 : i32
    %c0_i32_1 = arith.constant 0 : i32
    return %c0_i32, %c0_i32_0 : i32, i32
  }
  func.func @transform_10(%arg0: i32) -> (i32, i32, i32) {
    %c0_i32 = arith.constant 0 : i32
    %c0_i32_0 = arith.constant 0 : i32
    %c0_i32_1 = arith.constant 0 : i32
    return %arg0, %c0_i32, %c0_i32_0 : i32, i32, i32
  }
}

</mosaic_0001>

<llo_original>
// kernel: multi_kernel_forward.2
$region0: #{multi_kernel_forward.2}
  #allocation0 [shape = 'u32[]', space=smem, size = 0x4, offset = 0x4, fixed_abs, tag = 'smem constant byte address 0x4 - core index']
  #allocation1 [shape = 'u32[144,128]{1,0:T(1,128)}', space=vmem, size = 0x12000, scoped, tag = 'internal scratch']
  %s0 = inlined_call_operand.vmem [shape: bf16[4,32], index: 0, kind: input, shape index: {}]
  %s1 = inlined_call_operand.vmem [shape: bf16[12,4], index: 1, kind: input, shape index: {}]
  %s2 = inlined_call_operand.vmem [shape: f32[12,1], index: 2, kind: input, shape index: {}]
  %s3 = inlined_call_operand.vmem [shape: f32[12,1], index: 3, kind: input, shape index: {}]
  %s4 = inlined_call_operand.vmem [shape: bf16[4,12], index: 4, kind: input, shape index: {}]
  %s5 = inlined_call_operand.vmem [shape: bf16[4,20], index: 5, kind: input, shape index: {}]
  %s6 = inlined_call_operand.vmem [shape: bf16[4,28], index: 6, kind: input, shape index: {}]
  %s7 = inlined_call_operand.vmem [shape: f32[16,1], index: 7, kind: input, shape index: {}]
  %s8 = inlined_call_operand.vmem [shape: f32[16,1], index: 8, kind: input, shape index: {}]
  %s9 = inlined_call_operand.vmem [shape: bf16[3,16], index: 9, kind: input, shape index: {}]
  %s10 = inlined_call_operand.vmem [shape: bf16[4,4,16], index: 10, kind: output, shape index: {}]
  %s11 = sld [smem:[#allocation0]]
  $region89: #{multi_kernel_forward.2} parent=0
    _
  %s13 = ssub.s32 1, %s11
  %s14 = scalar_select 0, %s13, %s11
  loop: start=0, step=1, limit=6
  $region2: #{multi_kernel_forward.2} parent=0 // loop_pre_header
    _
  $region3: #{multi_kernel_forward.2} parent=0 // loop_header
    %s16 = sphi 0, %s20
    %p17 = scmp.ge.s32.totalorder %s16, 6
    %s24 = sphi 0, %s24
    %s26 = sphi 0, %s24
    %s27 = sphi 0, %s26
    %s41 = sphi 0, %s27
    %s45 = sphi 0, %s45
    %s47 = sphi 0, %s45
    %s48 = sphi 0, %s47
    %s62 = sphi 0, %s48
    %s66 = sphi 0, %s66
    %s68 = sphi 0, %s66
    %s69 = sphi 0, %s68
    %s83 = sphi 0, %s69
    %s87 = sphi 0, %s87
    %s89 = sphi 0, %s87
    %s90 = sphi 0, %s89
    %s104 = sphi 0, %s90
    %s108 = sphi 0, %s108
    %s110 = sphi 0, %s108
    %s111 = sphi 0, %s110
    %s125 = sphi 0, %s111
    %s129 = sphi 0, %s129
    %s131 = sphi 0, %s129
    %s132 = sphi 0, %s131
    %s146 = sphi 0, %s132
    %s150 = sphi 0, %s150
    %s152 = sphi 0, %s150
    %s153 = sphi 0, %s152
    %s167 = sphi 0, %s153
    %s171 = sphi 0, %s171
    %s173 = sphi 0, %s171
    %s174 = sphi 0, %s173
    %s188 = sphi 0, %s174
    %s192 = sphi 0, %s192
    %s194 = sphi 0, %s192
    %s195 = sphi 0, %s194
    %s209 = sphi 0, %s195
    %s213 = sphi 0, %s213
    %s215 = sphi 0, %s213
    %s216 = sphi 0, %s215
    %s230 = sphi 0, %s216
    %s236 = sphi 0, %s238
    %s239 = sphi 0, %s236
    %s240 = sphi 0, %s239
    %s256 = sphi 0, %s240
  $region4: #{multi_kernel_forward.2} parent=0 // loop_header_branch
    %19 = sbr.rel (%p17) target = $region8
  $region5: #{multi_kernel_forward.2} parent=0 // loop_body
    %s21 = ssub.s32 %s16, 1
    %s22 = ssub.s32 %s16, 2
    %s23 = sadd.s32 %s16, 1
    %s25 = sadd.s32 %s24, 1
    %p28 = scmp.eq.s32.totalorder %s16, 3
    %p29 = scmp.ne.s32.totalorder %s24, %s26
    %p30 = scmp.eq.s32.totalorder %s16, 0
    %p31 = por %p29, %p30
    %p32 = scmp.ne.s32.totalorder %s24, %s26
    %p33 = scmp.eq.s32.totalorder %s21, 3
    %p34 = por %p32, %p33
    %p35 = scmp.ne.s32.totalorder %s26, %s27
    %p36 = scmp.eq.s32.totalorder %s21, 0
    %p37 = por %p35, %p36
    %p38 = scmp.ne.s32.totalorder %s26, %s27
    %p39 = scmp.eq.s32.totalorder %s22, 3
    %p40 = por %p38, %p39
    %p42 = scmp.ne.s32.totalorder %s27, %s41
    %p43 = scmp.eq.s32.totalorder %s22, 0
    %p44 = por %p42, %p43
    %s46 = sadd.s32 %s45, 1
    %p49 = scmp.eq.s32.totalorder %s16, 3
    %p50 = scmp.ne.s32.totalorder %s45, %s47
    %p51 = scmp.eq.s32.totalorder %s16, 0
    %p52 = por %p50, %p51
    %p53 = scmp.ne.s32.totalorder %s45, %s47
    %p54 = scmp.eq.s32.totalorder %s21, 3
    %p55 = por %p53, %p54
    %p56 = scmp.ne.s32.totalorder %s47, %s48
    %p57 = scmp.eq.s32.totalorder %s21, 0
    %p58 = por %p56, %p57
    %p59 = scmp.ne.s32.totalorder %s47, %s48
    %p60 = scmp.eq.s32.totalorder %s22, 3
    %p61 = por %p59, %p60
    %p63 = scmp.ne.s32.totalorder %s48, %s62
    %p64 = scmp.eq.s32.totalorder %s22, 0
    %p65 = por %p63, %p64
    %s67 = sadd.s32 %s66, 1
    %p70 = scmp.eq.s32.totalorder %s16, 3
    %p71 = scmp.ne.s32.totalorder %s66, %s68
    %p72 = scmp.eq.s32.totalorder %s16, 0
    %p73 = por %p71, %p72
    %p74 = scmp.ne.s32.totalorder %s66, %s68
    %p75 = scmp.eq.s32.totalorder %s21, 3
    %p76 = por %p74, %p75
    %p77 = scmp.ne.s32.totalorder %s68, %s69
    %p78 = scmp.eq.s32.totalorder %s21, 0
    %p79 = por %p77, %p78
    %p80 = scmp.ne.s32.totalorder %s68, %s69
    %p81 = scmp.eq.s32.totalorder %s22, 3
    %p82 = por %p80, %p81
    %p84 = scmp.ne.s32.totalorder %s69, %s83
    %p85 = scmp.eq.s32.totalorder %s22, 0
    %p86 = por %p84, %p85
    %s88 = sadd.s32 %s87, 1
    %p91 = scmp.eq.s32.totalorder %s16, 3
    %p92 = scmp.ne.s32.totalorder %s87, %s89
    %p93 = scmp.eq.s32.totalorder %s16, 0
    %p94 = por %p92, %p93
    %p95 = scmp.ne.s32.totalorder %s87, %s89
    %p96 = scmp.eq.s32.totalorder %s21, 3
    %p97 = por %p95, %p96
    %p98 = scmp.ne.s32.totalorder %s89, %s90
    %p99 = scmp.eq.s32.totalorder %s21, 0
    %p100 = por %p98, %p99
    %p101 = scmp.ne.s32.totalorder %s89, %s90
    %p102 = scmp.eq.s32.totalorder %s22, 3
    %p103 = por %p101, %p102
    %p105 = scmp.ne.s32.totalorder %s90, %s104
    %p106 = scmp.eq.s32.totalorder %s22, 0
    %p107 = por %p105, %p106
    %s109 = sadd.s32 %s108, 1
    %p112 = scmp.eq.s32.totalorder %s16, 3
    %p113 = scmp.ne.s32.totalorder %s108, %s110
    %p114 = scmp.eq.s32.totalorder %s16, 0
    %p115 = por %p113, %p114
    %p116 = scmp.ne.s32.totalorder %s108, %s110
    %p117 = scmp.eq.s32.totalorder %s21, 3
    %p118 = por %p116, %p117
    %p119 = scmp.ne.s32.totalorder %s110, %s111
    %p120 = scmp.eq.s32.totalorder %s21, 0
    %p121 = por %p119, %p120
    %p122 = scmp.ne.s32.totalorder %s110, %s111
    %p123 = scmp.eq.s32.totalorder %s22, 3
    %p124 = por %p122, %p123
    %p126 = scmp.ne.s32.totalorder %s111, %s125
    %p127 = scmp.eq.s32.totalorder %s22, 0
    %p128 = por %p126, %p127
    %s130 = sadd.s32 %s129, 1
    %p133 = scmp.eq.s32.totalorder %s16, 3
    %p134 = scmp.ne.s32.totalorder %s129, %s131
    %p135 = scmp.eq.s32.totalorder %s16, 0
    %p136 = por %p134, %p135
    %p137 = scmp.ne.s32.totalorder %s129, %s131
    %p138 = scmp.eq.s32.totalorder %s21, 3
    %p139 = por %p137, %p138
    %p140 = scmp.ne.s32.totalorder %s131, %s132
    %p141 = scmp.eq.s32.totalorder %s21, 0
    %p142 = por %p140, %p141
    %p143 = scmp.ne.s32.totalorder %s131, %s132
    %p144 = scmp.eq.s32.totalorder %s22, 3
    %p145 = por %p143, %p144
    %p147 = scmp.ne.s32.totalorder %s132, %s146
    %p148 = scmp.eq.s32.totalorder %s22, 0
    %p149 = por %p147, %p148
    %s151 = sadd.s32 %s150, 1
    %p154 = scmp.eq.s32.totalorder %s16, 3
    %p155 = scmp.ne.s32.totalorder %s150, %s152
    %p156 = scmp.eq.s32.totalorder %s16, 0
    %p157 = por %p155, %p156
    %p158 = scmp.ne.s32.totalorder %s150, %s152
    %p159 = scmp.eq.s32.totalorder %s21, 3
    %p160 = por %p158, %p159
    %p161 = scmp.ne.s32.totalorder %s152, %s153
    %p162 = scmp.eq.s32.totalorder %s21, 0
    %p163 = por %p161, %p162
    %p164 = scmp.ne.s32.totalorder %s152, %s153
    %p165 = scmp.eq.s32.totalorder %s22, 3
    %p166 = por %p164, %p165
    %p168 = scmp.ne.s32.totalorder %s153, %s167
    %p169 = scmp.eq.s32.totalorder %s22, 0
    %p170 = por %p168, %p169
    %s172 = sadd.s32 %s171, 1
    %p175 = scmp.eq.s32.totalorder %s16, 3
    %p176 = scmp.ne.s32.totalorder %s171, %s173
    %p177 = scmp.eq.s32.totalorder %s16, 0
    %p178 = por %p176, %p177
    %p179 = scmp.ne.s32.totalorder %s171, %s173
    %p180 = scmp.eq.s32.totalorder %s21, 3
    %p181 = por %p179, %p180
    %p182 = scmp.ne.s32.totalorder %s173, %s174
    %p183 = scmp.eq.s32.totalorder %s21, 0
    %p184 = por %p182, %p183
    %p185 = scmp.ne.s32.totalorder %s173, %s174
    %p186 = scmp.eq.s32.totalorder %s22, 3
    %p187 = por %p185, %p186
    %p189 = scmp.ne.s32.totalorder %s174, %s188
    %p190 = scmp.eq.s32.totalorder %s22, 0
    %p191 = por %p189, %p190
    %s193 = sadd.s32 %s192, 1
    %p196 = scmp.eq.s32.totalorder %s16, 3
    %p197 = scmp.ne.s32.totalorder %s192, %s194
    %p198 = scmp.eq.s32.totalorder %s16, 0
    %p199 = por %p197, %p198
    %p200 = scmp.ne.s32.totalorder %s192, %s194
    %p201 = scmp.eq.s32.totalorder %s21, 3
    %p202 = por %p200, %p201
    %p203 = scmp.ne.s32.totalorder %s194, %s195
    %p204 = scmp.eq.s32.totalorder %s21, 0
    %p205 = por %p203, %p204
    %p206 = scmp.ne.s32.totalorder %s194, %s195
    %p207 = scmp.eq.s32.totalorder %s22, 3
    %p208 = por %p206, %p207
    %p210 = scmp.ne.s32.totalorder %s195, %s209
    %p211 = scmp.eq.s32.totalorder %s22, 0
    %p212 = por %p210, %p211
    %s214 = sadd.s32 %s213, 1
    %p217 = scmp.eq.s32.totalorder %s16, 3
    %p218 = scmp.ne.s32.totalorder %s213, %s215
    %p219 = scmp.eq.s32.totalorder %s16, 0
    %p220 = por %p218, %p219
    %p221 = scmp.ne.s32.totalorder %s213, %s215
    %p222 = scmp.eq.s32.totalorder %s21, 3
    %p223 = por %p221, %p222
    %p224 = scmp.ne.s32.totalorder %s215, %s216
    %p225 = scmp.eq.s32.totalorder %s21, 0
    %p226 = por %p224, %p225
    %p227 = scmp.ne.s32.totalorder %s215, %s216
    %p228 = scmp.eq.s32.totalorder %s22, 3
    %p229 = por %p227, %p228
    %p231 = scmp.ne.s32.totalorder %s216, %s230
    %p232 = scmp.eq.s32.totalorder %s22, 0
    %p233 = por %p231, %p232
    %s234 = ssub.s32 %s16, %s23
    %p235 = scmp.eq.s32.totalorder %s234, 0
    %s237 = sadd.s32 %s236, 1
    %s238 = scalar_select %p235, %s236, %s237
    %p241 = pneg %p235
    %p242 = scmp.eq.s32.totalorder %s16, 3
    %p243 = por %p241, %p242
    %p244 = scmp.ne.s32.totalorder %s236, %s239
    %p245 = scmp.eq.s32.totalorder %s16, 0
    %p246 = por %p244, %p245
    %p247 = scmp.ne.s32.totalorder %s236, %s239
    %p248 = scmp.eq.s32.totalorder %s21, 3
    %p249 = por %p247, %p248
    %p250 = scmp.ne.s32.totalorder %s239, %s240
    %p251 = scmp.eq.s32.totalorder %s21, 0
    %p252 = por %p250, %p251
    %p253 = scmp.ne.s32.totalorder %s239, %s240
    %p254 = scmp.eq.s32.totalorder %s22, 3
    %p255 = por %p253, %p254
    %p257 = scmp.ne.s32.totalorder %s240, %s256
    %p258 = scmp.eq.s32.totalorder %s22, 0
    %p259 = por %p257, %p258
    %p260 = scmp.le.s32.totalorder 1, %s16
    %p261 = scmp.lt.s32.totalorder %s16, 5
    %p262 = pnand %p260, %p261
    %p263 = pneg %p262
    // Predicated region
    $region9: #{multi_kernel_forward.2} parent=5 // pred_check
      _
    $region10: #{multi_kernel_forward.2} parent=5 // pred_check_branch
      %265 = sbr.rel (%p262) target = $region12
    $region11: #{multi_kernel_forward.2} parent=5 // pred_region
      %s266 = ssub.s32 %s16, 1
      // Predicated region
      $region13: #{multi_kernel_forward.2} parent=11 // pred_check
        %p267 = pneg %p37
      $region14: #{multi_kernel_forward.2} parent=11 // pred_check_branch
        %269 = sbr.rel (%p267) target = $region16
      $region15: #{multi_kernel_forward.2} parent=11 // pred_region
        _
      $region16: #{multi_kernel_forward.2} parent=11 // pred_fallthru
        _
      // Predicated region
      $region17: #{multi_kernel_forward.2} parent=11 // pred_check
        %p270 = pneg %p58
      $region18: #{multi_kernel_forward.2} parent=11 // pred_check_branch
        %272 = sbr.rel (%p270) target = $region20
      $region19: #{multi_kernel_forward.2} parent=11 // pred_region
        _
      $region20: #{multi_kernel_forward.2} parent=11 // pred_fallthru
        _
      // Predicated region
      $region21: #{multi_kernel_forward.2} parent=11 // pred_check
        %p273 = pneg %p79
      $region22: #{multi_kernel_forward.2} parent=11 // pred_check_branch
        %275 = sbr.rel (%p273) target = $region24
      $region23: #{multi_kernel_forward.2} parent=11 // pred_region
        _
      $region24: #{multi_kernel_forward.2} parent=11 // pred_fallthru
        _
      // Predicated region
      $region25: #{multi_kernel_forward.2} parent=11 // pred_check
        %p276 = pneg %p100
      $region26: #{multi_kernel_forward.2} parent=11 // pred_check_branch
        %278 = sbr.rel (%p276) target = $region28
      $region27: #{multi_kernel_forward.2} parent=11 // pred_region
        _
      $region28: #{multi_kernel_forward.2} parent=11 // pred_fallthru
        _
      // Predicated region
      $region29: #{multi_kernel_forward.2} parent=11 // pred_check
        %p279 = pneg %p121
      $region30: #{multi_kernel_forward.2} parent=11 // pred_check_branch
        %281 = sbr.rel (%p279) target = $region32
      $region31: #{multi_kernel_forward.2} parent=11 // pred_region
        _
      $region32: #{multi_kernel_forward.2} parent=11 // pred_fallthru
        _
      // Predicated region
      $region33: #{multi_kernel_forward.2} parent=11 // pred_check
        %p282 = pneg %p142
      $region34: #{multi_kernel_forward.2} parent=11 // pred_check_branch
        %284 = sbr.rel (%p282) target = $region36
      $region35: #{multi_kernel_forward.2} parent=11 // pred_region
        _
      $region36: #{multi_kernel_forward.2} parent=11 // pred_fallthru
        _
      // Predicated region
      $region37: #{multi_kernel_forward.2} parent=11 // pred_check
        %p285 = pneg %p163
      $region38: #{multi_kernel_forward.2} parent=11 // pred_check_branch
        %287 = sbr.rel (%p285) target = $region40
      $region39: #{multi_kernel_forward.2} parent=11 // pred_region
        _
      $region40: #{multi_kernel_forward.2} parent=11 // pred_fallthru
        _
      // Predicated region
      $region41: #{multi_kernel_forward.2} parent=11 // pred_check
        %p288 = pneg %p184
      $region42: #{multi_kernel_forward.2} parent=11 // pred_check_branch
        %290 = sbr.rel (%p288) target = $region44
      $region43: #{multi_kernel_forward.2} parent=11 // pred_region
        _
      $region44: #{multi_kernel_forward.2} parent=11 // pred_fallthru
        _
      // Predicated region
      $region45: #{multi_kernel_forward.2} parent=11 // pred_check
        %p291 = pneg %p205
      $region46: #{multi_kernel_forward.2} parent=11 // pred_check_branch
        %293 = sbr.rel (%p291) target = $region48
      $region47: #{multi_kernel_forward.2} parent=11 // pred_region
        _
      $region48: #{multi_kernel_forward.2} parent=11 // pred_fallthru
        _
      // Predicated region
      $region49: #{multi_kernel_forward.2} parent=11 // pred_check
        %p294 = pneg %p226
      $region50: #{multi_kernel_forward.2} parent=11 // pred_check_branch
        %296 = sbr.rel (%p294) target = $region52
      $region51: #{multi_kernel_forward.2} parent=11 // pred_region
        _
      $region52: #{multi_kernel_forward.2} parent=11 // pred_fallthru
        _
    $region12: #{multi_kernel_forward.2} parent=5 // pred_fallthru
      _
    %p297 = scmp.lt.s32.totalorder %s16, 4
    // Predicated region
    $region53: #{multi_kernel_forward.2} parent=5 // pred_check
      %p298 = pneg %p297
    $region54: #{multi_kernel_forward.2} parent=5 // pred_check_branch
      %300 = sbr.rel (%p298) target = $region56
    $region55: #{multi_kernel_forward.2} parent=5 // pred_region
      _
    $region56: #{multi_kernel_forward.2} parent=5 // pred_fallthru
      _
    %p301 = scmp.le.s32.totalorder 1, %s16
    %p302 = scmp.lt.s32.totalorder %s16, 5
    %p303 = pnand %p301, %p302
    %p304 = pneg %p303
    // Predicated region
    $region57: #{multi_kernel_forward.2} parent=5 // pred_check
      _
    $region58: #{multi_kernel_forward.2} parent=5 // pred_check_branch
      %306 = sbr.rel (%p303) target = $region60
    $region59: #{multi_kernel_forward.2} parent=5 // pred_region
      %s307 = ssub.s32 %s16, 1
      %p308 = pneg %p37
      %p309 = pneg %p34
      %p310 = pneg %p58
      %p311 = pneg %p55
      %p312 = pneg %p79
      %p313 = pneg %p76
      %p314 = pneg %p100
      %p315 = pneg %p97
      %p316 = pneg %p121
      %p317 = pneg %p118
      %p318 = pneg %p142
      %p319 = pneg %p139
      %p320 = pneg %p163
      %p321 = pneg %p160
      %p322 = pneg %p184
      %p323 = pneg %p181
      %p324 = pneg %p205
      %p325 = pneg %p202
      %p326 = pneg %p226
      %p327 = pneg %p223
      %p328 = pneg %p252
      %p329 = pneg %p249
      %p330 = scmp.lt.s32.totalorder %s21, 3
      %s331 = scalar_select %p330, %s21, 3
      %s332 = smul.addr %s331, 2
      %s333 = scalar_lea.vmem %s10, %s332
      %p334 = scmp.lt.s32.totalorder %s21, 3
      %s335 = scalar_select %p334, %s21, 3
      %s336 = smul.addr %s335, 2
      %s337 = scalar_lea.vmem %s10, %s336
      %v339 = vld [vmem:[%s0] sm:$0x3]
      %v340 = vld [vmem:[%s9] sm:$0x1]
      %v341 = vld [vmem:[%s9] sm:$0x2]
      %p342 = scmp.eq.s32.totalorder %s21, 0
      // Predicated region
      $region61: #{multi_kernel_forward.2} parent=59 // pred_check
        %p343 = pneg %p342
      $region62: #{multi_kernel_forward.2} parent=59 // pred_check_branch
        %345 = sbr.rel (%p343) target = $region64
      $region63: #{multi_kernel_forward.2} parent=59 // pred_region
        %v346 = vld [vmem:[%s1] sm:$0x3]
        %vm347 = vcmask 31744
        %v349 = vsel %vm347, %v346, 0
        %vm351 = vcmask 1041408
        %v353 = vsel %vm351, %v339, 0
        %355 = vmatprep.subr.bf16.mxu0 0
        %356 = vmatpush1.bf16.msra.mxu0 0
        %357 = vmatprep.subr.bf16.mxu0 0
        %358 = vmatpush1.bf16.msra.mxu0 0
        %359 = vmatprep.subr.bf16.mxu0 0
        %360 = vmatpush1.bf16.msra.mxu0 0
        %361 = vmatprep.subr.bf16.mxu0 0
        %362 = vmatpush1.bf16.msra.mxu0 0
        %363 = vmatprep.subr.bf16.mxu0 0
        %364 = vmatpush1.bf16.msra.mxu0 0
        %365 = vmatprep.subr.bf16.mxu0 0
        %366 = vmatpush1.bf16.msra.mxu0 0
        %367 = vmatprep.subr.bf16.mxu0 0
        %368 = vmatpush1.bf16.msra.mxu0 0
        %369 = vmatprep.subr.bf16.mxu0 0
        %370 = vmatpush1.bf16.msra.mxu0 %v353
        %371 = vmatprep.subr.bf16.mxu0 0
        %372 = vmatpush2.bf16.msra.mxu0 0
        %373 = vmatprep.subr.bf16.mxu0 0
        %374 = vmatpush2.bf16.msra.mxu0 0
        %375 = vmatprep.subr.bf16.mxu0 0
        %376 = vmatpush2.bf16.msra.mxu0 0
        %377 = vmatprep.subr.bf16.mxu0 0
        %378 = vmatpush2.bf16.msra.mxu0 0
        %379 = vmatprep.subr.bf16.mxu0 0
        %380 = vmatpush2.bf16.msra.mxu0 0
        %381 = vmatprep.subr.bf16.mxu0 0
        %382 = vmatpush2.bf16.msra.mxu0 0
        %383 = vmatprep.subr.bf16.mxu0 0
        %384 = vmatpush2.bf16.msra.mxu0 0
        %385 = vmatprep.subr.bf16.mxu0 0
        %386 = vmatpush2.bf16.msra.mxu0 0
        %387 = vmatprep.mubr.bf16.mxu0 0
        %388 = vmatmul.mubr.bf16.gmra.mxu0 %v349
        %v389 = vpop.f32.mrf.mxu0
        %v390 = vadd.f32 0.0, %v389
        %v391 = vpop.f32.mrf.mxu0
        %v392 = vpop.f32.mrf.mxu0
        %v393 = vpop.f32.mrf.mxu0
        %394 = vdwg.mxu0
        %vm395 = vcmask 257024
        %v396 = vsel %vm395, %v390, 0.0
        %397 = vadd.xlane.f32.xlu0 %v396
        %v398 = vpop.xlane.xlu0 %397
        %v399 = vmul.f32 %v398, 0.03125
        %v400 = vsub.f32 %v390, %v399
        %v401 = vmul.f32 %v400, %v400
        %v402 = vsel %vm395, %v401, 0.0
        %403 = vadd.xlane.f32.xlu0 %v402
        %v404 = vpop.xlane.xlu0 %403
        %v405 = vmul.f32 %v404, 0.03125
        %v406 = vld [vmem:[%s2] sm:$0xf]
        %v407 = vadd.f32 %v405, 1e-05
        %v408 = vrsqrt.pop %v407
        %v409 = vmul.f32 %v406, %v408
        %411 = vset.pattern.permute.xlu0 0
        %412 = vperm.xlu0 %411, %v409
        %v413 = vpop.permute.xlu0 %412
        %v415 = vmul.f32 %v400, %v413
        %v416 = vld [vmem:[%s3] sm:$0xf]
        %418 = vset.pattern.permute.xlu0 0
        %419 = vperm.xlu0 %418, %v416
        %v420 = vpop.permute.xlu0 %419
        %v422 = vadd.f32 %v415, %v420
        %vm423 = vcmp.gt.f32.partialorder %v422, 0.0
        %v424 = vmin.f32 %v422, 0.0
        %v425 = vmul.f32 %v424, 1.442695
        %v426 = vpow.pop %v425
        %v427 = vsub.f32 %v426, 1.0
        %v428 = vsel %vm423, %v422, %v427
        %v429 = vpack.c.bf16 %v428, %v428
        %v430 = vld [vmem:[%s4] sm:$0x3]
        %v433 = vunpack.c.l.s4 1983009808
        %v434 = vunpack.c.0.s8 %v433
        %v435 = vlaneseq
        %v436 = vshrl.u32 %v435, 7
        %v437 = vsub.s32 %v434, %v436
        %v438 = vrot.slane %v430, %v437
        %439 = vrot.lane.b32.xlu0 %v438, 120
        %v440 = vpop.permute.xlu0 %439
        %442 = vrot.lane.b32.xlu0 %v429, 112
        %v443 = vpop.permute.xlu0 %442
        %v445 = vsel %vm347, %v440, 0
        %v448 = vsel %vm351, %v443, 0
        %450 = vmatprep.subr.bf16.mxu0 0
        %451 = vmatpush1.bf16.msra.mxu0 0
        %452 = vmatprep.subr.bf16.mxu0 0
        %453 = vmatpush1.bf16.msra.mxu0 0
        %454 = vmatprep.subr.bf16.mxu0 0
        %455 = vmatpush1.bf16.msra.mxu0 0
        %456 = vmatprep.subr.bf16.mxu0 0
        %457 = vmatpush1.bf16.msra.mxu0 0
        %458 = vmatprep.subr.bf16.mxu0 0
        %459 = vmatpush1.bf16.msra.mxu0 0
        %460 = vmatprep.subr.bf16.mxu0 0
        %461 = vmatpush1.bf16.msra.mxu0 0
        %462 = vmatprep.subr.bf16.mxu0 0
        %463 = vmatpush1.bf16.msra.mxu0 0
        %464 = vmatprep.subr.bf16.mxu0 0
        %465 = vmatpush1.bf16.msra.mxu0 %v448
        %466 = vmatprep.subr.bf16.mxu0 0
        %467 = vmatpush2.bf16.msra.mxu0 0
        %468 = vmatprep.subr.bf16.mxu0 0
        %469 = vmatpush2.bf16.msra.mxu0 0
        %470 = vmatprep.subr.bf16.mxu0 0
        %471 = vmatpush2.bf16.msra.mxu0 0
        %472 = vmatprep.subr.bf16.mxu0 0
        %473 = vmatpush2.bf16.msra.mxu0 0
        %474 = vmatprep.subr.bf16.mxu0 0
        %475 = vmatpush2.bf16.msra.mxu0 0
        %476 = vmatprep.subr.bf16.mxu0 0
        %477 = vmatpush2.bf16.msra.mxu0 0
        %478 = vmatprep.subr.bf16.mxu0 0
        %479 = vmatpush2.bf16.msra.mxu0 0
        %480 = vmatprep.subr.bf16.mxu0 0
        %481 = vmatpush2.bf16.msra.mxu0 0
        %482 = vmatprep.mubr.bf16.mxu0 0
        %483 = vmatmul.mubr.bf16.gmra.mxu0 %v445
        %v484 = vpop.f32.mrf.mxu0
        %v485 = vadd.f32 0.0, %v484
        %v486 = vpop.f32.mrf.mxu0
        %v487 = vpop.f32.mrf.mxu0
        %v488 = vpop.f32.mrf.mxu0
        %489 = vdwg.mxu0
        %490 = vrot.lane.b32.xlu0 %v438, 124
        %v491 = vpop.permute.xlu0 %490
        %v493 = vsel %vm347, %v491, 0
        %v496 = vsel %vm351, %v429, 0
        %498 = vmatprep.subr.bf16.mxu0 0
        %499 = vmatpush1.bf16.msra.mxu0 0
        %500 = vmatprep.subr.bf16.mxu0 0
        %501 = vmatpush1.bf16.msra.mxu0 0
        %502 = vmatprep.subr.bf16.mxu0 0
        %503 = vmatpush1.bf16.msra.mxu0 0
        %504 = vmatprep.subr.bf16.mxu0 0
        %505 = vmatpush1.bf16.msra.mxu0 0
        %506 = vmatprep.subr.bf16.mxu0 0
        %507 = vmatpush1.bf16.msra.mxu0 0
        %508 = vmatprep.subr.bf16.mxu0 0
        %509 = vmatpush1.bf16.msra.mxu0 0
        %510 = vmatprep.subr.bf16.mxu0 0
        %511 = vmatpush1.bf16.msra.mxu0 0
        %512 = vmatprep.subr.bf16.mxu0 0
        %513 = vmatpush1.bf16.msra.mxu0 %v496
        %514 = vmatprep.subr.bf16.mxu0 0
        %515 = vmatpush2.bf16.msra.mxu0 0
        %516 = vmatprep.subr.bf16.mxu0 0
        %517 = vmatpush2.bf16.msra.mxu0 0
        %518 = vmatprep.subr.bf16.mxu0 0
        %519 = vmatpush2.bf16.msra.mxu0 0
        %520 = vmatprep.subr.bf16.mxu0 0
        %521 = vmatpush2.bf16.msra.mxu0 0
        %522 = vmatprep.subr.bf16.mxu0 0
        %523 = vmatpush2.bf16.msra.mxu0 0
        %524 = vmatprep.subr.bf16.mxu0 0
        %525 = vmatpush2.bf16.msra.mxu0 0
        %526 = vmatprep.subr.bf16.mxu0 0
        %527 = vmatpush2.bf16.msra.mxu0 0
        %528 = vmatprep.subr.bf16.mxu0 0
        %529 = vmatpush2.bf16.msra.mxu0 0
        %530 = vmatprep.mubr.bf16.mxu0 0
        %531 = vmatmul.mubr.bf16.gmra.mxu0 %v493
        %v532 = vpop.f32.mrf.mxu0
        %v533 = vadd.f32 %v485, %v532
        %v534 = vpop.f32.mrf.mxu0
        %v535 = vpop.f32.mrf.mxu0
        %v536 = vpop.f32.mrf.mxu0
        %537 = vdwg.mxu0
        %538 = vrot.lane.b32.xlu0 %v429, 97
        %v539 = vpop.permute.xlu0 %538
        %540 = vrot.lane.b32.xlu0 %v429, 113
        %v541 = vpop.permute.xlu0 %540
        %vm542 = vcmask 7168
        %v545 = vsel %vm542, %v539, %v541
        %v548 = vshrl.u32 %v340, 16
        %v549 = vpack.i.b16 %v548, %v548
        %v551 = vlaneseq
        %v552 = vshrl.u32 %v551, 7
        %v553 = vsub.s32 0, %v552
        %v554 = vrot.slane %v549, %v553
        %v555 = vmul.bf16 %v545, %v554
        %v556 = vld [vmem:[%s4] sm:$0x3]
        %v558 = vsel %vm347, %v556, 0
        %v561 = vsel %vm351, %v555, 0
        %563 = vmatprep.subr.bf16.mxu0 0
        %564 = vmatpush1.bf16.msra.mxu0 0
        %565 = vmatprep.subr.bf16.mxu0 0
        %566 = vmatpush1.bf16.msra.mxu0 0
        %567 = vmatprep.subr.bf16.mxu0 0
        %568 = vmatpush1.bf16.msra.mxu0 0
        %569 = vmatprep.subr.bf16.mxu0 0
        %570 = vmatpush1.bf16.msra.mxu0 0
        %571 = vmatprep.subr.bf16.mxu0 0
        %572 = vmatpush1.bf16.msra.mxu0 0
        %573 = vmatprep.subr.bf16.mxu0 0
        %574 = vmatpush1.bf16.msra.mxu0 0
        %575 = vmatprep.subr.bf16.mxu0 0
        %576 = vmatpush1.bf16.msra.mxu0 0
        %577 = vmatprep.subr.bf16.mxu0 0
        %578 = vmatpush1.bf16.msra.mxu0 %v561
        %579 = vmatprep.subr.bf16.mxu0 0
        %580 = vmatpush2.bf16.msra.mxu0 0
        %581 = vmatprep.subr.bf16.mxu0 0
        %582 = vmatpush2.bf16.msra.mxu0 0
        %583 = vmatprep.subr.bf16.mxu0 0
        %584 = vmatpush2.bf16.msra.mxu0 0
        %585 = vmatprep.subr.bf16.mxu0 0
        %586 = vmatpush2.bf16.msra.mxu0 0
        %587 = vmatprep.subr.bf16.mxu0 0
        %588 = vmatpush2.bf16.msra.mxu0 0
        %589 = vmatprep.subr.bf16.mxu0 0
        %590 = vmatpush2.bf16.msra.mxu0 0
        %591 = vmatprep.subr.bf16.mxu0 0
        %592 = vmatpush2.bf16.msra.mxu0 0
        %593 = vmatprep.subr.bf16.mxu0 0
        %594 = vmatpush2.bf16.msra.mxu0 0
        %595 = vmatprep.mubr.bf16.mxu0 0
        %596 = vmatmul.mubr.bf16.gmra.mxu0 %v558
        %v597 = vpop.f32.mrf.mxu0
        %v598 = vadd.f32 0.0, %v597
        %v599 = vpop.f32.mrf.mxu0
        %v600 = vpop.f32.mrf.mxu0
        %v601 = vpop.f32.mrf.mxu0
        %602 = vdwg.mxu0
        %v603 = vadd.f32 %v533, %v598
        %vm604 = vcmask 125952
        %v605 = vsel %vm604, %v603, 0.0
        %606 = vadd.xlane.f32.xlu0 %v605
        %v607 = vpop.xlane.xlu0 %606
        %v608 = vmul.f32 %v607, 0.0625
        %v609 = vsub.f32 %v603, %v608
        %v610 = vmul.f32 %v609, %v609
        %v611 = vsel %vm604, %v610, 0.0
        %612 = vadd.xlane.f32.xlu0 %v611
        %v613 = vpop.xlane.xlu0 %612
        %v614 = vmul.f32 %v613, 0.0625
        %v615 = vld [vmem:[%s7] sm:$0xf]
        %v616 = vadd.f32 %v614, 1e-05
        %v617 = vrsqrt.pop %v616
        %v618 = vmul.f32 %v615, %v617
        %620 = vset.pattern.permute.xlu0 0
        %621 = vperm.xlu0 %620, %v618
        %v622 = vpop.permute.xlu0 %621
        %v624 = vmul.f32 %v609, %v622
        %v625 = vld [vmem:[%s8] sm:$0xf]
        %627 = vset.pattern.permute.xlu0 0
        %628 = vperm.xlu0 %627, %v625
        %v629 = vpop.permute.xlu0 %628
        %v631 = vadd.f32 %v624, %v629
        %vm632 = vcmp.gt.f32.partialorder %v631, 0.0
        %v633 = vmin.f32 %v631, 0.0
        %v634 = vmul.f32 %v633, 1.442695
        %v635 = vpow.pop %v634
        %v636 = vsub.f32 %v635, 1.0
        %v637 = vsel %vm632, %v631, %v636
        %v638 = vpack.c.bf16 %v637, %v637
        %vm639 = vcmask 123904
        %640 = vst.msk [vmem:[%s337] sm:$0x3] %vm639, %v638
      $region64: #{multi_kernel_forward.2} parent=59 // pred_fallthru
        _
      %p641 = scmp.eq.s32.totalorder %s21, 1
      // Predicated region
      $region65: #{multi_kernel_forward.2} parent=59 // pred_check
        %p642 = pneg %p641
      $region66: #{multi_kernel_forward.2} parent=59 // pred_check_branch
        %644 = sbr.rel (%p642) target = $region68
      $region67: #{multi_kernel_forward.2} parent=59 // pred_region
        %v645 = vld [vmem:[%s1] sm:$0xc]
        %v647 = vunpack.c.l.b16 %v645
        %v648 = vpack.c.b16 %v647, %v647
        %v649 = vrot.slane %v648, 2
        %vm650 = vcmask 31744
        %v652 = vsel %vm650, %v649, 0
        %vm654 = vcmask 1041408
        %v656 = vsel %vm654, %v339, 0
        %658 = vmatprep.subr.bf16.mxu0 0
        %659 = vmatpush1.bf16.msra.mxu0 0
        %660 = vmatprep.subr.bf16.mxu0 0
        %661 = vmatpush1.bf16.msra.mxu0 0
        %662 = vmatprep.subr.bf16.mxu0 0
        %663 = vmatpush1.bf16.msra.mxu0 0
        %664 = vmatprep.subr.bf16.mxu0 0
        %665 = vmatpush1.bf16.msra.mxu0 0
        %666 = vmatprep.subr.bf16.mxu0 0
        %667 = vmatpush1.bf16.msra.mxu0 0
        %668 = vmatprep.subr.bf16.mxu0 0
        %669 = vmatpush1.bf16.msra.mxu0 0
        %670 = vmatprep.subr.bf16.mxu0 0
        %671 = vmatpush1.bf16.msra.mxu0 0
        %672 = vmatprep.subr.bf16.mxu0 0
        %673 = vmatpush1.bf16.msra.mxu0 %v656
        %674 = vmatprep.subr.bf16.mxu0 0
        %675 = vmatpush2.bf16.msra.mxu0 0
        %676 = vmatprep.subr.bf16.mxu0 0
        %677 = vmatpush2.bf16.msra.mxu0 0
        %678 = vmatprep.subr.bf16.mxu0 0
        %679 = vmatpush2.bf16.msra.mxu0 0
        %680 = vmatprep.subr.bf16.mxu0 0
        %681 = vmatpush2.bf16.msra.mxu0 0
        %682 = vmatprep.subr.bf16.mxu0 0
        %683 = vmatpush2.bf16.msra.mxu0 0
        %684 = vmatprep.subr.bf16.mxu0 0
        %685 = vmatpush2.bf16.msra.mxu0 0
        %686 = vmatprep.subr.bf16.mxu0 0
        %687 = vmatpush2.bf16.msra.mxu0 0
        %688 = vmatprep.subr.bf16.mxu0 0
        %689 = vmatpush2.bf16.msra.mxu0 0
        %690 = vmatprep.mubr.bf16.mxu0 0
        %691 = vmatmul.mubr.bf16.gmra.mxu0 %v652
        %v692 = vpop.f32.mrf.mxu0
        %v693 = vadd.f32 0.0, %v692
        %v694 = vpop.f32.mrf.mxu0
        %v695 = vpop.f32.mrf.mxu0
        %v696 = vpop.f32.mrf.mxu0
        %697 = vdwg.mxu0
        %vm698 = vcmask 257024
        %v699 = vsel %vm698, %v693, 0.0
        %700 = vadd.xlane.f32.xlu0 %v699
        %v701 = vpop.xlane.xlu0 %700
        %v702 = vmul.f32 %v701, 0.03125
        %v703 = vsub.f32 %v693, %v702
        %v704 = vmul.f32 %v703, %v703
        %v705 = vsel %vm698, %v704, 0.0
        %706 = vadd.xlane.f32.xlu0 %v705
        %v707 = vpop.xlane.xlu0 %706
        %v708 = vmul.f32 %v707, 0.03125
        %v709 = vld [vmem:[%s2 + $0x4] sm:$0xf]
        %v710 = vadd.f32 %v708, 1e-05
        %v711 = vrsqrt.pop %v710
        %v712 = vmul.f32 %v709, %v711
        %714 = vset.pattern.permute.xlu0 0
        %715 = vperm.xlu0 %714, %v712
        %v716 = vpop.permute.xlu0 %715
        %v718 = vmul.f32 %v703, %v716
        %v719 = vld [vmem:[%s3 + $0x4] sm:$0xf]
        %721 = vset.pattern.permute.xlu0 0
        %722 = vperm.xlu0 %721, %v719
        %v723 = vpop.permute.xlu0 %722
        %v725 = vadd.f32 %v718, %v723
        %vm726 = vcmp.gt.f32.partialorder %v725, 0.0
        %v727 = vmin.f32 %v725, 0.0
        %v728 = vmul.f32 %v727, 1.442695
        %v729 = vpow.pop %v728
        %v730 = vsub.f32 %v729, 1.0
        %v731 = vsel %vm726, %v725, %v730
        %v732 = vpack.c.bf16 %v731, %v731
        %v733 = vld [vmem:[%s5] sm:$0x3]
        %v736 = vunpack.c.l.s4 1983009808
        %v737 = vunpack.c.0.s8 %v736
        %v738 = vlaneseq
        %v739 = vshrl.u32 %v738, 7
        %v740 = vsub.s32 %v737, %v739
        %v741 = vrot.slane %v733, %v740
        %742 = vrot.lane.b32.xlu0 %v741, 116
        %v743 = vpop.permute.xlu0 %742
        %745 = vrot.lane.b32.xlu0 %v732, 112
        %v746 = vpop.permute.xlu0 %745
        %v748 = vsel %vm650, %v743, 0
        %v751 = vsel %vm654, %v746, 0
        %753 = vmatprep.subr.bf16.mxu0 0
        %754 = vmatpush1.bf16.msra.mxu0 0
        %755 = vmatprep.subr.bf16.mxu0 0
        %756 = vmatpush1.bf16.msra.mxu0 0
        %757 = vmatprep.subr.bf16.mxu0 0
        %758 = vmatpush1.bf16.msra.mxu0 0
        %759 = vmatprep.subr.bf16.mxu0 0
        %760 = vmatpush1.bf16.msra.mxu0 0
        %761 = vmatprep.subr.bf16.mxu0 0
        %762 = vmatpush1.bf16.msra.mxu0 0
        %763 = vmatprep.subr.bf16.mxu0 0
        %764 = vmatpush1.bf16.msra.mxu0 0
        %765 = vmatprep.subr.bf16.mxu0 0
        %766 = vmatpush1.bf16.msra.mxu0 0
        %767 = vmatprep.subr.bf16.mxu0 0
        %768 = vmatpush1.bf16.msra.mxu0 %v751
        %769 = vmatprep.subr.bf16.mxu0 0
        %770 = vmatpush2.bf16.msra.mxu0 0
        %771 = vmatprep.subr.bf16.mxu0 0
        %772 = vmatpush2.bf16.msra.mxu0 0
        %773 = vmatprep.subr.bf16.mxu0 0
        %774 = vmatpush2.bf16.msra.mxu0 0
        %775 = vmatprep.subr.bf16.mxu0 0
        %776 = vmatpush2.bf16.msra.mxu0 0
        %777 = vmatprep.subr.bf16.mxu0 0
        %778 = vmatpush2.bf16.msra.mxu0 0
        %779 = vmatprep.subr.bf16.mxu0 0
        %780 = vmatpush2.bf16.msra.mxu0 0
        %781 = vmatprep.subr.bf16.mxu0 0
        %782 = vmatpush2.bf16.msra.mxu0 0
        %783 = vmatprep.subr.bf16.mxu0 0
        %784 = vmatpush2.bf16.msra.mxu0 0
        %785 = vmatprep.mubr.bf16.mxu0 0
        %786 = vmatmul.mubr.bf16.gmra.mxu0 %v748
        %v787 = vpop.f32.mrf.mxu0
        %v788 = vadd.f32 0.0, %v787
        %v789 = vpop.f32.mrf.mxu0
        %v790 = vpop.f32.mrf.mxu0
        %v791 = vpop.f32.mrf.mxu0
        %792 = vdwg.mxu0
        %793 = vrot.lane.b32.xlu0 %v741, 120
        %v794 = vpop.permute.xlu0 %793
        %v796 = vsel %vm650, %v794, 0
        %v799 = vsel %vm654, %v732, 0
        %801 = vmatprep.subr.bf16.mxu0 0
        %802 = vmatpush1.bf16.msra.mxu0 0
        %803 = vmatprep.subr.bf16.mxu0 0
        %804 = vmatpush1.bf16.msra.mxu0 0
        %805 = vmatprep.subr.bf16.mxu0 0
        %806 = vmatpush1.bf16.msra.mxu0 0
        %807 = vmatprep.subr.bf16.mxu0 0
        %808 = vmatpush1.bf16.msra.mxu0 0
        %809 = vmatprep.subr.bf16.mxu0 0
        %810 = vmatpush1.bf16.msra.mxu0 0
        %811 = vmatprep.subr.bf16.mxu0 0
        %812 = vmatpush1.bf16.msra.mxu0 0
        %813 = vmatprep.subr.bf16.mxu0 0
        %814 = vmatpush1.bf16.msra.mxu0 0
        %815 = vmatprep.subr.bf16.mxu0 0
        %816 = vmatpush1.bf16.msra.mxu0 %v799
        %817 = vmatprep.subr.bf16.mxu0 0
        %818 = vmatpush2.bf16.msra.mxu0 0
        %819 = vmatprep.subr.bf16.mxu0 0
        %820 = vmatpush2.bf16.msra.mxu0 0
        %821 = vmatprep.subr.bf16.mxu0 0
        %822 = vmatpush2.bf16.msra.mxu0 0
        %823 = vmatprep.subr.bf16.mxu0 0
        %824 = vmatpush2.bf16.msra.mxu0 0
        %825 = vmatprep.subr.bf16.mxu0 0
        %826 = vmatpush2.bf16.msra.mxu0 0
        %827 = vmatprep.subr.bf16.mxu0 0
        %828 = vmatpush2.bf16.msra.mxu0 0
        %829 = vmatprep.subr.bf16.mxu0 0
        %830 = vmatpush2.bf16.msra.mxu0 0
        %831 = vmatprep.subr.bf16.mxu0 0
        %832 = vmatpush2.bf16.msra.mxu0 0
        %833 = vmatprep.mubr.bf16.mxu0 0
        %834 = vmatmul.mubr.bf16.gmra.mxu0 %v796
        %v835 = vpop.f32.mrf.mxu0
        %v836 = vadd.f32 %v788, %v835
        %v837 = vpop.f32.mrf.mxu0
        %v838 = vpop.f32.mrf.mxu0
        %v839 = vpop.f32.mrf.mxu0
        %840 = vdwg.mxu0
        %841 = vrot.lane.b32.xlu0 %v732, 113
        %v842 = vpop.permute.xlu0 %841
        %843 = vrot.lane.b32.xlu0 %v732, 1
        %v844 = vpop.permute.xlu0 %843
        %vm845 = vcmask 7168
        %v848 = vsel %vm845, %v842, %v844
        %v851 = vshrl.u32 %v340, 16
        %v852 = vpack.i.b16 %v851, %v851
        %v854 = vlaneseq
        %v855 = vshrl.u32 %v854, 7
        %v856 = vsub.s32 0, %v855
        %v857 = vrot.slane %v852, %v856
        %v858 = vmul.bf16 %v848, %v857
        %v859 = vld [vmem:[%s5] sm:$0x3]
        %v861 = vsel %vm650, %v859, 0
        %v864 = vsel %vm654, %v858, 0
        %866 = vmatprep.subr.bf16.mxu0 0
        %867 = vmatpush1.bf16.msra.mxu0 0
        %868 = vmatprep.subr.bf16.mxu0 0
        %869 = vmatpush1.bf16.msra.mxu0 0
        %870 = vmatprep.subr.bf16.mxu0 0
        %871 = vmatpush1.bf16.msra.mxu0 0
        %872 = vmatprep.subr.bf16.mxu0 0
        %873 = vmatpush1.bf16.msra.mxu0 0
        %874 = vmatprep.subr.bf16.mxu0 0
        %875 = vmatpush1.bf16.msra.mxu0 0
        %876 = vmatprep.subr.bf16.mxu0 0
        %877 = vmatpush1.bf16.msra.mxu0 0
        %878 = vmatprep.subr.bf16.mxu0 0
        %879 = vmatpush1.bf16.msra.mxu0 0
        %880 = vmatprep.subr.bf16.mxu0 0
        %881 = vmatpush1.bf16.msra.mxu0 %v864
        %882 = vmatprep.subr.bf16.mxu0 0
        %883 = vmatpush2.bf16.msra.mxu0 0
        %884 = vmatprep.subr.bf16.mxu0 0
        %885 = vmatpush2.bf16.msra.mxu0 0
        %886 = vmatprep.subr.bf16.mxu0 0
        %887 = vmatpush2.bf16.msra.mxu0 0
        %888 = vmatprep.subr.bf16.mxu0 0
        %889 = vmatpush2.bf16.msra.mxu0 0
        %890 = vmatprep.subr.bf16.mxu0 0
        %891 = vmatpush2.bf16.msra.mxu0 0
        %892 = vmatprep.subr.bf16.mxu0 0
        %893 = vmatpush2.bf16.msra.mxu0 0
        %894 = vmatprep.subr.bf16.mxu0 0
        %895 = vmatpush2.bf16.msra.mxu0 0
        %896 = vmatprep.subr.bf16.mxu0 0
        %897 = vmatpush2.bf16.msra.mxu0 0
        %898 = vmatprep.mubr.bf16.mxu0 0
        %899 = vmatmul.mubr.bf16.gmra.mxu0 %v861
        %v900 = vpop.f32.mrf.mxu0
        %v901 = vadd.f32 0.0, %v900
        %v902 = vpop.f32.mrf.mxu0
        %v903 = vpop.f32.mrf.mxu0
        %v904 = vpop.f32.mrf.mxu0
        %905 = vdwg.mxu0
        %v906 = vadd.f32 %v836, %v901
        %907 = vrot.lane.b32.xlu0 %v732, 97
        %v908 = vpop.permute.xlu0 %907
        %v910 = vsel %vm845, %v908, %v842
        %v912 = vmul.bf16 %v910, %v857
        %v915 = vunpack.c.l.s4 1983009808
        %v916 = vunpack.c.0.s8 %v915
        %v917 = vlaneseq
        %v918 = vshrl.u32 %v917, 7
        %v919 = vsub.s32 %v916, %v918
        %v920 = vrot.slane %v859, %v919
        %921 = vrot.lane.b32.xlu0 %v920, 124
        %v922 = vpop.permute.xlu0 %921
        %v924 = vsel %vm650, %v922, 0
        %v927 = vsel %vm654, %v912, 0
        %929 = vmatprep.subr.bf16.mxu0 0
        %930 = vmatpush1.bf16.msra.mxu0 0
        %931 = vmatprep.subr.bf16.mxu0 0
        %932 = vmatpush1.bf16.msra.mxu0 0
        %933 = vmatprep.subr.bf16.mxu0 0
        %934 = vmatpush1.bf16.msra.mxu0 0
        %935 = vmatprep.subr.bf16.mxu0 0
        %936 = vmatpush1.bf16.msra.mxu0 0
        %937 = vmatprep.subr.bf16.mxu0 0
        %938 = vmatpush1.bf16.msra.mxu0 0
        %939 = vmatprep.subr.bf16.mxu0 0
        %940 = vmatpush1.bf16.msra.mxu0 0
        %941 = vmatprep.subr.bf16.mxu0 0
        %942 = vmatpush1.bf16.msra.mxu0 0
        %943 = vmatprep.subr.bf16.mxu0 0
        %944 = vmatpush1.bf16.msra.mxu0 %v927
        %945 = vmatprep.subr.bf16.mxu0 0
        %946 = vmatpush2.bf16.msra.mxu0 0
        %947 = vmatprep.subr.bf16.mxu0 0
        %948 = vmatpush2.bf16.msra.mxu0 0
        %949 = vmatprep.subr.bf16.mxu0 0
        %950 = vmatpush2.bf16.msra.mxu0 0
        %951 = vmatprep.subr.bf16.mxu0 0
        %952 = vmatpush2.bf16.msra.mxu0 0
        %953 = vmatprep.subr.bf16.mxu0 0
        %954 = vmatpush2.bf16.msra.mxu0 0
        %955 = vmatprep.subr.bf16.mxu0 0
        %956 = vmatpush2.bf16.msra.mxu0 0
        %957 = vmatprep.subr.bf16.mxu0 0
        %958 = vmatpush2.bf16.msra.mxu0 0
        %959 = vmatprep.subr.bf16.mxu0 0
        %960 = vmatpush2.bf16.msra.mxu0 0
        %961 = vmatprep.mubr.bf16.mxu0 0
        %962 = vmatmul.mubr.bf16.gmra.mxu0 %v924
        %v963 = vpop.f32.mrf.mxu0
        %v964 = vadd.f32 0.0, %v963
        %v965 = vpop.f32.mrf.mxu0
        %v966 = vpop.f32.mrf.mxu0
        %v967 = vpop.f32.mrf.mxu0
        %968 = vdwg.mxu0
        %v969 = vadd.f32 %v906, %v964
        %970 = vrot.lane.b32.xlu0 %v732, 127
        %v971 = vpop.permute.xlu0 %970
        %972 = vrot.lane.b32.xlu0 %v732, 15
        %v973 = vpop.permute.xlu0 %972
        %vm974 = vcmask 121856
        %v977 = vsel %vm974, %v971, %v973
        %v980 = vpack.i.b16 %v341, %v341
        %v982 = vlaneseq
        %v983 = vshrl.u32 %v982, 7
        %v984 = vsub.s32 1, %v983
        %v985 = vrot.slane %v980, %v984
        %v986 = vmul.bf16 %v977, %v985
        %v987 = vld [vmem:[%s5] sm:$0x3]
        %v990 = vunpack.c.l.s4 1983009808
        %v991 = vunpack.c.0.s8 %v990
        %v992 = vlaneseq
        %v993 = vshrl.u32 %v992, 7
        %v994 = vsub.s32 %v991, %v993
        %v995 = vrot.slane %v987, %v994
        %996 = vrot.lane.b32.xlu0 %v995, 112
        %v997 = vpop.permute.xlu0 %996
        %v999 = vsel %vm650, %v997, 0
        %v1002 = vsel %vm654, %v986, 0
        %1004 = vmatprep.subr.bf16.mxu0 0
        %1005 = vmatpush1.bf16.msra.mxu0 0
        %1006 = vmatprep.subr.bf16.mxu0 0
        %1007 = vmatpush1.bf16.msra.mxu0 0
        %1008 = vmatprep.subr.bf16.mxu0 0
        %1009 = vmatpush1.bf16.msra.mxu0 0
        %1010 = vmatprep.subr.bf16.mxu0 0
        %1011 = vmatpush1.bf16.msra.mxu0 0
        %1012 = vmatprep.subr.bf16.mxu0 0
        %1013 = vmatpush1.bf16.msra.mxu0 0
        %1014 = vmatprep.subr.bf16.mxu0 0
        %1015 = vmatpush1.bf16.msra.mxu0 0
        %1016 = vmatprep.subr.bf16.mxu0 0
        %1017 = vmatpush1.bf16.msra.mxu0 0
        %1018 = vmatprep.subr.bf16.mxu0 0
        %1019 = vmatpush1.bf16.msra.mxu0 %v1002
        %1020 = vmatprep.subr.bf16.mxu0 0
        %1021 = vmatpush2.bf16.msra.mxu0 0
        %1022 = vmatprep.subr.bf16.mxu0 0
        %1023 = vmatpush2.bf16.msra.mxu0 0
        %1024 = vmatprep.subr.bf16.mxu0 0
        %1025 = vmatpush2.bf16.msra.mxu0 0
        %1026 = vmatprep.subr.bf16.mxu0 0
        %1027 = vmatpush2.bf16.msra.mxu0 0
        %1028 = vmatprep.subr.bf16.mxu0 0
        %1029 = vmatpush2.bf16.msra.mxu0 0
        %1030 = vmatprep.subr.bf16.mxu0 0
        %1031 = vmatpush2.bf16.msra.mxu0 0
        %1032 = vmatprep.subr.bf16.mxu0 0
        %1033 = vmatpush2.bf16.msra.mxu0 0
        %1034 = vmatprep.subr.bf16.mxu0 0
        %1035 = vmatpush2.bf16.msra.mxu0 0
        %1036 = vmatprep.mubr.bf16.mxu0 0
        %1037 = vmatmul.mubr.bf16.gmra.mxu0 %v999
        %v1038 = vpop.f32.mrf.mxu0
        %v1039 = vadd.f32 0.0, %v1038
        %v1040 = vpop.f32.mrf.mxu0
        %v1041 = vpop.f32.mrf.mxu0
        %v1042 = vpop.f32.mrf.mxu0
        %1043 = vdwg.mxu0
        %v1044 = vadd.f32 %v969, %v1039
        %vm1045 = vcmask 125952
        %v1046 = vsel %vm1045, %v1044, 0.0
        %1047 = vadd.xlane.f32.xlu0 %v1046
        %v1048 = vpop.xlane.xlu0 %1047
        %v1049 = vmul.f32 %v1048, 0.0625
        %v1050 = vsub.f32 %v1044, %v1049
        %v1051 = vmul.f32 %v1050, %v1050
        %v1052 = vsel %vm1045, %v1051, 0.0
        %1053 = vadd.xlane.f32.xlu0 %v1052
        %v1054 = vpop.xlane.xlu0 %1053
        %v1055 = vmul.f32 %v1054, 0.0625
        %v1056 = vld [vmem:[%s7 + $0x4] sm:$0xf]
        %v1057 = vadd.f32 %v1055, 1e-05
        %v1058 = vrsqrt.pop %v1057
        %v1059 = vmul.f32 %v1056, %v1058
        %1061 = vset.pattern.permute.xlu0 0
        %1062 = vperm.xlu0 %1061, %v1059
        %v1063 = vpop.permute.xlu0 %1062
        %v1065 = vmul.f32 %v1050, %v1063
        %v1066 = vld [vmem:[%s8 + $0x4] sm:$0xf]
        %1068 = vset.pattern.permute.xlu0 0
        %1069 = vperm.xlu0 %1068, %v1066
        %v1070 = vpop.permute.xlu0 %1069
        %v1072 = vadd.f32 %v1065, %v1070
        %vm1073 = vcmp.gt.f32.partialorder %v1072, 0.0
        %v1074 = vmin.f32 %v1072, 0.0
        %v1075 = vmul.f32 %v1074, 1.442695
        %v1076 = vpow.pop %v1075
        %v1077 = vsub.f32 %v1076, 1.0
        %v1078 = vsel %vm1073, %v1072, %v1077
        %v1079 = vpack.c.bf16 %v1078, %v1078
        %vm1080 = vcmask 123904
        %1081 = vst.msk [vmem:[%s337] sm:$0x3] %vm1080, %v1079
      $region68: #{multi_kernel_forward.2} parent=59 // pred_fallthru
        _
      %p1082 = scmp.eq.s32.totalorder %s21, 2
      // Predicated region
      $region69: #{multi_kernel_forward.2} parent=59 // pred_check
        %p1083 = pneg %p1082
      $region70: #{multi_kernel_forward.2} parent=59 // pred_check_branch
        %1085 = sbr.rel (%p1083) target = $region72
      $region71: #{multi_kernel_forward.2} parent=59 // pred_region
        %v1086 = vld [vmem:[%s1 + $0x4] sm:$0x3]
        %vm1087 = vcmask 31744
        %v1089 = vsel %vm1087, %v1086, 0
        %vm1091 = vcmask 1041408
        %v1093 = vsel %vm1091, %v339, 0
        %1095 = vmatprep.subr.bf16.mxu0 0
        %1096 = vmatpush1.bf16.msra.mxu0 0
        %1097 = vmatprep.subr.bf16.mxu0 0
        %1098 = vmatpush1.bf16.msra.mxu0 0
        %1099 = vmatprep.subr.bf16.mxu0 0
        %1100 = vmatpush1.bf16.msra.mxu0 0
        %1101 = vmatprep.subr.bf16.mxu0 0
        %1102 = vmatpush1.bf16.msra.mxu0 0
        %1103 = vmatprep.subr.bf16.mxu0 0
        %1104 = vmatpush1.bf16.msra.mxu0 0
        %1105 = vmatprep.subr.bf16.mxu0 0
        %1106 = vmatpush1.bf16.msra.mxu0 0
        %1107 = vmatprep.subr.bf16.mxu0 0
        %1108 = vmatpush1.bf16.msra.mxu0 0
        %1109 = vmatprep.subr.bf16.mxu0 0
        %1110 = vmatpush1.bf16.msra.mxu0 %v1093
        %1111 = vmatprep.subr.bf16.mxu0 0
        %1112 = vmatpush2.bf16.msra.mxu0 0
        %1113 = vmatprep.subr.bf16.mxu0 0
        %1114 = vmatpush2.bf16.msra.mxu0 0
        %1115 = vmatprep.subr.bf16.mxu0 0
        %1116 = vmatpush2.bf16.msra.mxu0 0
        %1117 = vmatprep.subr.bf16.mxu0 0
        %1118 = vmatpush2.bf16.msra.mxu0 0
        %1119 = vmatprep.subr.bf16.mxu0 0
        %1120 = vmatpush2.bf16.msra.mxu0 0
        %1121 = vmatprep.subr.bf16.mxu0 0
        %1122 = vmatpush2.bf16.msra.mxu0 0
        %1123 = vmatprep.subr.bf16.mxu0 0
        %1124 = vmatpush2.bf16.msra.mxu0 0
        %1125 = vmatprep.subr.bf16.mxu0 0
        %1126 = vmatpush2.bf16.msra.mxu0 0
        %1127 = vmatprep.mubr.bf16.mxu0 0
        %1128 = vmatmul.mubr.bf16.gmra.mxu0 %v1089
        %v1129 = vpop.f32.mrf.mxu0
        %v1130 = vadd.f32 0.0, %v1129
        %v1131 = vpop.f32.mrf.mxu0
        %v1132 = vpop.f32.mrf.mxu0
        %v1133 = vpop.f32.mrf.mxu0
        %1134 = vdwg.mxu0
        %vm1135 = vcmask 257024
        %v1136 = vsel %vm1135, %v1130, 0.0
        %1137 = vadd.xlane.f32.xlu0 %v1136
        %v1138 = vpop.xlane.xlu0 %1137
        %v1139 = vmul.f32 %v1138, 0.03125
        %v1140 = vsub.f32 %v1130, %v1139
        %v1141 = vmul.f32 %v1140, %v1140
        %v1142 = vsel %vm1135, %v1141, 0.0
        %1143 = vadd.xlane.f32.xlu0 %v1142
        %v1144 = vpop.xlane.xlu0 %1143
        %v1145 = vmul.f32 %v1144, 0.03125
        %v1146 = vld [vmem:[%s2 + $0x8] sm:$0xf]
        %v1147 = vadd.f32 %v1145, 1e-05
        %v1148 = vrsqrt.pop %v1147
        %v1149 = vmul.f32 %v1146, %v1148
        %1151 = vset.pattern.permute.xlu0 0
        %1152 = vperm.xlu0 %1151, %v1149
        %v1153 = vpop.permute.xlu0 %1152
        %v1155 = vmul.f32 %v1140, %v1153
        %v1156 = vld [vmem:[%s3 + $0x8] sm:$0xf]
        %1158 = vset.pattern.permute.xlu0 0
        %1159 = vperm.xlu0 %1158, %v1156
        %v1160 = vpop.permute.xlu0 %1159
        %v1162 = vadd.f32 %v1155, %v1160
        %vm1163 = vcmp.gt.f32.partialorder %v1162, 0.0
        %v1164 = vmin.f32 %v1162, 0.0
        %v1165 = vmul.f32 %v1164, 1.442695
        %v1166 = vpow.pop %v1165
        %v1167 = vsub.f32 %v1166, 1.0
        %v1168 = vsel %vm1163, %v1162, %v1167
        %v1169 = vpack.c.bf16 %v1168, %v1168
        %v1170 = vld [vmem:[%s6] sm:$0x3]
        %v1173 = vunpack.c.l.s4 1983009808
        %v1174 = vunpack.c.0.s8 %v1173
        %v1175 = vlaneseq
        %v1176 = vshrl.u32 %v1175, 7
        %v1177 = vsub.s32 %v1174, %v1176
        %v1178 = vrot.slane %v1170, %v1177
        %1179 = vrot.lane.b32.xlu0 %v1178, 112
        %v1180 = vpop.permute.xlu0 %1179
        %1182 = vrot.lane.b32.xlu0 %v1169, 112
        %v1183 = vpop.permute.xlu0 %1182
        %v1185 = vsel %vm1087, %v1180, 0
        %v1188 = vsel %vm1091, %v1183, 0
        %1190 = vmatprep.subr.bf16.mxu0 0
        %1191 = vmatpush1.bf16.msra.mxu0 0
        %1192 = vmatprep.subr.bf16.mxu0 0
        %1193 = vmatpush1.bf16.msra.mxu0 0
        %1194 = vmatprep.subr.bf16.mxu0 0
        %1195 = vmatpush1.bf16.msra.mxu0 0
        %1196 = vmatprep.subr.bf16.mxu0 0
        %1197 = vmatpush1.bf16.msra.mxu0 0
        %1198 = vmatprep.subr.bf16.mxu0 0
        %1199 = vmatpush1.bf16.msra.mxu0 0
        %1200 = vmatprep.subr.bf16.mxu0 0
        %1201 = vmatpush1.bf16.msra.mxu0 0
        %1202 = vmatprep.subr.bf16.mxu0 0
        %1203 = vmatpush1.bf16.msra.mxu0 0
        %1204 = vmatprep.subr.bf16.mxu0 0
        %1205 = vmatpush1.bf16.msra.mxu0 %v1188
        %1206 = vmatprep.subr.bf16.mxu0 0
        %1207 = vmatpush2.bf16.msra.mxu0 0
        %1208 = vmatprep.subr.bf16.mxu0 0
        %1209 = vmatpush2.bf16.msra.mxu0 0
        %1210 = vmatprep.subr.bf16.mxu0 0
        %1211 = vmatpush2.bf16.msra.mxu0 0
        %1212 = vmatprep.subr.bf16.mxu0 0
        %1213 = vmatpush2.bf16.msra.mxu0 0
        %1214 = vmatprep.subr.bf16.mxu0 0
        %1215 = vmatpush2.bf16.msra.mxu0 0
        %1216 = vmatprep.subr.bf16.mxu0 0
        %1217 = vmatpush2.bf16.msra.mxu0 0
        %1218 = vmatprep.subr.bf16.mxu0 0
        %1219 = vmatpush2.bf16.msra.mxu0 0
        %1220 = vmatprep.subr.bf16.mxu0 0
        %1221 = vmatpush2.bf16.msra.mxu0 0
        %1222 = vmatprep.mubr.bf16.mxu0 0
        %1223 = vmatmul.mubr.bf16.gmra.mxu0 %v1185
        %v1224 = vpop.f32.mrf.mxu0
        %v1225 = vadd.f32 0.0, %v1224
        %v1226 = vpop.f32.mrf.mxu0
        %v1227 = vpop.f32.mrf.mxu0
        %v1228 = vpop.f32.mrf.mxu0
        %1229 = vdwg.mxu0
        %1230 = vrot.lane.b32.xlu0 %v1178, 116
        %v1231 = vpop.permute.xlu0 %1230
        %v1233 = vsel %vm1087, %v1231, 0
        %v1236 = vsel %vm1091, %v1169, 0
        %1238 = vmatprep.subr.bf16.mxu0 0
        %1239 = vmatpush1.bf16.msra.mxu0 0
        %1240 = vmatprep.subr.bf16.mxu0 0
        %1241 = vmatpush1.bf16.msra.mxu0 0
        %1242 = vmatprep.subr.bf16.mxu0 0
        %1243 = vmatpush1.bf16.msra.mxu0 0
        %1244 = vmatprep.subr.bf16.mxu0 0
        %1245 = vmatpush1.bf16.msra.mxu0 0
        %1246 = vmatprep.subr.bf16.mxu0 0
        %1247 = vmatpush1.bf16.msra.mxu0 0
        %1248 = vmatprep.subr.bf16.mxu0 0
        %1249 = vmatpush1.bf16.msra.mxu0 0
        %1250 = vmatprep.subr.bf16.mxu0 0
        %1251 = vmatpush1.bf16.msra.mxu0 0
        %1252 = vmatprep.subr.bf16.mxu0 0
        %1253 = vmatpush1.bf16.msra.mxu0 %v1236
        %1254 = vmatprep.subr.bf16.mxu0 0
        %1255 = vmatpush2.bf16.msra.mxu0 0
        %1256 = vmatprep.subr.bf16.mxu0 0
        %1257 = vmatpush2.bf16.msra.mxu0 0
        %1258 = vmatprep.subr.bf16.mxu0 0
        %1259 = vmatpush2.bf16.msra.mxu0 0
        %1260 = vmatprep.subr.bf16.mxu0 0
        %1261 = vmatpush2.bf16.msra.mxu0 0
        %1262 = vmatprep.subr.bf16.mxu0 0
        %1263 = vmatpush2.bf16.msra.mxu0 0
        %1264 = vmatprep.subr.bf16.mxu0 0
        %1265 = vmatpush2.bf16.msra.mxu0 0
        %1266 = vmatprep.subr.bf16.mxu0 0
        %1267 = vmatpush2.bf16.msra.mxu0 0
        %1268 = vmatprep.subr.bf16.mxu0 0
        %1269 = vmatpush2.bf16.msra.mxu0 0
        %1270 = vmatprep.mubr.bf16.mxu0 0
        %1271 = vmatmul.mubr.bf16.gmra.mxu0 %v1233
        %v1272 = vpop.f32.mrf.mxu0
        %v1273 = vadd.f32 %v1225, %v1272
        %v1274 = vpop.f32.mrf.mxu0
        %v1275 = vpop.f32.mrf.mxu0
        %v1276 = vpop.f32.mrf.mxu0
        %1277 = vdwg.mxu0
        %1278 = vrot.lane.b32.xlu0 %v1169, 98
        %v1279 = vpop.permute.xlu0 %1278
        %1280 = vrot.lane.b32.xlu0 %v1169, 114
        %v1281 = vpop.permute.xlu0 %1280
        %vm1282 = vcmask 15360
        %v1285 = vsel %vm1282, %v1279, %v1281
        %v1288 = vpack.i.b16 %v340, %v340
        %v1290 = vlaneseq
        %v1291 = vshrl.u32 %v1290, 7
        %v1292 = vsub.s32 0, %v1291
        %v1293 = vrot.slane %v1288, %v1292
        %v1294 = vmul.bf16 %v1285, %v1293
        %v1295 = vld [vmem:[%s6] sm:$0x3]
        %v1297 = vsel %vm1087, %v1295, 0
        %v1300 = vsel %vm1091, %v1294, 0
        %1302 = vmatprep.subr.bf16.mxu0 0
        %1303 = vmatpush1.bf16.msra.mxu0 0
        %1304 = vmatprep.subr.bf16.mxu0 0
        %1305 = vmatpush1.bf16.msra.mxu0 0
        %1306 = vmatprep.subr.bf16.mxu0 0
        %1307 = vmatpush1.bf16.msra.mxu0 0
        %1308 = vmatprep.subr.bf16.mxu0 0
        %1309 = vmatpush1.bf16.msra.mxu0 0
        %1310 = vmatprep.subr.bf16.mxu0 0
        %1311 = vmatpush1.bf16.msra.mxu0 0
        %1312 = vmatprep.subr.bf16.mxu0 0
        %1313 = vmatpush1.bf16.msra.mxu0 0
        %1314 = vmatprep.subr.bf16.mxu0 0
        %1315 = vmatpush1.bf16.msra.mxu0 0
        %1316 = vmatprep.subr.bf16.mxu0 0
        %1317 = vmatpush1.bf16.msra.mxu0 %v1300
        %1318 = vmatprep.subr.bf16.mxu0 0
        %1319 = vmatpush2.bf16.msra.mxu0 0
        %1320 = vmatprep.subr.bf16.mxu0 0
        %1321 = vmatpush2.bf16.msra.mxu0 0
        %1322 = vmatprep.subr.bf16.mxu0 0
        %1323 = vmatpush2.bf16.msra.mxu0 0
        %1324 = vmatprep.subr.bf16.mxu0 0
        %1325 = vmatpush2.bf16.msra.mxu0 0
        %1326 = vmatprep.subr.bf16.mxu0 0
        %1327 = vmatpush2.bf16.msra.mxu0 0
        %1328 = vmatprep.subr.bf16.mxu0 0
        %1329 = vmatpush2.bf16.msra.mxu0 0
        %1330 = vmatprep.subr.bf16.mxu0 0
        %1331 = vmatpush2.bf16.msra.mxu0 0
        %1332 = vmatprep.subr.bf16.mxu0 0
        %1333 = vmatpush2.bf16.msra.mxu0 0
        %1334 = vmatprep.mubr.bf16.mxu0 0
        %1335 = vmatmul.mubr.bf16.gmra.mxu0 %v1297
        %v1336 = vpop.f32.mrf.mxu0
        %v1337 = vadd.f32 0.0, %v1336
        %v1338 = vpop.f32.mrf.mxu0
        %v1339 = vpop.f32.mrf.mxu0
        %v1340 = vpop.f32.mrf.mxu0
        %1341 = vdwg.mxu0
        %v1342 = vadd.f32 %v1273, %v1337
        %1343 = vrot.lane.b32.xlu0 %v1169, 113
        %v1344 = vpop.permute.xlu0 %1343
        %1345 = vrot.lane.b32.xlu0 %v1169, 1
        %v1346 = vpop.permute.xlu0 %1345
        %vm1347 = vcmask 7168
        %v1350 = vsel %vm1347, %v1344, %v1346
        %v1352 = vshrl.u32 %v340, 16
        %v1353 = vpack.i.b16 %v1352, %v1352
        %v1355 = vlaneseq
        %v1356 = vshrl.u32 %v1355, 7
        %v1357 = vsub.s32 0, %v1356
        %v1358 = vrot.slane %v1353, %v1357
        %v1359 = vmul.bf16 %v1350, %v1358
        %v1362 = vunpack.c.l.s4 1983009808
        %v1363 = vunpack.c.0.s8 %v1362
        %v1364 = vlaneseq
        %v1365 = vshrl.u32 %v1364, 7
        %v1366 = vsub.s32 %v1363, %v1365
        %v1367 = vrot.slane %v1295, %v1366
        %1368 = vrot.lane.b32.xlu0 %v1367, 124
        %v1369 = vpop.permute.xlu0 %1368
        %v1371 = vsel %vm1087, %v1369, 0
        %v1374 = vsel %vm1091, %v1359, 0
        %1376 = vmatprep.subr.bf16.mxu0 0
        %1377 = vmatpush1.bf16.msra.mxu0 0
        %1378 = vmatprep.subr.bf16.mxu0 0
        %1379 = vmatpush1.bf16.msra.mxu0 0
        %1380 = vmatprep.subr.bf16.mxu0 0
        %1381 = vmatpush1.bf16.msra.mxu0 0
        %1382 = vmatprep.subr.bf16.mxu0 0
        %1383 = vmatpush1.bf16.msra.mxu0 0
        %1384 = vmatprep.subr.bf16.mxu0 0
        %1385 = vmatpush1.bf16.msra.mxu0 0
        %1386 = vmatprep.subr.bf16.mxu0 0
        %1387 = vmatpush1.bf16.msra.mxu0 0
        %1388 = vmatprep.subr.bf16.mxu0 0
        %1389 = vmatpush1.bf16.msra.mxu0 0
        %1390 = vmatprep.subr.bf16.mxu0 0
        %1391 = vmatpush1.bf16.msra.mxu0 %v1374
        %1392 = vmatprep.subr.bf16.mxu0 0
        %1393 = vmatpush2.bf16.msra.mxu0 0
        %1394 = vmatprep.subr.bf16.mxu0 0
        %1395 = vmatpush2.bf16.msra.mxu0 0
        %1396 = vmatprep.subr.bf16.mxu0 0
        %1397 = vmatpush2.bf16.msra.mxu0 0
        %1398 = vmatprep.subr.bf16.mxu0 0
        %1399 = vmatpush2.bf16.msra.mxu0 0
        %1400 = vmatprep.subr.bf16.mxu0 0
        %1401 = vmatpush2.bf16.msra.mxu0 0
        %1402 = vmatprep.subr.bf16.mxu0 0
        %1403 = vmatpush2.bf16.msra.mxu0 0
        %1404 = vmatprep.subr.bf16.mxu0 0
        %1405 = vmatpush2.bf16.msra.mxu0 0
        %1406 = vmatprep.subr.bf16.mxu0 0
        %1407 = vmatpush2.bf16.msra.mxu0 0
        %1408 = vmatprep.mubr.bf16.mxu0 0
        %1409 = vmatmul.mubr.bf16.gmra.mxu0 %v1371
        %v1410 = vpop.f32.mrf.mxu0
        %v1411 = vadd.f32 0.0, %v1410
        %v1412 = vpop.f32.mrf.mxu0
        %v1413 = vpop.f32.mrf.mxu0
        %v1414 = vpop.f32.mrf.mxu0
        %1415 = vdwg.mxu0
        %v1416 = vadd.f32 %v1342, %v1411
        %1417 = vrot.lane.b32.xlu0 %v1169, 97
        %v1418 = vpop.permute.xlu0 %1417
        %v1420 = vsel %vm1347, %v1418, %v1344
        %v1422 = vmul.bf16 %v1420, %v1358
        %v1423 = vld [vmem:[%s6] sm:$0x3]
        %v1426 = vunpack.c.l.s4 1983009808
        %v1427 = vunpack.c.0.s8 %v1426
        %v1428 = vlaneseq
        %v1429 = vshrl.u32 %v1428, 7
        %v1430 = vsub.s32 %v1427, %v1429
        %v1431 = vrot.slane %v1423, %v1430
        %1432 = vrot.lane.b32.xlu0 %v1431, 120
        %v1433 = vpop.permute.xlu0 %1432
        %v1435 = vsel %vm1087, %v1433, 0
        %v1438 = vsel %vm1091, %v1422, 0
        %1440 = vmatprep.subr.bf16.mxu0 0
        %1441 = vmatpush1.bf16.msra.mxu0 0
        %1442 = vmatprep.subr.bf16.mxu0 0
        %1443 = vmatpush1.bf16.msra.mxu0 0
        %1444 = vmatprep.subr.bf16.mxu0 0
        %1445 = vmatpush1.bf16.msra.mxu0 0
        %1446 = vmatprep.subr.bf16.mxu0 0
        %1447 = vmatpush1.bf16.msra.mxu0 0
        %1448 = vmatprep.subr.bf16.mxu0 0
        %1449 = vmatpush1.bf16.msra.mxu0 0
        %1450 = vmatprep.subr.bf16.mxu0 0
        %1451 = vmatpush1.bf16.msra.mxu0 0
        %1452 = vmatprep.subr.bf16.mxu0 0
        %1453 = vmatpush1.bf16.msra.mxu0 0
        %1454 = vmatprep.subr.bf16.mxu0 0
        %1455 = vmatpush1.bf16.msra.mxu0 %v1438
        %1456 = vmatprep.subr.bf16.mxu0 0
        %1457 = vmatpush2.bf16.msra.mxu0 0
        %1458 = vmatprep.subr.bf16.mxu0 0
        %1459 = vmatpush2.bf16.msra.mxu0 0
        %1460 = vmatprep.subr.bf16.mxu0 0
        %1461 = vmatpush2.bf16.msra.mxu0 0
        %1462 = vmatprep.subr.bf16.mxu0 0
        %1463 = vmatpush2.bf16.msra.mxu0 0
        %1464 = vmatprep.subr.bf16.mxu0 0
        %1465 = vmatpush2.bf16.msra.mxu0 0
        %1466 = vmatprep.subr.bf16.mxu0 0
        %1467 = vmatpush2.bf16.msra.mxu0 0
        %1468 = vmatprep.subr.bf16.mxu0 0
        %1469 = vmatpush2.bf16.msra.mxu0 0
        %1470 = vmatprep.subr.bf16.mxu0 0
        %1471 = vmatpush2.bf16.msra.mxu0 0
        %1472 = vmatprep.mubr.bf16.mxu0 0
        %1473 = vmatmul.mubr.bf16.gmra.mxu0 %v1435
        %v1474 = vpop.f32.mrf.mxu0
        %v1475 = vadd.f32 0.0, %v1474
        %v1476 = vpop.f32.mrf.mxu0
        %v1477 = vpop.f32.mrf.mxu0
        %v1478 = vpop.f32.mrf.mxu0
        %1479 = vdwg.mxu0
        %v1480 = vadd.f32 %v1416, %v1475
        %1481 = vrot.lane.b32.xlu0 %v1169, 127
        %v1482 = vpop.permute.xlu0 %1481
        %1483 = vrot.lane.b32.xlu0 %v1169, 15
        %v1484 = vpop.permute.xlu0 %1483
        %vm1485 = vcmask 121856
        %v1488 = vsel %vm1485, %v1482, %v1484
        %v1491 = vpack.i.b16 %v341, %v341
        %v1493 = vlaneseq
        %v1494 = vshrl.u32 %v1493, 7
        %v1495 = vsub.s32 1, %v1494
        %v1496 = vrot.slane %v1491, %v1495
        %v1497 = vmul.bf16 %v1488, %v1496
        %v1498 = vld [vmem:[%s6] sm:$0x3]
        %v1501 = vunpack.c.l.s4 1983009808
        %v1502 = vunpack.c.0.s8 %v1501
        %v1503 = vlaneseq
        %v1504 = vshrl.u32 %v1503, 7
        %v1505 = vsub.s32 %v1502, %v1504
        %v1506 = vrot.slane %v1498, %v1505
        %1507 = vrot.lane.b32.xlu0 %v1506, 108
        %v1508 = vpop.permute.xlu0 %1507
        %v1510 = vsel %vm1087, %v1508, 0
        %v1513 = vsel %vm1091, %v1497, 0
        %1515 = vmatprep.subr.bf16.mxu0 0
        %1516 = vmatpush1.bf16.msra.mxu0 0
        %1517 = vmatprep.subr.bf16.mxu0 0
        %1518 = vmatpush1.bf16.msra.mxu0 0
        %1519 = vmatprep.subr.bf16.mxu0 0
        %1520 = vmatpush1.bf16.msra.mxu0 0
        %1521 = vmatprep.subr.bf16.mxu0 0
        %1522 = vmatpush1.bf16.msra.mxu0 0
        %1523 = vmatprep.subr.bf16.mxu0 0
        %1524 = vmatpush1.bf16.msra.mxu0 0
        %1525 = vmatprep.subr.bf16.mxu0 0
        %1526 = vmatpush1.bf16.msra.mxu0 0
        %1527 = vmatprep.subr.bf16.mxu0 0
        %1528 = vmatpush1.bf16.msra.mxu0 0
        %1529 = vmatprep.subr.bf16.mxu0 0
        %1530 = vmatpush1.bf16.msra.mxu0 %v1513
        %1531 = vmatprep.subr.bf16.mxu0 0
        %1532 = vmatpush2.bf16.msra.mxu0 0
        %1533 = vmatprep.subr.bf16.mxu0 0
        %1534 = vmatpush2.bf16.msra.mxu0 0
        %1535 = vmatprep.subr.bf16.mxu0 0
        %1536 = vmatpush2.bf16.msra.mxu0 0
        %1537 = vmatprep.subr.bf16.mxu0 0
        %1538 = vmatpush2.bf16.msra.mxu0 0
        %1539 = vmatprep.subr.bf16.mxu0 0
        %1540 = vmatpush2.bf16.msra.mxu0 0
        %1541 = vmatprep.subr.bf16.mxu0 0
        %1542 = vmatpush2.bf16.msra.mxu0 0
        %1543 = vmatprep.subr.bf16.mxu0 0
        %1544 = vmatpush2.bf16.msra.mxu0 0
        %1545 = vmatprep.subr.bf16.mxu0 0
        %1546 = vmatpush2.bf16.msra.mxu0 0
        %1547 = vmatprep.mubr.bf16.mxu0 0
        %1548 = vmatmul.mubr.bf16.gmra.mxu0 %v1510
        %v1549 = vpop.f32.mrf.mxu0
        %v1550 = vadd.f32 0.0, %v1549
        %v1551 = vpop.f32.mrf.mxu0
        %v1552 = vpop.f32.mrf.mxu0
        %v1553 = vpop.f32.mrf.mxu0
        %1554 = vdwg.mxu0
        %v1555 = vadd.f32 %v1480, %v1550
        %1556 = vrot.lane.b32.xlu0 %v1169, 111
        %v1557 = vpop.permute.xlu0 %1556
        %v1559 = vsel %vm1485, %v1557, %v1482
        %v1561 = vmul.bf16 %v1559, %v1496
        %v1562 = vld [vmem:[%s6] sm:$0x3]
        %v1565 = vunpack.c.l.s4 1983009808
        %v1566 = vunpack.c.0.s8 %v1565
        %v1567 = vlaneseq
        %v1568 = vshrl.u32 %v1567, 7
        %v1569 = vsub.s32 %v1566, %v1568
        %v1570 = vrot.slane %v1562, %v1569
        %1571 = vrot.lane.b32.xlu0 %v1570, 104
        %v1572 = vpop.permute.xlu0 %1571
        %v1574 = vsel %vm1087, %v1572, 0
        %v1577 = vsel %vm1091, %v1561, 0
        %1579 = vmatprep.subr.bf16.mxu0 0
        %1580 = vmatpush1.bf16.msra.mxu0 0
        %1581 = vmatprep.subr.bf16.mxu0 0
        %1582 = vmatpush1.bf16.msra.mxu0 0
        %1583 = vmatprep.subr.bf16.mxu0 0
        %1584 = vmatpush1.bf16.msra.mxu0 0
        %1585 = vmatprep.subr.bf16.mxu0 0
        %1586 = vmatpush1.bf16.msra.mxu0 0
        %1587 = vmatprep.subr.bf16.mxu0 0
        %1588 = vmatpush1.bf16.msra.mxu0 0
        %1589 = vmatprep.subr.bf16.mxu0 0
        %1590 = vmatpush1.bf16.msra.mxu0 0
        %1591 = vmatprep.subr.bf16.mxu0 0
        %1592 = vmatpush1.bf16.msra.mxu0 0
        %1593 = vmatprep.subr.bf16.mxu0 0
        %1594 = vmatpush1.bf16.msra.mxu0 %v1577
        %1595 = vmatprep.subr.bf16.mxu0 0
        %1596 = vmatpush2.bf16.msra.mxu0 0
        %1597 = vmatprep.subr.bf16.mxu0 0
        %1598 = vmatpush2.bf16.msra.mxu0 0
        %1599 = vmatprep.subr.bf16.mxu0 0
        %1600 = vmatpush2.bf16.msra.mxu0 0
        %1601 = vmatprep.subr.bf16.mxu0 0
        %1602 = vmatpush2.bf16.msra.mxu0 0
        %1603 = vmatprep.subr.bf16.mxu0 0
        %1604 = vmatpush2.bf16.msra.mxu0 0
        %1605 = vmatprep.subr.bf16.mxu0 0
        %1606 = vmatpush2.bf16.msra.mxu0 0
        %1607 = vmatprep.subr.bf16.mxu0 0
        %1608 = vmatpush2.bf16.msra.mxu0 0
        %1609 = vmatprep.subr.bf16.mxu0 0
        %1610 = vmatpush2.bf16.msra.mxu0 0
        %1611 = vmatprep.mubr.bf16.mxu0 0
        %1612 = vmatmul.mubr.bf16.gmra.mxu0 %v1574
        %v1613 = vpop.f32.mrf.mxu0
        %v1614 = vadd.f32 0.0, %v1613
        %v1615 = vpop.f32.mrf.mxu0
        %v1616 = vpop.f32.mrf.mxu0
        %v1617 = vpop.f32.mrf.mxu0
        %1618 = vdwg.mxu0
        %v1619 = vadd.f32 %v1555, %v1614
        %vm1620 = vcmask 125952
        %v1621 = vsel %vm1620, %v1619, 0.0
        %1622 = vadd.xlane.f32.xlu0 %v1621
        %v1623 = vpop.xlane.xlu0 %1622
        %v1624 = vmul.f32 %v1623, 0.0625
        %v1625 = vsub.f32 %v1619, %v1624
        %v1626 = vmul.f32 %v1625, %v1625
        %v1627 = vsel %vm1620, %v1626, 0.0
        %1628 = vadd.xlane.f32.xlu0 %v1627
        %v1629 = vpop.xlane.xlu0 %1628
        %v1630 = vmul.f32 %v1629, 0.0625
        %v1631 = vld [vmem:[%s7 + $0x8] sm:$0xf]
        %v1632 = vadd.f32 %v1630, 1e-05
        %v1633 = vrsqrt.pop %v1632
        %v1634 = vmul.f32 %v1631, %v1633
        %1636 = vset.pattern.permute.xlu0 0
        %1637 = vperm.xlu0 %1636, %v1634
        %v1638 = vpop.permute.xlu0 %1637
        %v1640 = vmul.f32 %v1625, %v1638
        %v1641 = vld [vmem:[%s8 + $0x8] sm:$0xf]
        %1643 = vset.pattern.permute.xlu0 0
        %1644 = vperm.xlu0 %1643, %v1641
        %v1645 = vpop.permute.xlu0 %1644
        %v1647 = vadd.f32 %v1640, %v1645
        %vm1648 = vcmp.gt.f32.partialorder %v1647, 0.0
        %v1649 = vmin.f32 %v1647, 0.0
        %v1650 = vmul.f32 %v1649, 1.442695
        %v1651 = vpow.pop %v1650
        %v1652 = vsub.f32 %v1651, 1.0
        %v1653 = vsel %vm1648, %v1647, %v1652
        %v1654 = vpack.c.bf16 %v1653, %v1653
        %vm1655 = vcmask 123904
        %1656 = vst.msk [vmem:[%s337] sm:$0x3] %vm1655, %v1654
      $region72: #{multi_kernel_forward.2} parent=59 // pred_fallthru
        _
      %p1657 = scmp.eq.s32.totalorder %s21, 3
      // Predicated region
      $region73: #{multi_kernel_forward.2} parent=59 // pred_check
        %p1658 = pneg %p1657
      $region74: #{multi_kernel_forward.2} parent=59 // pred_check_branch
        %1660 = sbr.rel (%p1658) target = $region76
      $region75: #{multi_kernel_forward.2} parent=59 // pred_region
        %1662 = vrot.lane.b32.xlu0 %v339, 112
        %v1663 = vpop.permute.xlu0 %1662
        %v1665 = vmax.bf16 %v339, %v1663
        %v1666 = vunpack.c.l.bf16 %v1665
        %vm1667 = vcmask 125952
        %v1668 = vsel %vm1667, %v1666, 0.0
        %1669 = vadd.xlane.f32.xlu0 %v1668
        %v1670 = vpop.xlane.xlu0 %1669
        %v1671 = vmul.f32 %v1670, 0.0625
        %v1672 = vsub.f32 %v1666, %v1671
        %v1673 = vmul.f32 %v1672, %v1672
        %v1674 = vsel %vm1667, %v1673, 0.0
        %1675 = vadd.xlane.f32.xlu0 %v1674
        %v1676 = vpop.xlane.xlu0 %1675
        %v1677 = vmul.f32 %v1676, 0.0625
        %v1678 = vld [vmem:[%s7 + $0xc] sm:$0xf]
        %v1679 = vadd.f32 %v1677, 1e-05
        %v1680 = vrsqrt.pop %v1679
        %v1681 = vmul.f32 %v1678, %v1680
        %1683 = vset.pattern.permute.xlu0 0
        %1684 = vperm.xlu0 %1683, %v1681
        %v1685 = vpop.permute.xlu0 %1684
        %v1687 = vmul.f32 %v1672, %v1685
        %v1688 = vld [vmem:[%s8 + $0xc] sm:$0xf]
        %1690 = vset.pattern.permute.xlu0 0
        %1691 = vperm.xlu0 %1690, %v1688
        %v1692 = vpop.permute.xlu0 %1691
        %v1694 = vadd.f32 %v1687, %v1692
        %vm1695 = vcmp.gt.f32.partialorder %v1694, 0.0
        %v1696 = vmin.f32 %v1694, 0.0
        %v1697 = vmul.f32 %v1696, 1.442695
        %v1698 = vpow.pop %v1697
        %v1699 = vsub.f32 %v1698, 1.0
        %v1700 = vsel %vm1695, %v1694, %v1699
        %v1701 = vpack.c.bf16 %v1700, %v1700
        %vm1702 = vcmask 123904
        %1703 = vst.msk [vmem:[%s337] sm:$0x3] %vm1702, %v1701
      $region76: #{multi_kernel_forward.2} parent=59 // pred_fallthru
        _
      %p1704 = scmp.lt.s32.totalorder %s21, 3
      %s1705 = scalar_select %p1704, %s21, 3
      %s1706 = smul.addr %s1705, 2
      %s1707 = scalar_lea.vmem %s10, %s1706
      // Predicated region
      $region77: #{multi_kernel_forward.2} parent=59 // pred_check
        %p1708 = pneg %p249
      $region78: #{multi_kernel_forward.2} parent=59 // pred_check_branch
        %1710 = sbr.rel (%p1708) target = $region80
      $region79: #{multi_kernel_forward.2} parent=59 // pred_region
        _
      $region80: #{multi_kernel_forward.2} parent=59 // pred_fallthru
        _
    $region60: #{multi_kernel_forward.2} parent=5 // pred_fallthru
      _
    %p1711 = scmp.le.s32.totalorder 2, %s16
    // Predicated region
    $region81: #{multi_kernel_forward.2} parent=5 // pred_check
      %p1712 = pneg %p1711
    $region82: #{multi_kernel_forward.2} parent=5 // pred_check_branch
      %1714 = sbr.rel (%p1712) target = $region84
    $region83: #{multi_kernel_forward.2} parent=5 // pred_region
      %s1715 = ssub.s32 %s16, 2
      // Predicated region
      $region85: #{multi_kernel_forward.2} parent=83 // pred_check
        %p1716 = pneg %p255
      $region86: #{multi_kernel_forward.2} parent=83 // pred_check_branch
        %1718 = sbr.rel (%p1716) target = $region88
      $region87: #{multi_kernel_forward.2} parent=83 // pred_region
        %p1719 = scmp.lt.s32.totalorder %s22, 3
        %s1720 = scalar_select %p1719, %s22, 3
        %s1721 = smul.addr %s1720, 2
        %s1722 = scalar_lea.vmem %s10, %s1721
      $region88: #{multi_kernel_forward.2} parent=83 // pred_fallthru
        _
    $region84: #{multi_kernel_forward.2} parent=5 // pred_fallthru
      _
  $region6: #{multi_kernel_forward.2} parent=0 // loop_footer
    %s20 = sadd.s32 1, %s16
  $region7: #{multi_kernel_forward.2} parent=0 // loop_footer_branch
    %15 = sbr.rel target = $region3
  $region8: #{multi_kernel_forward.2} parent=0 // loop_exit
    _

// kernel: multi_kernel_forward.3
$region0: #{multi_kernel_forward.3}
  #allocation0 [shape = 'u32[]', space=smem, size = 0x4, offset = 0x4, fixed_abs, tag = 'smem constant byte address 0x4 - core index']
  #allocation1 [shape = 'u32[144,128]{1,0:T(1,128)}', space=vmem, size = 0x12000, scoped, tag = 'internal scratch']
  %s0 = inlined_call_operand.vmem [shape: bf16[16,16], index: 0, kind: input, shape index: {}]
  %s1 = inlined_call_operand.vmem [shape: bf16[48,16], index: 1, kind: input, shape index: {}]
  %s2 = inlined_call_operand.vmem [shape: f32[48,1], index: 2, kind: input, shape index: {}]
  %s3 = inlined_call_operand.vmem [shape: f32[48,1], index: 3, kind: input, shape index: {}]
  %s4 = inlined_call_operand.vmem [shape: bf16[16,48], index: 4, kind: input, shape index: {}]
  %s5 = inlined_call_operand.vmem [shape: bf16[16,80], index: 5, kind: input, shape index: {}]
  %s6 = inlined_call_operand.vmem [shape: bf16[16,112], index: 6, kind: input, shape index: {}]
  %s7 = inlined_call_operand.vmem [shape: f32[64,1], index: 7, kind: input, shape index: {}]
  %s8 = inlined_call_operand.vmem [shape: f32[64,1], index: 8, kind: input, shape index: {}]
  %s9 = inlined_call_operand.vmem [shape: bf16[3,8], index: 9, kind: input, shape index: {}]
  %s10 = inlined_call_operand.vmem [shape: f32[4,16,8], index: 10, kind: output, shape index: {}]
  %s11 = sld [smem:[#allocation0]]
  $region89: #{multi_kernel_forward.3} parent=0
    _
  %s13 = ssub.s32 1, %s11
  %s14 = scalar_select 0, %s13, %s11
  loop: start=0, step=1, limit=6
  $region2: #{multi_kernel_forward.3} parent=0 // loop_pre_header
    _
  $region3: #{multi_kernel_forward.3} parent=0 // loop_header
    %s16 = sphi 0, %s20
    %p17 = scmp.ge.s32.totalorder %s16, 6
    %s24 = sphi 0, %s24
    %s26 = sphi 0, %s24
    %s27 = sphi 0, %s26
    %s41 = sphi 0, %s27
    %s45 = sphi 0, %s45
    %s47 = sphi 0, %s45
    %s48 = sphi 0, %s47
    %s62 = sphi 0, %s48
    %s66 = sphi 0, %s66
    %s68 = sphi 0, %s66
    %s69 = sphi 0, %s68
    %s83 = sphi 0, %s69
    %s87 = sphi 0, %s87
    %s89 = sphi 0, %s87
    %s90 = sphi 0, %s89
    %s104 = sphi 0, %s90
    %s108 = sphi 0, %s108
    %s110 = sphi 0, %s108
    %s111 = sphi 0, %s110
    %s125 = sphi 0, %s111
    %s129 = sphi 0, %s129
    %s131 = sphi 0, %s129
    %s132 = sphi 0, %s131
    %s146 = sphi 0, %s132
    %s150 = sphi 0, %s150
    %s152 = sphi 0, %s150
    %s153 = sphi 0, %s152
    %s167 = sphi 0, %s153
    %s171 = sphi 0, %s171
    %s173 = sphi 0, %s171
    %s174 = sphi 0, %s173
    %s188 = sphi 0, %s174
    %s192 = sphi 0, %s192
    %s194 = sphi 0, %s192
    %s195 = sphi 0, %s194
    %s209 = sphi 0, %s195
    %s213 = sphi 0, %s213
    %s215 = sphi 0, %s213
    %s216 = sphi 0, %s215
    %s230 = sphi 0, %s216
    %s236 = sphi 0, %s238
    %s239 = sphi 0, %s236
    %s240 = sphi 0, %s239
    %s256 = sphi 0, %s240
  $region4: #{multi_kernel_forward.3} parent=0 // loop_header_branch
    %19 = sbr.rel (%p17) target = $region8
  $region5: #{multi_kernel_forward.3} parent=0 // loop_body
    %s21 = ssub.s32 %s16, 1
    %s22 = ssub.s32 %s16, 2
    %s23 = sadd.s32 %s16, 1
    %s25 = sadd.s32 %s24, 1
    %p28 = scmp.eq.s32.totalorder %s16, 3
    %p29 = scmp.ne.s32.totalorder %s24, %s26
    %p30 = scmp.eq.s32.totalorder %s16, 0
    %p31 = por %p29, %p30
    %p32 = scmp.ne.s32.totalorder %s24, %s26
    %p33 = scmp.eq.s32.totalorder %s21, 3
    %p34 = por %p32, %p33
    %p35 = scmp.ne.s32.totalorder %s26, %s27
    %p36 = scmp.eq.s32.totalorder %s21, 0
    %p37 = por %p35, %p36
    %p38 = scmp.ne.s32.totalorder %s26, %s27
    %p39 = scmp.eq.s32.totalorder %s22, 3
    %p40 = por %p38, %p39
    %p42 = scmp.ne.s32.totalorder %s27, %s41
    %p43 = scmp.eq.s32.totalorder %s22, 0
    %p44 = por %p42, %p43
    %s46 = sadd.s32 %s45, 1
    %p49 = scmp.eq.s32.totalorder %s16, 3
    %p50 = scmp.ne.s32.totalorder %s45, %s47
    %p51 = scmp.eq.s32.totalorder %s16, 0
    %p52 = por %p50, %p51
    %p53 = scmp.ne.s32.totalorder %s45, %s47
    %p54 = scmp.eq.s32.totalorder %s21, 3
    %p55 = por %p53, %p54
    %p56 = scmp.ne.s32.totalorder %s47, %s48
    %p57 = scmp.eq.s32.totalorder %s21, 0
    %p58 = por %p56, %p57
    %p59 = scmp.ne.s32.totalorder %s47, %s48
    %p60 = scmp.eq.s32.totalorder %s22, 3
    %p61 = por %p59, %p60
    %p63 = scmp.ne.s32.totalorder %s48, %s62
    %p64 = scmp.eq.s32.totalorder %s22, 0
    %p65 = por %p63, %p64
    %s67 = sadd.s32 %s66, 1
    %p70 = scmp.eq.s32.totalorder %s16, 3
    %p71 = scmp.ne.s32.totalorder %s66, %s68
    %p72 = scmp.eq.s32.totalorder %s16, 0
    %p73 = por %p71, %p72
    %p74 = scmp.ne.s32.totalorder %s66, %s68
    %p75 = scmp.eq.s32.totalorder %s21, 3
    %p76 = por %p74, %p75
    %p77 = scmp.ne.s32.totalorder %s68, %s69
    %p78 = scmp.eq.s32.totalorder %s21, 0
    %p79 = por %p77, %p78
    %p80 = scmp.ne.s32.totalorder %s68, %s69
    %p81 = scmp.eq.s32.totalorder %s22, 3
    %p82 = por %p80, %p81
    %p84 = scmp.ne.s32.totalorder %s69, %s83
    %p85 = scmp.eq.s32.totalorder %s22, 0
    %p86 = por %p84, %p85
    %s88 = sadd.s32 %s87, 1
    %p91 = scmp.eq.s32.totalorder %s16, 3
    %p92 = scmp.ne.s32.totalorder %s87, %s89
    %p93 = scmp.eq.s32.totalorder %s16, 0
    %p94 = por %p92, %p93
    %p95 = scmp.ne.s32.totalorder %s87, %s89
    %p96 = scmp.eq.s32.totalorder %s21, 3
    %p97 = por %p95, %p96
    %p98 = scmp.ne.s32.totalorder %s89, %s90
    %p99 = scmp.eq.s32.totalorder %s21, 0
    %p100 = por %p98, %p99
    %p101 = scmp.ne.s32.totalorder %s89, %s90
    %p102 = scmp.eq.s32.totalorder %s22, 3
    %p103 = por %p101, %p102
    %p105 = scmp.ne.s32.totalorder %s90, %s104
    %p106 = scmp.eq.s32.totalorder %s22, 0
    %p107 = por %p105, %p106
    %s109 = sadd.s32 %s108, 1
    %p112 = scmp.eq.s32.totalorder %s16, 3
    %p113 = scmp.ne.s32.totalorder %s108, %s110
    %p114 = scmp.eq.s32.totalorder %s16, 0
    %p115 = por %p113, %p114
    %p116 = scmp.ne.s32.totalorder %s108, %s110
    %p117 = scmp.eq.s32.totalorder %s21, 3
    %p118 = por %p116, %p117
    %p119 = scmp.ne.s32.totalorder %s110, %s111
    %p120 = scmp.eq.s32.totalorder %s21, 0
    %p121 = por %p119, %p120
    %p122 = scmp.ne.s32.totalorder %s110, %s111
    %p123 = scmp.eq.s32.totalorder %s22, 3
    %p124 = por %p122, %p123
    %p126 = scmp.ne.s32.totalorder %s111, %s125
    %p127 = scmp.eq.s32.totalorder %s22, 0
    %p128 = por %p126, %p127
    %s130 = sadd.s32 %s129, 1
    %p133 = scmp.eq.s32.totalorder %s16, 3
    %p134 = scmp.ne.s32.totalorder %s129, %s131
    %p135 = scmp.eq.s32.totalorder %s16, 0
    %p136 = por %p134, %p135
    %p137 = scmp.ne.s32.totalorder %s129, %s131
    %p138 = scmp.eq.s32.totalorder %s21, 3
    %p139 = por %p137, %p138
    %p140 = scmp.ne.s32.totalorder %s131, %s132
    %p141 = scmp.eq.s32.totalorder %s21, 0
    %p142 = por %p140, %p141
    %p143 = scmp.ne.s32.totalorder %s131, %s132
    %p144 = scmp.eq.s32.totalorder %s22, 3
    %p145 = por %p143, %p144
    %p147 = scmp.ne.s32.totalorder %s132, %s146
    %p148 = scmp.eq.s32.totalorder %s22, 0
    %p149 = por %p147, %p148
    %s151 = sadd.s32 %s150, 1
    %p154 = scmp.eq.s32.totalorder %s16, 3
    %p155 = scmp.ne.s32.totalorder %s150, %s152
    %p156 = scmp.eq.s32.totalorder %s16, 0
    %p157 = por %p155, %p156
    %p158 = scmp.ne.s32.totalorder %s150, %s152
    %p159 = scmp.eq.s32.totalorder %s21, 3
    %p160 = por %p158, %p159
    %p161 = scmp.ne.s32.totalorder %s152, %s153
    %p162 = scmp.eq.s32.totalorder %s21, 0
    %p163 = por %p161, %p162
    %p164 = scmp.ne.s32.totalorder %s152, %s153
    %p165 = scmp.eq.s32.totalorder %s22, 3
    %p166 = por %p164, %p165
    %p168 = scmp.ne.s32.totalorder %s153, %s167
    %p169 = scmp.eq.s32.totalorder %s22, 0
    %p170 = por %p168, %p169
    %s172 = sadd.s32 %s171, 1
    %p175 = scmp.eq.s32.totalorder %s16, 3
    %p176 = scmp.ne.s32.totalorder %s171, %s173
    %p177 = scmp.eq.s32.totalorder %s16, 0
    %p178 = por %p176, %p177
    %p179 = scmp.ne.s32.totalorder %s171, %s173
    %p180 = scmp.eq.s32.totalorder %s21, 3
    %p181 = por %p179, %p180
    %p182 = scmp.ne.s32.totalorder %s173, %s174
    %p183 = scmp.eq.s32.totalorder %s21, 0
    %p184 = por %p182, %p183
    %p185 = scmp.ne.s32.totalorder %s173, %s174
    %p186 = scmp.eq.s32.totalorder %s22, 3
    %p187 = por %p185, %p186
    %p189 = scmp.ne.s32.totalorder %s174, %s188
    %p190 = scmp.eq.s32.totalorder %s22, 0
    %p191 = por %p189, %p190
    %s193 = sadd.s32 %s192, 1
    %p196 = scmp.eq.s32.totalorder %s16, 3
    %p197 = scmp.ne.s32.totalorder %s192, %s194
    %p198 = scmp.eq.s32.totalorder %s16, 0
    %p199 = por %p197, %p198
    %p200 = scmp.ne.s32.totalorder %s192, %s194
    %p201 = scmp.eq.s32.totalorder %s21, 3
    %p202 = por %p200, %p201
    %p203 = scmp.ne.s32.totalorder %s194, %s195
    %p204 = scmp.eq.s32.totalorder %s21, 0
    %p205 = por %p203, %p204
    %p206 = scmp.ne.s32.totalorder %s194, %s195
    %p207 = scmp.eq.s32.totalorder %s22, 3
    %p208 = por %p206, %p207
    %p210 = scmp.ne.s32.totalorder %s195, %s209
    %p211 = scmp.eq.s32.totalorder %s22, 0
    %p212 = por %p210, %p211
    %s214 = sadd.s32 %s213, 1
    %p217 = scmp.eq.s32.totalorder %s16, 3
    %p218 = scmp.ne.s32.totalorder %s213, %s215
    %p219 = scmp.eq.s32.totalorder %s16, 0
    %p220 = por %p218, %p219
    %p221 = scmp.ne.s32.totalorder %s213, %s215
    %p222 = scmp.eq.s32.totalorder %s21, 3
    %p223 = por %p221, %p222
    %p224 = scmp.ne.s32.totalorder %s215, %s216
    %p225 = scmp.eq.s32.totalorder %s21, 0
    %p226 = por %p224, %p225
    %p227 = scmp.ne.s32.totalorder %s215, %s216
    %p228 = scmp.eq.s32.totalorder %s22, 3
    %p229 = por %p227, %p228
    %p231 = scmp.ne.s32.totalorder %s216, %s230
    %p232 = scmp.eq.s32.totalorder %s22, 0
    %p233 = por %p231, %p232
    %s234 = ssub.s32 %s16, %s23
    %p235 = scmp.eq.s32.totalorder %s234, 0
    %s237 = sadd.s32 %s236, 1
    %s238 = scalar_select %p235, %s236, %s237
    %p241 = pneg %p235
    %p242 = scmp.eq.s32.totalorder %s16, 3
    %p243 = por %p241, %p242
    %p244 = scmp.ne.s32.totalorder %s236, %s239
    %p245 = scmp.eq.s32.totalorder %s16, 0
    %p246 = por %p244, %p245
    %p247 = scmp.ne.s32.totalorder %s236, %s239
    %p248 = scmp.eq.s32.totalorder %s21, 3
    %p249 = por %p247, %p248
    %p250 = scmp.ne.s32.totalorder %s239, %s240
    %p251 = scmp.eq.s32.totalorder %s21, 0
    %p252 = por %p250, %p251
    %p253 = scmp.ne.s32.totalorder %s239, %s240
    %p254 = scmp.eq.s32.totalorder %s22, 3
    %p255 = por %p253, %p254
    %p257 = scmp.ne.s32.totalorder %s240, %s256
    %p258 = scmp.eq.s32.totalorder %s22, 0
    %p259 = por %p257, %p258
    %p260 = scmp.le.s32.totalorder 1, %s16
    %p261 = scmp.lt.s32.totalorder %s16, 5
    %p262 = pnand %p260, %p261
    %p263 = pneg %p262
    // Predicated region
    $region9: #{multi_kernel_forward.3} parent=5 // pred_check
      _
    $region10: #{multi_kernel_forward.3} parent=5 // pred_check_branch
      %265 = sbr.rel (%p262) target = $region12
    $region11: #{multi_kernel_forward.3} parent=5 // pred_region
      %s266 = ssub.s32 %s16, 1
      // Predicated region
      $region13: #{multi_kernel_forward.3} parent=11 // pred_check
        %p267 = pneg %p37
      $region14: #{multi_kernel_forward.3} parent=11 // pred_check_branch
        %269 = sbr.rel (%p267) target = $region16
      $region15: #{multi_kernel_forward.3} parent=11 // pred_region
        _
      $region16: #{multi_kernel_forward.3} parent=11 // pred_fallthru
        _
      // Predicated region
      $region17: #{multi_kernel_forward.3} parent=11 // pred_check
        %p270 = pneg %p58
      $region18: #{multi_kernel_forward.3} parent=11 // pred_check_branch
        %272 = sbr.rel (%p270) target = $region20
      $region19: #{multi_kernel_forward.3} parent=11 // pred_region
        _
      $region20: #{multi_kernel_forward.3} parent=11 // pred_fallthru
        _
      // Predicated region
      $region21: #{multi_kernel_forward.3} parent=11 // pred_check
        %p273 = pneg %p79
      $region22: #{multi_kernel_forward.3} parent=11 // pred_check_branch
        %275 = sbr.rel (%p273) target = $region24
      $region23: #{multi_kernel_forward.3} parent=11 // pred_region
        _
      $region24: #{multi_kernel_forward.3} parent=11 // pred_fallthru
        _
      // Predicated region
      $region25: #{multi_kernel_forward.3} parent=11 // pred_check
        %p276 = pneg %p100
      $region26: #{multi_kernel_forward.3} parent=11 // pred_check_branch
        %278 = sbr.rel (%p276) target = $region28
      $region27: #{multi_kernel_forward.3} parent=11 // pred_region
        _
      $region28: #{multi_kernel_forward.3} parent=11 // pred_fallthru
        _
      // Predicated region
      $region29: #{multi_kernel_forward.3} parent=11 // pred_check
        %p279 = pneg %p121
      $region30: #{multi_kernel_forward.3} parent=11 // pred_check_branch
        %281 = sbr.rel (%p279) target = $region32
      $region31: #{multi_kernel_forward.3} parent=11 // pred_region
        _
      $region32: #{multi_kernel_forward.3} parent=11 // pred_fallthru
        _
      // Predicated region
      $region33: #{multi_kernel_forward.3} parent=11 // pred_check
        %p282 = pneg %p142
      $region34: #{multi_kernel_forward.3} parent=11 // pred_check_branch
        %284 = sbr.rel (%p282) target = $region36
      $region35: #{multi_kernel_forward.3} parent=11 // pred_region
        _
      $region36: #{multi_kernel_forward.3} parent=11 // pred_fallthru
        _
      // Predicated region
      $region37: #{multi_kernel_forward.3} parent=11 // pred_check
        %p285 = pneg %p163
      $region38: #{multi_kernel_forward.3} parent=11 // pred_check_branch
        %287 = sbr.rel (%p285) target = $region40
      $region39: #{multi_kernel_forward.3} parent=11 // pred_region
        _
      $region40: #{multi_kernel_forward.3} parent=11 // pred_fallthru
        _
      // Predicated region
      $region41: #{multi_kernel_forward.3} parent=11 // pred_check
        %p288 = pneg %p184
      $region42: #{multi_kernel_forward.3} parent=11 // pred_check_branch
        %290 = sbr.rel (%p288) target = $region44
      $region43: #{multi_kernel_forward.3} parent=11 // pred_region
        _
      $region44: #{multi_kernel_forward.3} parent=11 // pred_fallthru
        _
      // Predicated region
      $region45: #{multi_kernel_forward.3} parent=11 // pred_check
        %p291 = pneg %p205
      $region46: #{multi_kernel_forward.3} parent=11 // pred_check_branch
        %293 = sbr.rel (%p291) target = $region48
      $region47: #{multi_kernel_forward.3} parent=11 // pred_region
        _
      $region48: #{multi_kernel_forward.3} parent=11 // pred_fallthru
        _
      // Predicated region
      $region49: #{multi_kernel_forward.3} parent=11 // pred_check
        %p294 = pneg %p226
      $region50: #{multi_kernel_forward.3} parent=11 // pred_check_branch
        %296 = sbr.rel (%p294) target = $region52
      $region51: #{multi_kernel_forward.3} parent=11 // pred_region
        _
      $region52: #{multi_kernel_forward.3} parent=11 // pred_fallthru
        _
    $region12: #{multi_kernel_forward.3} parent=5 // pred_fallthru
      _
    %p297 = scmp.lt.s32.totalorder %s16, 4
    // Predicated region
    $region53: #{multi_kernel_forward.3} parent=5 // pred_check
      %p298 = pneg %p297
    $region54: #{multi_kernel_forward.3} parent=5 // pred_check_branch
      %300 = sbr.rel (%p298) target = $region56
    $region55: #{multi_kernel_forward.3} parent=5 // pred_region
      _
    $region56: #{multi_kernel_forward.3} parent=5 // pred_fallthru
      _
    %p301 = scmp.le.s32.totalorder 1, %s16
    %p302 = scmp.lt.s32.totalorder %s16, 5
    %p303 = pnand %p301, %p302
    %p304 = pneg %p303
    // Predicated region
    $region57: #{multi_kernel_forward.3} parent=5 // pred_check
      _
    $region58: #{multi_kernel_forward.3} parent=5 // pred_check_branch
      %306 = sbr.rel (%p303) target = $region60
    $region59: #{multi_kernel_forward.3} parent=5 // pred_region
      %s307 = ssub.s32 %s16, 1
      %p308 = pneg %p37
      %p309 = pneg %p34
      %p310 = pneg %p58
      %p311 = pneg %p55
      %p312 = pneg %p79
      %p313 = pneg %p76
      %p314 = pneg %p100
      %p315 = pneg %p97
      %p316 = pneg %p121
      %p317 = pneg %p118
      %p318 = pneg %p142
      %p319 = pneg %p139
      %p320 = pneg %p163
      %p321 = pneg %p160
      %p322 = pneg %p184
      %p323 = pneg %p181
      %p324 = pneg %p205
      %p325 = pneg %p202
      %p326 = pneg %p226
      %p327 = pneg %p223
      %p328 = pneg %p252
      %p329 = pneg %p249
      %p330 = scmp.lt.s32.totalorder %s21, 3
      %s331 = scalar_select %p330, %s21, 3
      %s332 = smul.addr %s331, 2
      %s333 = smul.addr %s332, 8
      %s334 = scalar_lea.vmem %s10, %s333
      %p335 = scmp.lt.s32.totalorder %s21, 3
      %s336 = scalar_select %p335, %s21, 3
      %s337 = smul.addr %s336, 2
      %s338 = smul.addr %s337, 8
      %s339 = scalar_lea.vmem %s10, %s338
      %v341 = vld [vmem:[%s0] sm:$0xf]
      %v342 = vld [vmem:[%s0 + $0x4] sm:$0xf]
      %v343 = vld [vmem:[%s9] sm:$0x1]
      %v344 = vld [vmem:[%s9] sm:$0x2]
      %p345 = scmp.eq.s32.totalorder %s21, 0
      // Predicated region
      $region61: #{multi_kernel_forward.3} parent=59 // pred_check
        %p346 = pneg %p345
      $region62: #{multi_kernel_forward.3} parent=59 // pred_check_branch
        %348 = sbr.rel (%p346) target = $region64
      $region63: #{multi_kernel_forward.3} parent=59 // pred_region
        %v349 = vld [vmem:[%s1] sm:$0xf]
        %v350 = vld [vmem:[%s1 + $0x4] sm:$0xf]
        %v353 = vunpack.c.l.b16 %v349
        %v354 = vunpack.c.l.b16 %v350
        %v355 = vpack.c.b16 %v354, %v353
        %v358 = vunpack.c.l.b16 %v341
        %v359 = vunpack.c.l.b16 %v342
        %v360 = vpack.c.b16 %v359, %v358
        %vm362 = vcmask 130048
        %v364 = vsel %vm362, %v355, 0
        %366 = vmatprep.subr.bf16.mxu0 0
        %367 = vmatpush1.bf16.msra.mxu0 0
        %368 = vmatprep.subr.bf16.mxu0 0
        %369 = vmatpush1.bf16.msra.mxu0 0
        %370 = vmatprep.subr.bf16.mxu0 0
        %371 = vmatpush1.bf16.msra.mxu0 0
        %372 = vmatprep.subr.bf16.mxu0 0
        %373 = vmatpush1.bf16.msra.mxu0 0
        %374 = vmatprep.subr.bf16.mxu0 0
        %375 = vmatpush1.bf16.msra.mxu0 0
        %376 = vmatprep.subr.bf16.mxu0 0
        %377 = vmatpush1.bf16.msra.mxu0 0
        %378 = vmatprep.subr.bf16.mxu0 0
        %379 = vmatpush1.bf16.msra.mxu0 0
        %380 = vmatprep.subr.bf16.mxu0 0
        %381 = vmatpush1.bf16.msra.mxu0 %v360
        %382 = vmatprep.subr.bf16.mxu0 0
        %383 = vmatpush2.bf16.msra.mxu0 0
        %384 = vmatprep.subr.bf16.mxu0 0
        %385 = vmatpush2.bf16.msra.mxu0 0
        %386 = vmatprep.subr.bf16.mxu0 0
        %387 = vmatpush2.bf16.msra.mxu0 0
        %388 = vmatprep.subr.bf16.mxu0 0
        %389 = vmatpush2.bf16.msra.mxu0 0
        %390 = vmatprep.subr.bf16.mxu0 0
        %391 = vmatpush2.bf16.msra.mxu0 0
        %392 = vmatprep.subr.bf16.mxu0 0
        %393 = vmatpush2.bf16.msra.mxu0 0
        %394 = vmatprep.subr.bf16.mxu0 0
        %395 = vmatpush2.bf16.msra.mxu0 0
        %396 = vmatprep.subr.bf16.mxu0 0
        %397 = vmatpush2.bf16.msra.mxu0 0
        %398 = vmatprep.mubr.bf16.mxu0 0
        %399 = vmatmul.mubr.bf16.gmra.mxu0 %v364
        %v400 = vpop.f32.mrf.mxu0
        %v401 = vadd.f32 0.0, %v400
        %v402 = vpop.f32.mrf.mxu0
        %v403 = vpop.f32.mrf.mxu0
        %v404 = vadd.f32 0.0, %v403
        %v405 = vpop.f32.mrf.mxu0
        %406 = vdwg.mxu0
        %v407 = vsel %vm362, %v401, 0.0
        %408 = vadd.xlane.f32.xlu0 %v407
        %v409 = vpop.xlane.xlu0 %408
        %v410 = vsel %vm362, %v404, 0.0
        %411 = vadd.xlane.f32.xlu0 %v410
        %v412 = vpop.xlane.xlu0 %411
        %v413 = vmul.f32 %v409, 0.0625
        %v414 = vmul.f32 %v412, 0.0625
        %v415 = vsub.f32 %v401, %v413
        %v416 = vsub.f32 %v404, %v414
        %v417 = vmul.f32 %v415, %v415
        %v418 = vmul.f32 %v416, %v416
        %v419 = vsel %vm362, %v417, 0.0
        %420 = vadd.xlane.f32.xlu0 %v419
        %v421 = vpop.xlane.xlu0 %420
        %v422 = vsel %vm362, %v418, 0.0
        %423 = vadd.xlane.f32.xlu0 %v422
        %v424 = vpop.xlane.xlu0 %423
        %v425 = vmul.f32 %v421, 0.0625
        %v426 = vmul.f32 %v424, 0.0625
        %v427 = vld [vmem:[%s2] sm:$0xff]
        %v428 = vld [vmem:[%s2 + $0x8] sm:$0xff]
        %v429 = vadd.f32 %v425, 1e-05
        %v430 = vadd.f32 %v426, 1e-05
        %v431 = vrsqrt.pop %v429
        %v432 = vrsqrt.pop %v430
        %v433 = vmul.f32 %v427, %v431
        %v434 = vmul.f32 %v428, %v432
        %436 = vset.pattern.permute.xlu0 0
        %437 = vperm.xlu0 %436, %v433
        %v438 = vpop.permute.xlu0 %437
        %441 = vset.pattern.permute.xlu0 0
        %442 = vperm.xlu0 %441, %v434
        %v443 = vpop.permute.xlu0 %442
        %v445 = vmul.f32 %v415, %v438
        %v446 = vmul.f32 %v416, %v443
        %v447 = vld [vmem:[%s3] sm:$0xff]
        %v448 = vld [vmem:[%s3 + $0x8] sm:$0xff]
        %450 = vset.pattern.permute.xlu0 0
        %451 = vperm.xlu0 %450, %v447
        %v452 = vpop.permute.xlu0 %451
        %455 = vset.pattern.permute.xlu0 0
        %456 = vperm.xlu0 %455, %v448
        %v457 = vpop.permute.xlu0 %456
        %v459 = vadd.f32 %v445, %v452
        %v460 = vadd.f32 %v446, %v457
        %vm461 = vcmp.gt.f32.partialorder %v459, 0.0
        %vm462 = vcmp.gt.f32.partialorder %v460, 0.0
        %v463 = vmin.f32 %v459, 0.0
        %v464 = vmin.f32 %v460, 0.0
        %v465 = vmul.f32 %v463, 1.442695
        %v466 = vpow.pop %v465
        %v467 = vmul.f32 %v464, 1.442695
        %v468 = vpow.pop %v467
        %v469 = vsub.f32 %v466, 1.0
        %v470 = vsub.f32 %v468, 1.0
        %v471 = vsel %vm461, %v459, %v469
        %v472 = vsel %vm462, %v460, %v470
        %v473 = vpack.c.bf16 %v472, %v471
        %v474 = vld [vmem:[%s4] sm:$0xf]
        %v475 = vld [vmem:[%s4 + $0x4] sm:$0xf]
        %v478 = vunpack.c.l.b16 %v474
        %v479 = vunpack.c.l.b16 %v475
        %v480 = vpack.c.b16 %v479, %v478
        %481 = vrot.lane.b32.xlu0 %v480, 96
        %v482 = vpop.permute.xlu0 %481
        %484 = vrot.lane.b32.xlu0 %v473, 120
        %v485 = vpop.permute.xlu0 %484
        %v488 = vsel %vm362, %v482, 0
        %490 = vmatprep.subr.bf16.mxu0 0
        %491 = vmatpush1.bf16.msra.mxu0 0
        %492 = vmatprep.subr.bf16.mxu0 0
        %493 = vmatpush1.bf16.msra.mxu0 0
        %494 = vmatprep.subr.bf16.mxu0 0
        %495 = vmatpush1.bf16.msra.mxu0 0
        %496 = vmatprep.subr.bf16.mxu0 0
        %497 = vmatpush1.bf16.msra.mxu0 0
        %498 = vmatprep.subr.bf16.mxu0 0
        %499 = vmatpush1.bf16.msra.mxu0 0
        %500 = vmatprep.subr.bf16.mxu0 0
        %501 = vmatpush1.bf16.msra.mxu0 0
        %502 = vmatprep.subr.bf16.mxu0 0
        %503 = vmatpush1.bf16.msra.mxu0 0
        %504 = vmatprep.subr.bf16.mxu0 0
        %505 = vmatpush1.bf16.msra.mxu0 %v485
        %506 = vmatprep.subr.bf16.mxu0 0
        %507 = vmatpush2.bf16.msra.mxu0 0
        %508 = vmatprep.subr.bf16.mxu0 0
        %509 = vmatpush2.bf16.msra.mxu0 0
        %510 = vmatprep.subr.bf16.mxu0 0
        %511 = vmatpush2.bf16.msra.mxu0 0
        %512 = vmatprep.subr.bf16.mxu0 0
        %513 = vmatpush2.bf16.msra.mxu0 0
        %514 = vmatprep.subr.bf16.mxu0 0
        %515 = vmatpush2.bf16.msra.mxu0 0
        %516 = vmatprep.subr.bf16.mxu0 0
        %517 = vmatpush2.bf16.msra.mxu0 0
        %518 = vmatprep.subr.bf16.mxu0 0
        %519 = vmatpush2.bf16.msra.mxu0 0
        %520 = vmatprep.subr.bf16.mxu0 0
        %521 = vmatpush2.bf16.msra.mxu0 0
        %522 = vmatprep.mubr.bf16.mxu0 0
        %523 = vmatmul.mubr.bf16.gmra.mxu0 %v488
        %v524 = vpop.f32.mrf.mxu0
        %v525 = vadd.f32 0.0, %v524
        %v526 = vpop.f32.mrf.mxu0
        %v527 = vpop.f32.mrf.mxu0
        %v528 = vadd.f32 0.0, %v527
        %v529 = vpop.f32.mrf.mxu0
        %530 = vdwg.mxu0
        %531 = vrot.lane.b32.xlu0 %v480, 112
        %v532 = vpop.permute.xlu0 %531
        %v534 = vsel %vm362, %v532, 0
        %536 = vmatprep.subr.bf16.mxu0 0
        %537 = vmatpush1.bf16.msra.mxu0 0
        %538 = vmatprep.subr.bf16.mxu0 0
        %539 = vmatpush1.bf16.msra.mxu0 0
        %540 = vmatprep.subr.bf16.mxu0 0
        %541 = vmatpush1.bf16.msra.mxu0 0
        %542 = vmatprep.subr.bf16.mxu0 0
        %543 = vmatpush1.bf16.msra.mxu0 0
        %544 = vmatprep.subr.bf16.mxu0 0
        %545 = vmatpush1.bf16.msra.mxu0 0
        %546 = vmatprep.subr.bf16.mxu0 0
        %547 = vmatpush1.bf16.msra.mxu0 0
        %548 = vmatprep.subr.bf16.mxu0 0
        %549 = vmatpush1.bf16.msra.mxu0 0
        %550 = vmatprep.subr.bf16.mxu0 0
        %551 = vmatpush1.bf16.msra.mxu0 %v473
        %552 = vmatprep.subr.bf16.mxu0 0
        %553 = vmatpush2.bf16.msra.mxu0 0
        %554 = vmatprep.subr.bf16.mxu0 0
        %555 = vmatpush2.bf16.msra.mxu0 0
        %556 = vmatprep.subr.bf16.mxu0 0
        %557 = vmatpush2.bf16.msra.mxu0 0
        %558 = vmatprep.subr.bf16.mxu0 0
        %559 = vmatpush2.bf16.msra.mxu0 0
        %560 = vmatprep.subr.bf16.mxu0 0
        %561 = vmatpush2.bf16.msra.mxu0 0
        %562 = vmatprep.subr.bf16.mxu0 0
        %563 = vmatpush2.bf16.msra.mxu0 0
        %564 = vmatprep.subr.bf16.mxu0 0
        %565 = vmatpush2.bf16.msra.mxu0 0
        %566 = vmatprep.subr.bf16.mxu0 0
        %567 = vmatpush2.bf16.msra.mxu0 0
        %568 = vmatprep.mubr.bf16.mxu0 0
        %569 = vmatmul.mubr.bf16.gmra.mxu0 %v534
        %v570 = vpop.f32.mrf.mxu0
        %v571 = vadd.f32 %v525, %v570
        %v572 = vpop.f32.mrf.mxu0
        %v573 = vpop.f32.mrf.mxu0
        %v574 = vadd.f32 %v528, %v573
        %v575 = vpop.f32.mrf.mxu0
        %576 = vdwg.mxu0
        %577 = vrot.lane.b32.xlu0 %v473, 113
        %v578 = vpop.permute.xlu0 %577
        %579 = vrot.lane.b32.xlu0 %v473, 121
        %v580 = vpop.permute.xlu0 %579
        %vm581 = vcmask 7168
        %v584 = vsel %vm581, %v578, %v580
        %v587 = vshrl.u32 %v343, 16
        %v588 = vpack.i.b16 %v587, %v587
        %v590 = vlaneseq
        %v591 = vshrl.u32 %v590, 7
        %v592 = vsub.s32 0, %v591
        %v593 = vrot.slane %v588, %v592
        %v594 = vmul.bf16 %v584, %v593
        %v596 = vsel %vm362, %v480, 0
        %598 = vmatprep.subr.bf16.mxu0 0
        %599 = vmatpush1.bf16.msra.mxu0 0
        %600 = vmatprep.subr.bf16.mxu0 0
        %601 = vmatpush1.bf16.msra.mxu0 0
        %602 = vmatprep.subr.bf16.mxu0 0
        %603 = vmatpush1.bf16.msra.mxu0 0
        %604 = vmatprep.subr.bf16.mxu0 0
        %605 = vmatpush1.bf16.msra.mxu0 0
        %606 = vmatprep.subr.bf16.mxu0 0
        %607 = vmatpush1.bf16.msra.mxu0 0
        %608 = vmatprep.subr.bf16.mxu0 0
        %609 = vmatpush1.bf16.msra.mxu0 0
        %610 = vmatprep.subr.bf16.mxu0 0
        %611 = vmatpush1.bf16.msra.mxu0 0
        %612 = vmatprep.subr.bf16.mxu0 0
        %613 = vmatpush1.bf16.msra.mxu0 %v594
        %614 = vmatprep.subr.bf16.mxu0 0
        %615 = vmatpush2.bf16.msra.mxu0 0
        %616 = vmatprep.subr.bf16.mxu0 0
        %617 = vmatpush2.bf16.msra.mxu0 0
        %618 = vmatprep.subr.bf16.mxu0 0
        %619 = vmatpush2.bf16.msra.mxu0 0
        %620 = vmatprep.subr.bf16.mxu0 0
        %621 = vmatpush2.bf16.msra.mxu0 0
        %622 = vmatprep.subr.bf16.mxu0 0
        %623 = vmatpush2.bf16.msra.mxu0 0
        %624 = vmatprep.subr.bf16.mxu0 0
        %625 = vmatpush2.bf16.msra.mxu0 0
        %626 = vmatprep.subr.bf16.mxu0 0
        %627 = vmatpush2.bf16.msra.mxu0 0
        %628 = vmatprep.subr.bf16.mxu0 0
        %629 = vmatpush2.bf16.msra.mxu0 0
        %630 = vmatprep.mubr.bf16.mxu0 0
        %631 = vmatmul.mubr.bf16.gmra.mxu0 %v596
        %v632 = vpop.f32.mrf.mxu0
        %v633 = vadd.f32 0.0, %v632
        %v634 = vpop.f32.mrf.mxu0
        %v635 = vpop.f32.mrf.mxu0
        %v636 = vadd.f32 0.0, %v635
        %v637 = vpop.f32.mrf.mxu0
        %638 = vdwg.mxu0
        %v639 = vadd.f32 %v571, %v633
        %v640 = vadd.f32 %v574, %v636
        %vm641 = vcmask 64512
        %v642 = vsel %vm641, %v639, 0.0
        %643 = vadd.xlane.f32.xlu0 %v642
        %v644 = vpop.xlane.xlu0 %643
        %v645 = vsel %vm641, %v640, 0.0
        %646 = vadd.xlane.f32.xlu0 %v645
        %v647 = vpop.xlane.xlu0 %646
        %v648 = vmul.f32 %v644, 0.125
        %v649 = vmul.f32 %v647, 0.125
        %v650 = vsub.f32 %v639, %v648
        %v651 = vsub.f32 %v640, %v649
        %v652 = vmul.f32 %v650, %v650
        %v653 = vmul.f32 %v651, %v651
        %v654 = vsel %vm641, %v652, 0.0
        %655 = vadd.xlane.f32.xlu0 %v654
        %v656 = vpop.xlane.xlu0 %655
        %v657 = vsel %vm641, %v653, 0.0
        %658 = vadd.xlane.f32.xlu0 %v657
        %v659 = vpop.xlane.xlu0 %658
        %v660 = vmul.f32 %v656, 0.125
        %v661 = vmul.f32 %v659, 0.125
        %v662 = vld [vmem:[%s7] sm:$0xff]
        %v663 = vld [vmem:[%s7 + $0x8] sm:$0xff]
        %v664 = vadd.f32 %v660, 1e-05
        %v665 = vadd.f32 %v661, 1e-05
        %v666 = vrsqrt.pop %v664
        %v667 = vrsqrt.pop %v665
        %v668 = vmul.f32 %v662, %v666
        %v669 = vmul.f32 %v663, %v667
        %671 = vset.pattern.permute.xlu0 0
        %672 = vperm.xlu0 %671, %v668
        %v673 = vpop.permute.xlu0 %672
        %676 = vset.pattern.permute.xlu0 0
        %677 = vperm.xlu0 %676, %v669
        %v678 = vpop.permute.xlu0 %677
        %v680 = vmul.f32 %v650, %v673
        %v681 = vmul.f32 %v651, %v678
        %v682 = vld [vmem:[%s8] sm:$0xff]
        %v683 = vld [vmem:[%s8 + $0x8] sm:$0xff]
        %685 = vset.pattern.permute.xlu0 0
        %686 = vperm.xlu0 %685, %v682
        %v687 = vpop.permute.xlu0 %686
        %690 = vset.pattern.permute.xlu0 0
        %691 = vperm.xlu0 %690, %v683
        %v692 = vpop.permute.xlu0 %691
        %v694 = vadd.f32 %v680, %v687
        %v695 = vadd.f32 %v681, %v692
        %vm696 = vcmp.gt.f32.partialorder %v694, 0.0
        %vm697 = vcmp.gt.f32.partialorder %v695, 0.0
        %v698 = vmin.f32 %v694, 0.0
        %v699 = vmin.f32 %v695, 0.0
        %v700 = vmul.f32 %v698, 1.442695
        %v701 = vpow.pop %v700
        %v702 = vmul.f32 %v699, 1.442695
        %v703 = vpow.pop %v702
        %v704 = vsub.f32 %v701, 1.0
        %v705 = vsub.f32 %v703, 1.0
        %v706 = vsel %vm696, %v694, %v704
        %v707 = vsel %vm697, %v695, %v705
        %708 = vst.msk [vmem:[%s339] sm:$0xff] %vm641, %v706
        %709 = vst.msk [vmem:[%s339 + $0x8] sm:$0xff] %vm641, %v707
      $region64: #{multi_kernel_forward.3} parent=59 // pred_fallthru
        _
      %p710 = scmp.eq.s32.totalorder %s21, 1
      // Predicated region
      $region65: #{multi_kernel_forward.3} parent=59 // pred_check
        %p711 = pneg %p710
      $region66: #{multi_kernel_forward.3} parent=59 // pred_check_branch
        %713 = sbr.rel (%p711) target = $region68
      $region67: #{multi_kernel_forward.3} parent=59 // pred_region
        %v714 = vld [vmem:[%s1 + $0x8] sm:$0xf]
        %v715 = vld [vmem:[%s1 + $0xc] sm:$0xf]
        %v718 = vunpack.c.l.b16 %v714
        %v719 = vunpack.c.l.b16 %v715
        %v720 = vpack.c.b16 %v719, %v718
        %v723 = vunpack.c.l.b16 %v341
        %v724 = vunpack.c.l.b16 %v342
        %v725 = vpack.c.b16 %v724, %v723
        %vm727 = vcmask 130048
        %v729 = vsel %vm727, %v720, 0
        %731 = vmatprep.subr.bf16.mxu0 0
        %732 = vmatpush1.bf16.msra.mxu0 0
        %733 = vmatprep.subr.bf16.mxu0 0
        %734 = vmatpush1.bf16.msra.mxu0 0
        %735 = vmatprep.subr.bf16.mxu0 0
        %736 = vmatpush1.bf16.msra.mxu0 0
        %737 = vmatprep.subr.bf16.mxu0 0
        %738 = vmatpush1.bf16.msra.mxu0 0
        %739 = vmatprep.subr.bf16.mxu0 0
        %740 = vmatpush1.bf16.msra.mxu0 0
        %741 = vmatprep.subr.bf16.mxu0 0
        %742 = vmatpush1.bf16.msra.mxu0 0
        %743 = vmatprep.subr.bf16.mxu0 0
        %744 = vmatpush1.bf16.msra.mxu0 0
        %745 = vmatprep.subr.bf16.mxu0 0
        %746 = vmatpush1.bf16.msra.mxu0 %v725
        %747 = vmatprep.subr.bf16.mxu0 0
        %748 = vmatpush2.bf16.msra.mxu0 0
        %749 = vmatprep.subr.bf16.mxu0 0
        %750 = vmatpush2.bf16.msra.mxu0 0
        %751 = vmatprep.subr.bf16.mxu0 0
        %752 = vmatpush2.bf16.msra.mxu0 0
        %753 = vmatprep.subr.bf16.mxu0 0
        %754 = vmatpush2.bf16.msra.mxu0 0
        %755 = vmatprep.subr.bf16.mxu0 0
        %756 = vmatpush2.bf16.msra.mxu0 0
        %757 = vmatprep.subr.bf16.mxu0 0
        %758 = vmatpush2.bf16.msra.mxu0 0
        %759 = vmatprep.subr.bf16.mxu0 0
        %760 = vmatpush2.bf16.msra.mxu0 0
        %761 = vmatprep.subr.bf16.mxu0 0
        %762 = vmatpush2.bf16.msra.mxu0 0
        %763 = vmatprep.mubr.bf16.mxu0 0
        %764 = vmatmul.mubr.bf16.gmra.mxu0 %v729
        %v765 = vpop.f32.mrf.mxu0
        %v766 = vadd.f32 0.0, %v765
        %v767 = vpop.f32.mrf.mxu0
        %v768 = vpop.f32.mrf.mxu0
        %v769 = vadd.f32 0.0, %v768
        %v770 = vpop.f32.mrf.mxu0
        %771 = vdwg.mxu0
        %v772 = vsel %vm727, %v766, 0.0
        %773 = vadd.xlane.f32.xlu0 %v772
        %v774 = vpop.xlane.xlu0 %773
        %v775 = vsel %vm727, %v769, 0.0
        %776 = vadd.xlane.f32.xlu0 %v775
        %v777 = vpop.xlane.xlu0 %776
        %v778 = vmul.f32 %v774, 0.0625
        %v779 = vmul.f32 %v777, 0.0625
        %v780 = vsub.f32 %v766, %v778
        %v781 = vsub.f32 %v769, %v779
        %v782 = vmul.f32 %v780, %v780
        %v783 = vmul.f32 %v781, %v781
        %v784 = vsel %vm727, %v782, 0.0
        %785 = vadd.xlane.f32.xlu0 %v784
        %v786 = vpop.xlane.xlu0 %785
        %v787 = vsel %vm727, %v783, 0.0
        %788 = vadd.xlane.f32.xlu0 %v787
        %v789 = vpop.xlane.xlu0 %788
        %v790 = vmul.f32 %v786, 0.0625
        %v791 = vmul.f32 %v789, 0.0625
        %v792 = vld [vmem:[%s2 + $0x10] sm:$0xff]
        %v793 = vld [vmem:[%s2 + $0x18] sm:$0xff]
        %v794 = vadd.f32 %v790, 1e-05
        %v795 = vadd.f32 %v791, 1e-05
        %v796 = vrsqrt.pop %v794
        %v797 = vrsqrt.pop %v795
        %v798 = vmul.f32 %v792, %v796
        %v799 = vmul.f32 %v793, %v797
        %801 = vset.pattern.permute.xlu0 0
        %802 = vperm.xlu0 %801, %v798
        %v803 = vpop.permute.xlu0 %802
        %806 = vset.pattern.permute.xlu0 0
        %807 = vperm.xlu0 %806, %v799
        %v808 = vpop.permute.xlu0 %807
        %v810 = vmul.f32 %v780, %v803
        %v811 = vmul.f32 %v781, %v808
        %v812 = vld [vmem:[%s3 + $0x10] sm:$0xff]
        %v813 = vld [vmem:[%s3 + $0x18] sm:$0xff]
        %815 = vset.pattern.permute.xlu0 0
        %816 = vperm.xlu0 %815, %v812
        %v817 = vpop.permute.xlu0 %816
        %820 = vset.pattern.permute.xlu0 0
        %821 = vperm.xlu0 %820, %v813
        %v822 = vpop.permute.xlu0 %821
        %v824 = vadd.f32 %v810, %v817
        %v825 = vadd.f32 %v811, %v822
        %vm826 = vcmp.gt.f32.partialorder %v824, 0.0
        %vm827 = vcmp.gt.f32.partialorder %v825, 0.0
        %v828 = vmin.f32 %v824, 0.0
        %v829 = vmin.f32 %v825, 0.0
        %v830 = vmul.f32 %v828, 1.442695
        %v831 = vpow.pop %v830
        %v832 = vmul.f32 %v829, 1.442695
        %v833 = vpow.pop %v832
        %v834 = vsub.f32 %v831, 1.0
        %v835 = vsub.f32 %v833, 1.0
        %v836 = vsel %vm826, %v824, %v834
        %v837 = vsel %vm827, %v825, %v835
        %v838 = vpack.c.bf16 %v837, %v836
        %v839 = vld [vmem:[%s5] sm:$0xf]
        %v840 = vld [vmem:[%s5 + $0x4] sm:$0xf]
        %v843 = vunpack.c.l.b16 %v839
        %v844 = vunpack.c.l.b16 %v840
        %v845 = vpack.c.b16 %v844, %v843
        %846 = vrot.lane.b32.xlu0 %v845, 80
        %v847 = vpop.permute.xlu0 %846
        %849 = vrot.lane.b32.xlu0 %v838, 120
        %v850 = vpop.permute.xlu0 %849
        %v853 = vsel %vm727, %v847, 0
        %855 = vmatprep.subr.bf16.mxu0 0
        %856 = vmatpush1.bf16.msra.mxu0 0
        %857 = vmatprep.subr.bf16.mxu0 0
        %858 = vmatpush1.bf16.msra.mxu0 0
        %859 = vmatprep.subr.bf16.mxu0 0
        %860 = vmatpush1.bf16.msra.mxu0 0
        %861 = vmatprep.subr.bf16.mxu0 0
        %862 = vmatpush1.bf16.msra.mxu0 0
        %863 = vmatprep.subr.bf16.mxu0 0
        %864 = vmatpush1.bf16.msra.mxu0 0
        %865 = vmatprep.subr.bf16.mxu0 0
        %866 = vmatpush1.bf16.msra.mxu0 0
        %867 = vmatprep.subr.bf16.mxu0 0
        %868 = vmatpush1.bf16.msra.mxu0 0
        %869 = vmatprep.subr.bf16.mxu0 0
        %870 = vmatpush1.bf16.msra.mxu0 %v850
        %871 = vmatprep.subr.bf16.mxu0 0
        %872 = vmatpush2.bf16.msra.mxu0 0
        %873 = vmatprep.subr.bf16.mxu0 0
        %874 = vmatpush2.bf16.msra.mxu0 0
        %875 = vmatprep.subr.bf16.mxu0 0
        %876 = vmatpush2.bf16.msra.mxu0 0
        %877 = vmatprep.subr.bf16.mxu0 0
        %878 = vmatpush2.bf16.msra.mxu0 0
        %879 = vmatprep.subr.bf16.mxu0 0
        %880 = vmatpush2.bf16.msra.mxu0 0
        %881 = vmatprep.subr.bf16.mxu0 0
        %882 = vmatpush2.bf16.msra.mxu0 0
        %883 = vmatprep.subr.bf16.mxu0 0
        %884 = vmatpush2.bf16.msra.mxu0 0
        %885 = vmatprep.subr.bf16.mxu0 0
        %886 = vmatpush2.bf16.msra.mxu0 0
        %887 = vmatprep.mubr.bf16.mxu0 0
        %888 = vmatmul.mubr.bf16.gmra.mxu0 %v853
        %v889 = vpop.f32.mrf.mxu0
        %v890 = vadd.f32 0.0, %v889
        %v891 = vpop.f32.mrf.mxu0
        %v892 = vpop.f32.mrf.mxu0
        %v893 = vadd.f32 0.0, %v892
        %v894 = vpop.f32.mrf.mxu0
        %895 = vdwg.mxu0
        %896 = vrot.lane.b32.xlu0 %v845, 96
        %v897 = vpop.permute.xlu0 %896
        %v899 = vsel %vm727, %v897, 0
        %901 = vmatprep.subr.bf16.mxu0 0
        %902 = vmatpush1.bf16.msra.mxu0 0
        %903 = vmatprep.subr.bf16.mxu0 0
        %904 = vmatpush1.bf16.msra.mxu0 0
        %905 = vmatprep.subr.bf16.mxu0 0
        %906 = vmatpush1.bf16.msra.mxu0 0
        %907 = vmatprep.subr.bf16.mxu0 0
        %908 = vmatpush1.bf16.msra.mxu0 0
        %909 = vmatprep.subr.bf16.mxu0 0
        %910 = vmatpush1.bf16.msra.mxu0 0
        %911 = vmatprep.subr.bf16.mxu0 0
        %912 = vmatpush1.bf16.msra.mxu0 0
        %913 = vmatprep.subr.bf16.mxu0 0
        %914 = vmatpush1.bf16.msra.mxu0 0
        %915 = vmatprep.subr.bf16.mxu0 0
        %916 = vmatpush1.bf16.msra.mxu0 %v838
        %917 = vmatprep.subr.bf16.mxu0 0
        %918 = vmatpush2.bf16.msra.mxu0 0
        %919 = vmatprep.subr.bf16.mxu0 0
        %920 = vmatpush2.bf16.msra.mxu0 0
        %921 = vmatprep.subr.bf16.mxu0 0
        %922 = vmatpush2.bf16.msra.mxu0 0
        %923 = vmatprep.subr.bf16.mxu0 0
        %924 = vmatpush2.bf16.msra.mxu0 0
        %925 = vmatprep.subr.bf16.mxu0 0
        %926 = vmatpush2.bf16.msra.mxu0 0
        %927 = vmatprep.subr.bf16.mxu0 0
        %928 = vmatpush2.bf16.msra.mxu0 0
        %929 = vmatprep.subr.bf16.mxu0 0
        %930 = vmatpush2.bf16.msra.mxu0 0
        %931 = vmatprep.subr.bf16.mxu0 0
        %932 = vmatpush2.bf16.msra.mxu0 0
        %933 = vmatprep.mubr.bf16.mxu0 0
        %934 = vmatmul.mubr.bf16.gmra.mxu0 %v899
        %v935 = vpop.f32.mrf.mxu0
        %v936 = vadd.f32 %v890, %v935
        %v937 = vpop.f32.mrf.mxu0
        %v938 = vpop.f32.mrf.mxu0
        %v939 = vadd.f32 %v893, %v938
        %v940 = vpop.f32.mrf.mxu0
        %941 = vdwg.mxu0
        %942 = vrot.lane.b32.xlu0 %v838, 121
        %v943 = vpop.permute.xlu0 %942
        %944 = vrot.lane.b32.xlu0 %v838, 1
        %v945 = vpop.permute.xlu0 %944
        %vm946 = vcmask 7168
        %v949 = vsel %vm946, %v943, %v945
        %v952 = vshrl.u32 %v343, 16
        %v953 = vpack.i.b16 %v952, %v952
        %v955 = vlaneseq
        %v956 = vshrl.u32 %v955, 7
        %v957 = vsub.s32 0, %v956
        %v958 = vrot.slane %v953, %v957
        %v959 = vmul.bf16 %v949, %v958
        %v961 = vsel %vm727, %v845, 0
        %963 = vmatprep.subr.bf16.mxu0 0
        %964 = vmatpush1.bf16.msra.mxu0 0
        %965 = vmatprep.subr.bf16.mxu0 0
        %966 = vmatpush1.bf16.msra.mxu0 0
        %967 = vmatprep.subr.bf16.mxu0 0
        %968 = vmatpush1.bf16.msra.mxu0 0
        %969 = vmatprep.subr.bf16.mxu0 0
        %970 = vmatpush1.bf16.msra.mxu0 0
        %971 = vmatprep.subr.bf16.mxu0 0
        %972 = vmatpush1.bf16.msra.mxu0 0
        %973 = vmatprep.subr.bf16.mxu0 0
        %974 = vmatpush1.bf16.msra.mxu0 0
        %975 = vmatprep.subr.bf16.mxu0 0
        %976 = vmatpush1.bf16.msra.mxu0 0
        %977 = vmatprep.subr.bf16.mxu0 0
        %978 = vmatpush1.bf16.msra.mxu0 %v959
        %979 = vmatprep.subr.bf16.mxu0 0
        %980 = vmatpush2.bf16.msra.mxu0 0
        %981 = vmatprep.subr.bf16.mxu0 0
        %982 = vmatpush2.bf16.msra.mxu0 0
        %983 = vmatprep.subr.bf16.mxu0 0
        %984 = vmatpush2.bf16.msra.mxu0 0
        %985 = vmatprep.subr.bf16.mxu0 0
        %986 = vmatpush2.bf16.msra.mxu0 0
        %987 = vmatprep.subr.bf16.mxu0 0
        %988 = vmatpush2.bf16.msra.mxu0 0
        %989 = vmatprep.subr.bf16.mxu0 0
        %990 = vmatpush2.bf16.msra.mxu0 0
        %991 = vmatprep.subr.bf16.mxu0 0
        %992 = vmatpush2.bf16.msra.mxu0 0
        %993 = vmatprep.subr.bf16.mxu0 0
        %994 = vmatpush2.bf16.msra.mxu0 0
        %995 = vmatprep.mubr.bf16.mxu0 0
        %996 = vmatmul.mubr.bf16.gmra.mxu0 %v961
        %v997 = vpop.f32.mrf.mxu0
        %v998 = vadd.f32 0.0, %v997
        %v999 = vpop.f32.mrf.mxu0
        %v1000 = vpop.f32.mrf.mxu0
        %v1001 = vadd.f32 0.0, %v1000
        %v1002 = vpop.f32.mrf.mxu0
        %1003 = vdwg.mxu0
        %v1004 = vadd.f32 %v936, %v998
        %v1005 = vadd.f32 %v939, %v1001
        %1006 = vrot.lane.b32.xlu0 %v838, 113
        %v1007 = vpop.permute.xlu0 %1006
        %v1009 = vsel %vm946, %v1007, %v943
        %v1011 = vmul.bf16 %v1009, %v958
        %1012 = vrot.lane.b32.xlu0 %v845, 112
        %v1013 = vpop.permute.xlu0 %1012
        %v1015 = vsel %vm727, %v1013, 0
        %1017 = vmatprep.subr.bf16.mxu0 0
        %1018 = vmatpush1.bf16.msra.mxu0 0
        %1019 = vmatprep.subr.bf16.mxu0 0
        %1020 = vmatpush1.bf16.msra.mxu0 0
        %1021 = vmatprep.subr.bf16.mxu0 0
        %1022 = vmatpush1.bf16.msra.mxu0 0
        %1023 = vmatprep.subr.bf16.mxu0 0
        %1024 = vmatpush1.bf16.msra.mxu0 0
        %1025 = vmatprep.subr.bf16.mxu0 0
        %1026 = vmatpush1.bf16.msra.mxu0 0
        %1027 = vmatprep.subr.bf16.mxu0 0
        %1028 = vmatpush1.bf16.msra.mxu0 0
        %1029 = vmatprep.subr.bf16.mxu0 0
        %1030 = vmatpush1.bf16.msra.mxu0 0
        %1031 = vmatprep.subr.bf16.mxu0 0
        %1032 = vmatpush1.bf16.msra.mxu0 %v1011
        %1033 = vmatprep.subr.bf16.mxu0 0
        %1034 = vmatpush2.bf16.msra.mxu0 0
        %1035 = vmatprep.subr.bf16.mxu0 0
        %1036 = vmatpush2.bf16.msra.mxu0 0
        %1037 = vmatprep.subr.bf16.mxu0 0
        %1038 = vmatpush2.bf16.msra.mxu0 0
        %1039 = vmatprep.subr.bf16.mxu0 0
        %1040 = vmatpush2.bf16.msra.mxu0 0
        %1041 = vmatprep.subr.bf16.mxu0 0
        %1042 = vmatpush2.bf16.msra.mxu0 0
        %1043 = vmatprep.subr.bf16.mxu0 0
        %1044 = vmatpush2.bf16.msra.mxu0 0
        %1045 = vmatprep.subr.bf16.mxu0 0
        %1046 = vmatpush2.bf16.msra.mxu0 0
        %1047 = vmatprep.subr.bf16.mxu0 0
        %1048 = vmatpush2.bf16.msra.mxu0 0
        %1049 = vmatprep.mubr.bf16.mxu0 0
        %1050 = vmatmul.mubr.bf16.gmra.mxu0 %v1015
        %v1051 = vpop.f32.mrf.mxu0
        %v1052 = vadd.f32 0.0, %v1051
        %v1053 = vpop.f32.mrf.mxu0
        %v1054 = vpop.f32.mrf.mxu0
        %v1055 = vadd.f32 0.0, %v1054
        %v1056 = vpop.f32.mrf.mxu0
        %1057 = vdwg.mxu0
        %v1058 = vadd.f32 %v1004, %v1052
        %v1059 = vadd.f32 %v1005, %v1055
        %1060 = vrot.lane.b32.xlu0 %v838, 127
        %v1061 = vpop.permute.xlu0 %1060
        %1062 = vrot.lane.b32.xlu0 %v838, 7
        %v1063 = vpop.permute.xlu0 %1062
        %vm1064 = vcmask 56320
        %v1067 = vsel %vm1064, %v1061, %v1063
        %v1070 = vpack.i.b16 %v344, %v344
        %v1072 = vlaneseq
        %v1073 = vshrl.u32 %v1072, 7
        %v1074 = vsub.s32 1, %v1073
        %v1075 = vrot.slane %v1070, %v1074
        %v1076 = vmul.bf16 %v1067, %v1075
        %1077 = vrot.lane.b32.xlu0 %v845, 64
        %v1078 = vpop.permute.xlu0 %1077
        %v1080 = vsel %vm727, %v1078, 0
        %1082 = vmatprep.subr.bf16.mxu0 0
        %1083 = vmatpush1.bf16.msra.mxu0 0
        %1084 = vmatprep.subr.bf16.mxu0 0
        %1085 = vmatpush1.bf16.msra.mxu0 0
        %1086 = vmatprep.subr.bf16.mxu0 0
        %1087 = vmatpush1.bf16.msra.mxu0 0
        %1088 = vmatprep.subr.bf16.mxu0 0
        %1089 = vmatpush1.bf16.msra.mxu0 0
        %1090 = vmatprep.subr.bf16.mxu0 0
        %1091 = vmatpush1.bf16.msra.mxu0 0
        %1092 = vmatprep.subr.bf16.mxu0 0
        %1093 = vmatpush1.bf16.msra.mxu0 0
        %1094 = vmatprep.subr.bf16.mxu0 0
        %1095 = vmatpush1.bf16.msra.mxu0 0
        %1096 = vmatprep.subr.bf16.mxu0 0
        %1097 = vmatpush1.bf16.msra.mxu0 %v1076
        %1098 = vmatprep.subr.bf16.mxu0 0
        %1099 = vmatpush2.bf16.msra.mxu0 0
        %1100 = vmatprep.subr.bf16.mxu0 0
        %1101 = vmatpush2.bf16.msra.mxu0 0
        %1102 = vmatprep.subr.bf16.mxu0 0
        %1103 = vmatpush2.bf16.msra.mxu0 0
        %1104 = vmatprep.subr.bf16.mxu0 0
        %1105 = vmatpush2.bf16.msra.mxu0 0
        %1106 = vmatprep.subr.bf16.mxu0 0
        %1107 = vmatpush2.bf16.msra.mxu0 0
        %1108 = vmatprep.subr.bf16.mxu0 0
        %1109 = vmatpush2.bf16.msra.mxu0 0
        %1110 = vmatprep.subr.bf16.mxu0 0
        %1111 = vmatpush2.bf16.msra.mxu0 0
        %1112 = vmatprep.subr.bf16.mxu0 0
        %1113 = vmatpush2.bf16.msra.mxu0 0
        %1114 = vmatprep.mubr.bf16.mxu0 0
        %1115 = vmatmul.mubr.bf16.gmra.mxu0 %v1080
        %v1116 = vpop.f32.mrf.mxu0
        %v1117 = vadd.f32 0.0, %v1116
        %v1118 = vpop.f32.mrf.mxu0
        %v1119 = vpop.f32.mrf.mxu0
        %v1120 = vadd.f32 0.0, %v1119
        %v1121 = vpop.f32.mrf.mxu0
        %1122 = vdwg.mxu0
        %v1123 = vadd.f32 %v1058, %v1117
        %v1124 = vadd.f32 %v1059, %v1120
        %vm1125 = vcmask 64512
        %v1126 = vsel %vm1125, %v1123, 0.0
        %1127 = vadd.xlane.f32.xlu0 %v1126
        %v1128 = vpop.xlane.xlu0 %1127
        %v1129 = vsel %vm1125, %v1124, 0.0
        %1130 = vadd.xlane.f32.xlu0 %v1129
        %v1131 = vpop.xlane.xlu0 %1130
        %v1132 = vmul.f32 %v1128, 0.125
        %v1133 = vmul.f32 %v1131, 0.125
        %v1134 = vsub.f32 %v1123, %v1132
        %v1135 = vsub.f32 %v1124, %v1133
        %v1136 = vmul.f32 %v1134, %v1134
        %v1137 = vmul.f32 %v1135, %v1135
        %v1138 = vsel %vm1125, %v1136, 0.0
        %1139 = vadd.xlane.f32.xlu0 %v1138
        %v1140 = vpop.xlane.xlu0 %1139
        %v1141 = vsel %vm1125, %v1137, 0.0
        %1142 = vadd.xlane.f32.xlu0 %v1141
        %v1143 = vpop.xlane.xlu0 %1142
        %v1144 = vmul.f32 %v1140, 0.125
        %v1145 = vmul.f32 %v1143, 0.125
        %v1146 = vld [vmem:[%s7 + $0x10] sm:$0xff]
        %v1147 = vld [vmem:[%s7 + $0x18] sm:$0xff]
        %v1148 = vadd.f32 %v1144, 1e-05
        %v1149 = vadd.f32 %v1145, 1e-05
        %v1150 = vrsqrt.pop %v1148
        %v1151 = vrsqrt.pop %v1149
        %v1152 = vmul.f32 %v1146, %v1150
        %v1153 = vmul.f32 %v1147, %v1151
        %1155 = vset.pattern.permute.xlu0 0
        %1156 = vperm.xlu0 %1155, %v1152
        %v1157 = vpop.permute.xlu0 %1156
        %1160 = vset.pattern.permute.xlu0 0
        %1161 = vperm.xlu0 %1160, %v1153
        %v1162 = vpop.permute.xlu0 %1161
        %v1164 = vmul.f32 %v1134, %v1157
        %v1165 = vmul.f32 %v1135, %v1162
        %v1166 = vld [vmem:[%s8 + $0x10] sm:$0xff]
        %v1167 = vld [vmem:[%s8 + $0x18] sm:$0xff]
        %1169 = vset.pattern.permute.xlu0 0
        %1170 = vperm.xlu0 %1169, %v1166
        %v1171 = vpop.permute.xlu0 %1170
        %1174 = vset.pattern.permute.xlu0 0
        %1175 = vperm.xlu0 %1174, %v1167
        %v1176 = vpop.permute.xlu0 %1175
        %v1178 = vadd.f32 %v1164, %v1171
        %v1179 = vadd.f32 %v1165, %v1176
        %vm1180 = vcmp.gt.f32.partialorder %v1178, 0.0
        %vm1181 = vcmp.gt.f32.partialorder %v1179, 0.0
        %v1182 = vmin.f32 %v1178, 0.0
        %v1183 = vmin.f32 %v1179, 0.0
        %v1184 = vmul.f32 %v1182, 1.442695
        %v1185 = vpow.pop %v1184
        %v1186 = vmul.f32 %v1183, 1.442695
        %v1187 = vpow.pop %v1186
        %v1188 = vsub.f32 %v1185, 1.0
        %v1189 = vsub.f32 %v1187, 1.0
        %v1190 = vsel %vm1180, %v1178, %v1188
        %v1191 = vsel %vm1181, %v1179, %v1189
        %1192 = vst.msk [vmem:[%s339] sm:$0xff] %vm1125, %v1190
        %1193 = vst.msk [vmem:[%s339 + $0x8] sm:$0xff] %vm1125, %v1191
      $region68: #{multi_kernel_forward.3} parent=59 // pred_fallthru
        _
      %p1194 = scmp.eq.s32.totalorder %s21, 2
      // Predicated region
      $region69: #{multi_kernel_forward.3} parent=59 // pred_check
        %p1195 = pneg %p1194
      $region70: #{multi_kernel_forward.3} parent=59 // pred_check_branch
        %1197 = sbr.rel (%p1195) target = $region72
      $region71: #{multi_kernel_forward.3} parent=59 // pred_region
        %v1198 = vld [vmem:[%s1 + $0x10] sm:$0xf]
        %v1199 = vld [vmem:[%s1 + $0x14] sm:$0xf]
        %v1202 = vunpack.c.l.b16 %v1198
        %v1203 = vunpack.c.l.b16 %v1199
        %v1204 = vpack.c.b16 %v1203, %v1202
        %v1207 = vunpack.c.l.b16 %v341
        %v1208 = vunpack.c.l.b16 %v342
        %v1209 = vpack.c.b16 %v1208, %v1207
        %vm1211 = vcmask 130048
        %v1213 = vsel %vm1211, %v1204, 0
        %1215 = vmatprep.subr.bf16.mxu0 0
        %1216 = vmatpush1.bf16.msra.mxu0 0
        %1217 = vmatprep.subr.bf16.mxu0 0
        %1218 = vmatpush1.bf16.msra.mxu0 0
        %1219 = vmatprep.subr.bf16.mxu0 0
        %1220 = vmatpush1.bf16.msra.mxu0 0
        %1221 = vmatprep.subr.bf16.mxu0 0
        %1222 = vmatpush1.bf16.msra.mxu0 0
        %1223 = vmatprep.subr.bf16.mxu0 0
        %1224 = vmatpush1.bf16.msra.mxu0 0
        %1225 = vmatprep.subr.bf16.mxu0 0
        %1226 = vmatpush1.bf16.msra.mxu0 0
        %1227 = vmatprep.subr.bf16.mxu0 0
        %1228 = vmatpush1.bf16.msra.mxu0 0
        %1229 = vmatprep.subr.bf16.mxu0 0
        %1230 = vmatpush1.bf16.msra.mxu0 %v1209
        %1231 = vmatprep.subr.bf16.mxu0 0
        %1232 = vmatpush2.bf16.msra.mxu0 0
        %1233 = vmatprep.subr.bf16.mxu0 0
        %1234 = vmatpush2.bf16.msra.mxu0 0
        %1235 = vmatprep.subr.bf16.mxu0 0
        %1236 = vmatpush2.bf16.msra.mxu0 0
        %1237 = vmatprep.subr.bf16.mxu0 0
        %1238 = vmatpush2.bf16.msra.mxu0 0
        %1239 = vmatprep.subr.bf16.mxu0 0
        %1240 = vmatpush2.bf16.msra.mxu0 0
        %1241 = vmatprep.subr.bf16.mxu0 0
        %1242 = vmatpush2.bf16.msra.mxu0 0
        %1243 = vmatprep.subr.bf16.mxu0 0
        %1244 = vmatpush2.bf16.msra.mxu0 0
        %1245 = vmatprep.subr.bf16.mxu0 0
        %1246 = vmatpush2.bf16.msra.mxu0 0
        %1247 = vmatprep.mubr.bf16.mxu0 0
        %1248 = vmatmul.mubr.bf16.gmra.mxu0 %v1213
        %v1249 = vpop.f32.mrf.mxu0
        %v1250 = vadd.f32 0.0, %v1249
        %v1251 = vpop.f32.mrf.mxu0
        %v1252 = vpop.f32.mrf.mxu0
        %v1253 = vadd.f32 0.0, %v1252
        %v1254 = vpop.f32.mrf.mxu0
        %1255 = vdwg.mxu0
        %v1256 = vsel %vm1211, %v1250, 0.0
        %1257 = vadd.xlane.f32.xlu0 %v1256
        %v1258 = vpop.xlane.xlu0 %1257
        %v1259 = vsel %vm1211, %v1253, 0.0
        %1260 = vadd.xlane.f32.xlu0 %v1259
        %v1261 = vpop.xlane.xlu0 %1260
        %v1262 = vmul.f32 %v1258, 0.0625
        %v1263 = vmul.f32 %v1261, 0.0625
        %v1264 = vsub.f32 %v1250, %v1262
        %v1265 = vsub.f32 %v1253, %v1263
        %v1266 = vmul.f32 %v1264, %v1264
        %v1267 = vmul.f32 %v1265, %v1265
        %v1268 = vsel %vm1211, %v1266, 0.0
        %1269 = vadd.xlane.f32.xlu0 %v1268
        %v1270 = vpop.xlane.xlu0 %1269
        %v1271 = vsel %vm1211, %v1267, 0.0
        %1272 = vadd.xlane.f32.xlu0 %v1271
        %v1273 = vpop.xlane.xlu0 %1272
        %v1274 = vmul.f32 %v1270, 0.0625
        %v1275 = vmul.f32 %v1273, 0.0625
        %v1276 = vld [vmem:[%s2 + $0x20] sm:$0xff]
        %v1277 = vld [vmem:[%s2 + $0x28] sm:$0xff]
        %v1278 = vadd.f32 %v1274, 1e-05
        %v1279 = vadd.f32 %v1275, 1e-05
        %v1280 = vrsqrt.pop %v1278
        %v1281 = vrsqrt.pop %v1279
        %v1282 = vmul.f32 %v1276, %v1280
        %v1283 = vmul.f32 %v1277, %v1281
        %1285 = vset.pattern.permute.xlu0 0
        %1286 = vperm.xlu0 %1285, %v1282
        %v1287 = vpop.permute.xlu0 %1286
        %1290 = vset.pattern.permute.xlu0 0
        %1291 = vperm.xlu0 %1290, %v1283
        %v1292 = vpop.permute.xlu0 %1291
        %v1294 = vmul.f32 %v1264, %v1287
        %v1295 = vmul.f32 %v1265, %v1292
        %v1296 = vld [vmem:[%s3 + $0x20] sm:$0xff]
        %v1297 = vld [vmem:[%s3 + $0x28] sm:$0xff]
        %1299 = vset.pattern.permute.xlu0 0
        %1300 = vperm.xlu0 %1299, %v1296
        %v1301 = vpop.permute.xlu0 %1300
        %1304 = vset.pattern.permute.xlu0 0
        %1305 = vperm.xlu0 %1304, %v1297
        %v1306 = vpop.permute.xlu0 %1305
        %v1308 = vadd.f32 %v1294, %v1301
        %v1309 = vadd.f32 %v1295, %v1306
        %vm1310 = vcmp.gt.f32.partialorder %v1308, 0.0
        %vm1311 = vcmp.gt.f32.partialorder %v1309, 0.0
        %v1312 = vmin.f32 %v1308, 0.0
        %v1313 = vmin.f32 %v1309, 0.0
        %v1314 = vmul.f32 %v1312, 1.442695
        %v1315 = vpow.pop %v1314
        %v1316 = vmul.f32 %v1313, 1.442695
        %v1317 = vpow.pop %v1316
        %v1318 = vsub.f32 %v1315, 1.0
        %v1319 = vsub.f32 %v1317, 1.0
        %v1320 = vsel %vm1310, %v1308, %v1318
        %v1321 = vsel %vm1311, %v1309, %v1319
        %v1322 = vpack.c.bf16 %v1321, %v1320
        %v1323 = vld [vmem:[%s6] sm:$0xf]
        %v1324 = vld [vmem:[%s6 + $0x4] sm:$0xf]
        %v1327 = vunpack.c.l.b16 %v1323
        %v1328 = vunpack.c.l.b16 %v1324
        %v1329 = vpack.c.b16 %v1328, %v1327
        %1330 = vrot.lane.b32.xlu0 %v1329, 64
        %v1331 = vpop.permute.xlu0 %1330
        %1333 = vrot.lane.b32.xlu0 %v1322, 120
        %v1334 = vpop.permute.xlu0 %1333
        %v1337 = vsel %vm1211, %v1331, 0
        %1339 = vmatprep.subr.bf16.mxu0 0
        %1340 = vmatpush1.bf16.msra.mxu0 0
        %1341 = vmatprep.subr.bf16.mxu0 0
        %1342 = vmatpush1.bf16.msra.mxu0 0
        %1343 = vmatprep.subr.bf16.mxu0 0
        %1344 = vmatpush1.bf16.msra.mxu0 0
        %1345 = vmatprep.subr.bf16.mxu0 0
        %1346 = vmatpush1.bf16.msra.mxu0 0
        %1347 = vmatprep.subr.bf16.mxu0 0
        %1348 = vmatpush1.bf16.msra.mxu0 0
        %1349 = vmatprep.subr.bf16.mxu0 0
        %1350 = vmatpush1.bf16.msra.mxu0 0
        %1351 = vmatprep.subr.bf16.mxu0 0
        %1352 = vmatpush1.bf16.msra.mxu0 0
        %1353 = vmatprep.subr.bf16.mxu0 0
        %1354 = vmatpush1.bf16.msra.mxu0 %v1334
        %1355 = vmatprep.subr.bf16.mxu0 0
        %1356 = vmatpush2.bf16.msra.mxu0 0
        %1357 = vmatprep.subr.bf16.mxu0 0
        %1358 = vmatpush2.bf16.msra.mxu0 0
        %1359 = vmatprep.subr.bf16.mxu0 0
        %1360 = vmatpush2.bf16.msra.mxu0 0
        %1361 = vmatprep.subr.bf16.mxu0 0
        %1362 = vmatpush2.bf16.msra.mxu0 0
        %1363 = vmatprep.subr.bf16.mxu0 0
        %1364 = vmatpush2.bf16.msra.mxu0 0
        %1365 = vmatprep.subr.bf16.mxu0 0
        %1366 = vmatpush2.bf16.msra.mxu0 0
        %1367 = vmatprep.subr.bf16.mxu0 0
        %1368 = vmatpush2.bf16.msra.mxu0 0
        %1369 = vmatprep.subr.bf16.mxu0 0
        %1370 = vmatpush2.bf16.msra.mxu0 0
        %1371 = vmatprep.mubr.bf16.mxu0 0
        %1372 = vmatmul.mubr.bf16.gmra.mxu0 %v1337
        %v1373 = vpop.f32.mrf.mxu0
        %v1374 = vadd.f32 0.0, %v1373
        %v1375 = vpop.f32.mrf.mxu0
        %v1376 = vpop.f32.mrf.mxu0
        %v1377 = vadd.f32 0.0, %v1376
        %v1378 = vpop.f32.mrf.mxu0
        %1379 = vdwg.mxu0
        %1380 = vrot.lane.b32.xlu0 %v1329, 80
        %v1381 = vpop.permute.xlu0 %1380
        %v1383 = vsel %vm1211, %v1381, 0
        %1385 = vmatprep.subr.bf16.mxu0 0
        %1386 = vmatpush1.bf16.msra.mxu0 0
        %1387 = vmatprep.subr.bf16.mxu0 0
        %1388 = vmatpush1.bf16.msra.mxu0 0
        %1389 = vmatprep.subr.bf16.mxu0 0
        %1390 = vmatpush1.bf16.msra.mxu0 0
        %1391 = vmatprep.subr.bf16.mxu0 0
        %1392 = vmatpush1.bf16.msra.mxu0 0
        %1393 = vmatprep.subr.bf16.mxu0 0
        %1394 = vmatpush1.bf16.msra.mxu0 0
        %1395 = vmatprep.subr.bf16.mxu0 0
        %1396 = vmatpush1.bf16.msra.mxu0 0
        %1397 = vmatprep.subr.bf16.mxu0 0
        %1398 = vmatpush1.bf16.msra.mxu0 0
        %1399 = vmatprep.subr.bf16.mxu0 0
        %1400 = vmatpush1.bf16.msra.mxu0 %v1322
        %1401 = vmatprep.subr.bf16.mxu0 0
        %1402 = vmatpush2.bf16.msra.mxu0 0
        %1403 = vmatprep.subr.bf16.mxu0 0
        %1404 = vmatpush2.bf16.msra.mxu0 0
        %1405 = vmatprep.subr.bf16.mxu0 0
        %1406 = vmatpush2.bf16.msra.mxu0 0
        %1407 = vmatprep.subr.bf16.mxu0 0
        %1408 = vmatpush2.bf16.msra.mxu0 0
        %1409 = vmatprep.subr.bf16.mxu0 0
        %1410 = vmatpush2.bf16.msra.mxu0 0
        %1411 = vmatprep.subr.bf16.mxu0 0
        %1412 = vmatpush2.bf16.msra.mxu0 0
        %1413 = vmatprep.subr.bf16.mxu0 0
        %1414 = vmatpush2.bf16.msra.mxu0 0
        %1415 = vmatprep.subr.bf16.mxu0 0
        %1416 = vmatpush2.bf16.msra.mxu0 0
        %1417 = vmatprep.mubr.bf16.mxu0 0
        %1418 = vmatmul.mubr.bf16.gmra.mxu0 %v1383
        %v1419 = vpop.f32.mrf.mxu0
        %v1420 = vadd.f32 %v1374, %v1419
        %v1421 = vpop.f32.mrf.mxu0
        %v1422 = vpop.f32.mrf.mxu0
        %v1423 = vadd.f32 %v1377, %v1422
        %v1424 = vpop.f32.mrf.mxu0
        %1425 = vdwg.mxu0
        %1426 = vrot.lane.b32.xlu0 %v1322, 114
        %v1427 = vpop.permute.xlu0 %1426
        %1428 = vrot.lane.b32.xlu0 %v1322, 122
        %v1429 = vpop.permute.xlu0 %1428
        %vm1430 = vcmask 15360
        %v1433 = vsel %vm1430, %v1427, %v1429
        %v1436 = vpack.i.b16 %v343, %v343
        %v1438 = vlaneseq
        %v1439 = vshrl.u32 %v1438, 7
        %v1440 = vsub.s32 0, %v1439
        %v1441 = vrot.slane %v1436, %v1440
        %v1442 = vmul.bf16 %v1433, %v1441
        %v1444 = vsel %vm1211, %v1329, 0
        %1446 = vmatprep.subr.bf16.mxu0 0
        %1447 = vmatpush1.bf16.msra.mxu0 0
        %1448 = vmatprep.subr.bf16.mxu0 0
        %1449 = vmatpush1.bf16.msra.mxu0 0
        %1450 = vmatprep.subr.bf16.mxu0 0
        %1451 = vmatpush1.bf16.msra.mxu0 0
        %1452 = vmatprep.subr.bf16.mxu0 0
        %1453 = vmatpush1.bf16.msra.mxu0 0
        %1454 = vmatprep.subr.bf16.mxu0 0
        %1455 = vmatpush1.bf16.msra.mxu0 0
        %1456 = vmatprep.subr.bf16.mxu0 0
        %1457 = vmatpush1.bf16.msra.mxu0 0
        %1458 = vmatprep.subr.bf16.mxu0 0
        %1459 = vmatpush1.bf16.msra.mxu0 0
        %1460 = vmatprep.subr.bf16.mxu0 0
        %1461 = vmatpush1.bf16.msra.mxu0 %v1442
        %1462 = vmatprep.subr.bf16.mxu0 0
        %1463 = vmatpush2.bf16.msra.mxu0 0
        %1464 = vmatprep.subr.bf16.mxu0 0
        %1465 = vmatpush2.bf16.msra.mxu0 0
        %1466 = vmatprep.subr.bf16.mxu0 0
        %1467 = vmatpush2.bf16.msra.mxu0 0
        %1468 = vmatprep.subr.bf16.mxu0 0
        %1469 = vmatpush2.bf16.msra.mxu0 0
        %1470 = vmatprep.subr.bf16.mxu0 0
        %1471 = vmatpush2.bf16.msra.mxu0 0
        %1472 = vmatprep.subr.bf16.mxu0 0
        %1473 = vmatpush2.bf16.msra.mxu0 0
        %1474 = vmatprep.subr.bf16.mxu0 0
        %1475 = vmatpush2.bf16.msra.mxu0 0
        %1476 = vmatprep.subr.bf16.mxu0 0
        %1477 = vmatpush2.bf16.msra.mxu0 0
        %1478 = vmatprep.mubr.bf16.mxu0 0
        %1479 = vmatmul.mubr.bf16.gmra.mxu0 %v1444
        %v1480 = vpop.f32.mrf.mxu0
        %v1481 = vadd.f32 0.0, %v1480
        %v1482 = vpop.f32.mrf.mxu0
        %v1483 = vpop.f32.mrf.mxu0
        %v1484 = vadd.f32 0.0, %v1483
        %v1485 = vpop.f32.mrf.mxu0
        %1486 = vdwg.mxu0
        %v1487 = vadd.f32 %v1420, %v1481
        %v1488 = vadd.f32 %v1423, %v1484
        %1489 = vrot.lane.b32.xlu0 %v1322, 121
        %v1490 = vpop.permute.xlu0 %1489
        %1491 = vrot.lane.b32.xlu0 %v1322, 1
        %v1492 = vpop.permute.xlu0 %1491
        %vm1493 = vcmask 7168
        %v1496 = vsel %vm1493, %v1490, %v1492
        %v1498 = vshrl.u32 %v343, 16
        %v1499 = vpack.i.b16 %v1498, %v1498
        %v1501 = vlaneseq
        %v1502 = vshrl.u32 %v1501, 7
        %v1503 = vsub.s32 0, %v1502
        %v1504 = vrot.slane %v1499, %v1503
        %v1505 = vmul.bf16 %v1496, %v1504
        %1506 = vrot.lane.b32.xlu0 %v1329, 112
        %v1507 = vpop.permute.xlu0 %1506
        %v1509 = vsel %vm1211, %v1507, 0
        %1511 = vmatprep.subr.bf16.mxu0 0
        %1512 = vmatpush1.bf16.msra.mxu0 0
        %1513 = vmatprep.subr.bf16.mxu0 0
        %1514 = vmatpush1.bf16.msra.mxu0 0
        %1515 = vmatprep.subr.bf16.mxu0 0
        %1516 = vmatpush1.bf16.msra.mxu0 0
        %1517 = vmatprep.subr.bf16.mxu0 0
        %1518 = vmatpush1.bf16.msra.mxu0 0
        %1519 = vmatprep.subr.bf16.mxu0 0
        %1520 = vmatpush1.bf16.msra.mxu0 0
        %1521 = vmatprep.subr.bf16.mxu0 0
        %1522 = vmatpush1.bf16.msra.mxu0 0
        %1523 = vmatprep.subr.bf16.mxu0 0
        %1524 = vmatpush1.bf16.msra.mxu0 0
        %1525 = vmatprep.subr.bf16.mxu0 0
        %1526 = vmatpush1.bf16.msra.mxu0 %v1505
        %1527 = vmatprep.subr.bf16.mxu0 0
        %1528 = vmatpush2.bf16.msra.mxu0 0
        %1529 = vmatprep.subr.bf16.mxu0 0
        %1530 = vmatpush2.bf16.msra.mxu0 0
        %1531 = vmatprep.subr.bf16.mxu0 0
        %1532 = vmatpush2.bf16.msra.mxu0 0
        %1533 = vmatprep.subr.bf16.mxu0 0
        %1534 = vmatpush2.bf16.msra.mxu0 0
        %1535 = vmatprep.subr.bf16.mxu0 0
        %1536 = vmatpush2.bf16.msra.mxu0 0
        %1537 = vmatprep.subr.bf16.mxu0 0
        %1538 = vmatpush2.bf16.msra.mxu0 0
        %1539 = vmatprep.subr.bf16.mxu0 0
        %1540 = vmatpush2.bf16.msra.mxu0 0
        %1541 = vmatprep.subr.bf16.mxu0 0
        %1542 = vmatpush2.bf16.msra.mxu0 0
        %1543 = vmatprep.mubr.bf16.mxu0 0
        %1544 = vmatmul.mubr.bf16.gmra.mxu0 %v1509
        %v1545 = vpop.f32.mrf.mxu0
        %v1546 = vadd.f32 0.0, %v1545
        %v1547 = vpop.f32.mrf.mxu0
        %v1548 = vpop.f32.mrf.mxu0
        %v1549 = vadd.f32 0.0, %v1548
        %v1550 = vpop.f32.mrf.mxu0
        %1551 = vdwg.mxu0
        %v1552 = vadd.f32 %v1487, %v1546
        %v1553 = vadd.f32 %v1488, %v1549
        %1554 = vrot.lane.b32.xlu0 %v1322, 113
        %v1555 = vpop.permute.xlu0 %1554
        %v1557 = vsel %vm1493, %v1555, %v1490
        %v1559 = vmul.bf16 %v1557, %v1504
        %1560 = vrot.lane.b32.xlu0 %v1329, 96
        %v1561 = vpop.permute.xlu0 %1560
        %v1563 = vsel %vm1211, %v1561, 0
        %1565 = vmatprep.subr.bf16.mxu0 0
        %1566 = vmatpush1.bf16.msra.mxu0 0
        %1567 = vmatprep.subr.bf16.mxu0 0
        %1568 = vmatpush1.bf16.msra.mxu0 0
        %1569 = vmatprep.subr.bf16.mxu0 0
        %1570 = vmatpush1.bf16.msra.mxu0 0
        %1571 = vmatprep.subr.bf16.mxu0 0
        %1572 = vmatpush1.bf16.msra.mxu0 0
        %1573 = vmatprep.subr.bf16.mxu0 0
        %1574 = vmatpush1.bf16.msra.mxu0 0
        %1575 = vmatprep.subr.bf16.mxu0 0
        %1576 = vmatpush1.bf16.msra.mxu0 0
        %1577 = vmatprep.subr.bf16.mxu0 0
        %1578 = vmatpush1.bf16.msra.mxu0 0
        %1579 = vmatprep.subr.bf16.mxu0 0
        %1580 = vmatpush1.bf16.msra.mxu0 %v1559
        %1581 = vmatprep.subr.bf16.mxu0 0
        %1582 = vmatpush2.bf16.msra.mxu0 0
        %1583 = vmatprep.subr.bf16.mxu0 0
        %1584 = vmatpush2.bf16.msra.mxu0 0
        %1585 = vmatprep.subr.bf16.mxu0 0
        %1586 = vmatpush2.bf16.msra.mxu0 0
        %1587 = vmatprep.subr.bf16.mxu0 0
        %1588 = vmatpush2.bf16.msra.mxu0 0
        %1589 = vmatprep.subr.bf16.mxu0 0
        %1590 = vmatpush2.bf16.msra.mxu0 0
        %1591 = vmatprep.subr.bf16.mxu0 0
        %1592 = vmatpush2.bf16.msra.mxu0 0
        %1593 = vmatprep.subr.bf16.mxu0 0
        %1594 = vmatpush2.bf16.msra.mxu0 0
        %1595 = vmatprep.subr.bf16.mxu0 0
        %1596 = vmatpush2.bf16.msra.mxu0 0
        %1597 = vmatprep.mubr.bf16.mxu0 0
        %1598 = vmatmul.mubr.bf16.gmra.mxu0 %v1563
        %v1599 = vpop.f32.mrf.mxu0
        %v1600 = vadd.f32 0.0, %v1599
        %v1601 = vpop.f32.mrf.mxu0
        %v1602 = vpop.f32.mrf.mxu0
        %v1603 = vadd.f32 0.0, %v1602
        %v1604 = vpop.f32.mrf.mxu0
        %1605 = vdwg.mxu0
        %v1606 = vadd.f32 %v1552, %v1600
        %v1607 = vadd.f32 %v1553, %v1603
        %1608 = vrot.lane.b32.xlu0 %v1322, 127
        %v1609 = vpop.permute.xlu0 %1608
        %1610 = vrot.lane.b32.xlu0 %v1322, 7
        %v1611 = vpop.permute.xlu0 %1610
        %vm1612 = vcmask 56320
        %v1615 = vsel %vm1612, %v1609, %v1611
        %v1618 = vpack.i.b16 %v344, %v344
        %v1620 = vlaneseq
        %v1621 = vshrl.u32 %v1620, 7
        %v1622 = vsub.s32 1, %v1621
        %v1623 = vrot.slane %v1618, %v1622
        %v1624 = vmul.bf16 %v1615, %v1623
        %1625 = vrot.lane.b32.xlu0 %v1329, 48
        %v1626 = vpop.permute.xlu0 %1625
        %v1628 = vsel %vm1211, %v1626, 0
        %1630 = vmatprep.subr.bf16.mxu0 0
        %1631 = vmatpush1.bf16.msra.mxu0 0
        %1632 = vmatprep.subr.bf16.mxu0 0
        %1633 = vmatpush1.bf16.msra.mxu0 0
        %1634 = vmatprep.subr.bf16.mxu0 0
        %1635 = vmatpush1.bf16.msra.mxu0 0
        %1636 = vmatprep.subr.bf16.mxu0 0
        %1637 = vmatpush1.bf16.msra.mxu0 0
        %1638 = vmatprep.subr.bf16.mxu0 0
        %1639 = vmatpush1.bf16.msra.mxu0 0
        %1640 = vmatprep.subr.bf16.mxu0 0
        %1641 = vmatpush1.bf16.msra.mxu0 0
        %1642 = vmatprep.subr.bf16.mxu0 0
        %1643 = vmatpush1.bf16.msra.mxu0 0
        %1644 = vmatprep.subr.bf16.mxu0 0
        %1645 = vmatpush1.bf16.msra.mxu0 %v1624
        %1646 = vmatprep.subr.bf16.mxu0 0
        %1647 = vmatpush2.bf16.msra.mxu0 0
        %1648 = vmatprep.subr.bf16.mxu0 0
        %1649 = vmatpush2.bf16.msra.mxu0 0
        %1650 = vmatprep.subr.bf16.mxu0 0
        %1651 = vmatpush2.bf16.msra.mxu0 0
        %1652 = vmatprep.subr.bf16.mxu0 0
        %1653 = vmatpush2.bf16.msra.mxu0 0
        %1654 = vmatprep.subr.bf16.mxu0 0
        %1655 = vmatpush2.bf16.msra.mxu0 0
        %1656 = vmatprep.subr.bf16.mxu0 0
        %1657 = vmatpush2.bf16.msra.mxu0 0
        %1658 = vmatprep.subr.bf16.mxu0 0
        %1659 = vmatpush2.bf16.msra.mxu0 0
        %1660 = vmatprep.subr.bf16.mxu0 0
        %1661 = vmatpush2.bf16.msra.mxu0 0
        %1662 = vmatprep.mubr.bf16.mxu0 0
        %1663 = vmatmul.mubr.bf16.gmra.mxu0 %v1628
        %v1664 = vpop.f32.mrf.mxu0
        %v1665 = vadd.f32 0.0, %v1664
        %v1666 = vpop.f32.mrf.mxu0
        %v1667 = vpop.f32.mrf.mxu0
        %v1668 = vadd.f32 0.0, %v1667
        %v1669 = vpop.f32.mrf.mxu0
        %1670 = vdwg.mxu0
        %v1671 = vadd.f32 %v1606, %v1665
        %v1672 = vadd.f32 %v1607, %v1668
        %1673 = vrot.lane.b32.xlu0 %v1322, 119
        %v1674 = vpop.permute.xlu0 %1673
        %v1676 = vsel %vm1612, %v1674, %v1609
        %v1678 = vmul.bf16 %v1676, %v1623
        %1679 = vrot.lane.b32.xlu0 %v1329, 32
        %v1680 = vpop.permute.xlu0 %1679
        %v1682 = vsel %vm1211, %v1680, 0
        %1684 = vmatprep.subr.bf16.mxu0 0
        %1685 = vmatpush1.bf16.msra.mxu0 0
        %1686 = vmatprep.subr.bf16.mxu0 0
        %1687 = vmatpush1.bf16.msra.mxu0 0
        %1688 = vmatprep.subr.bf16.mxu0 0
        %1689 = vmatpush1.bf16.msra.mxu0 0
        %1690 = vmatprep.subr.bf16.mxu0 0
        %1691 = vmatpush1.bf16.msra.mxu0 0
        %1692 = vmatprep.subr.bf16.mxu0 0
        %1693 = vmatpush1.bf16.msra.mxu0 0
        %1694 = vmatprep.subr.bf16.mxu0 0
        %1695 = vmatpush1.bf16.msra.mxu0 0
        %1696 = vmatprep.subr.bf16.mxu0 0
        %1697 = vmatpush1.bf16.msra.mxu0 0
        %1698 = vmatprep.subr.bf16.mxu0 0
        %1699 = vmatpush1.bf16.msra.mxu0 %v1678
        %1700 = vmatprep.subr.bf16.mxu0 0
        %1701 = vmatpush2.bf16.msra.mxu0 0
        %1702 = vmatprep.subr.bf16.mxu0 0
        %1703 = vmatpush2.bf16.msra.mxu0 0
        %1704 = vmatprep.subr.bf16.mxu0 0
        %1705 = vmatpush2.bf16.msra.mxu0 0
        %1706 = vmatprep.subr.bf16.mxu0 0
        %1707 = vmatpush2.bf16.msra.mxu0 0
        %1708 = vmatprep.subr.bf16.mxu0 0
        %1709 = vmatpush2.bf16.msra.mxu0 0
        %1710 = vmatprep.subr.bf16.mxu0 0
        %1711 = vmatpush2.bf16.msra.mxu0 0
        %1712 = vmatprep.subr.bf16.mxu0 0
        %1713 = vmatpush2.bf16.msra.mxu0 0
        %1714 = vmatprep.subr.bf16.mxu0 0
        %1715 = vmatpush2.bf16.msra.mxu0 0
        %1716 = vmatprep.mubr.bf16.mxu0 0
        %1717 = vmatmul.mubr.bf16.gmra.mxu0 %v1682
        %v1718 = vpop.f32.mrf.mxu0
        %v1719 = vadd.f32 0.0, %v1718
        %v1720 = vpop.f32.mrf.mxu0
        %v1721 = vpop.f32.mrf.mxu0
        %v1722 = vadd.f32 0.0, %v1721
        %v1723 = vpop.f32.mrf.mxu0
        %1724 = vdwg.mxu0
        %v1725 = vadd.f32 %v1671, %v1719
        %v1726 = vadd.f32 %v1672, %v1722
        %vm1727 = vcmask 64512
        %v1728 = vsel %vm1727, %v1725, 0.0
        %1729 = vadd.xlane.f32.xlu0 %v1728
        %v1730 = vpop.xlane.xlu0 %1729
        %v1731 = vsel %vm1727, %v1726, 0.0
        %1732 = vadd.xlane.f32.xlu0 %v1731
        %v1733 = vpop.xlane.xlu0 %1732
        %v1734 = vmul.f32 %v1730, 0.125
        %v1735 = vmul.f32 %v1733, 0.125
        %v1736 = vsub.f32 %v1725, %v1734
        %v1737 = vsub.f32 %v1726, %v1735
        %v1738 = vmul.f32 %v1736, %v1736
        %v1739 = vmul.f32 %v1737, %v1737
        %v1740 = vsel %vm1727, %v1738, 0.0
        %1741 = vadd.xlane.f32.xlu0 %v1740
        %v1742 = vpop.xlane.xlu0 %1741
        %v1743 = vsel %vm1727, %v1739, 0.0
        %1744 = vadd.xlane.f32.xlu0 %v1743
        %v1745 = vpop.xlane.xlu0 %1744
        %v1746 = vmul.f32 %v1742, 0.125
        %v1747 = vmul.f32 %v1745, 0.125
        %v1748 = vld [vmem:[%s7 + $0x20] sm:$0xff]
        %v1749 = vld [vmem:[%s7 + $0x28] sm:$0xff]
        %v1750 = vadd.f32 %v1746, 1e-05
        %v1751 = vadd.f32 %v1747, 1e-05
        %v1752 = vrsqrt.pop %v1750
        %v1753 = vrsqrt.pop %v1751
        %v1754 = vmul.f32 %v1748, %v1752
        %v1755 = vmul.f32 %v1749, %v1753
        %1757 = vset.pattern.permute.xlu0 0
        %1758 = vperm.xlu0 %1757, %v1754
        %v1759 = vpop.permute.xlu0 %1758
        %1762 = vset.pattern.permute.xlu0 0
        %1763 = vperm.xlu0 %1762, %v1755
        %v1764 = vpop.permute.xlu0 %1763
        %v1766 = vmul.f32 %v1736, %v1759
        %v1767 = vmul.f32 %v1737, %v1764
        %v1768 = vld [vmem:[%s8 + $0x20] sm:$0xff]
        %v1769 = vld [vmem:[%s8 + $0x28] sm:$0xff]
        %1771 = vset.pattern.permute.xlu0 0
        %1772 = vperm.xlu0 %1771, %v1768
        %v1773 = vpop.permute.xlu0 %1772
        %1776 = vset.pattern.permute.xlu0 0
        %1777 = vperm.xlu0 %1776, %v1769
        %v1778 = vpop.permute.xlu0 %1777
        %v1780 = vadd.f32 %v1766, %v1773
        %v1781 = vadd.f32 %v1767, %v1778
        %vm1782 = vcmp.gt.f32.partialorder %v1780, 0.0
        %vm1783 = vcmp.gt.f32.partialorder %v1781, 0.0
        %v1784 = vmin.f32 %v1780, 0.0
        %v1785 = vmin.f32 %v1781, 0.0
        %v1786 = vmul.f32 %v1784, 1.442695
        %v1787 = vpow.pop %v1786
        %v1788 = vmul.f32 %v1785, 1.442695
        %v1789 = vpow.pop %v1788
        %v1790 = vsub.f32 %v1787, 1.0
        %v1791 = vsub.f32 %v1789, 1.0
        %v1792 = vsel %vm1782, %v1780, %v1790
        %v1793 = vsel %vm1783, %v1781, %v1791
        %1794 = vst.msk [vmem:[%s339] sm:$0xff] %vm1727, %v1792
        %1795 = vst.msk [vmem:[%s339 + $0x8] sm:$0xff] %vm1727, %v1793
      $region72: #{multi_kernel_forward.3} parent=59 // pred_fallthru
        _
      %p1796 = scmp.eq.s32.totalorder %s21, 3
      // Predicated region
      $region73: #{multi_kernel_forward.3} parent=59 // pred_check
        %p1797 = pneg %p1796
      $region74: #{multi_kernel_forward.3} parent=59 // pred_check_branch
        %1799 = sbr.rel (%p1797) target = $region76
      $region75: #{multi_kernel_forward.3} parent=59 // pred_region
        %1802 = vrot.lane.b32.xlu0 %v341, 120
        %v1803 = vpop.permute.xlu0 %1802
        %1804 = vrot.lane.b32.xlu0 %v342, 120
        %v1805 = vpop.permute.xlu0 %1804
        %v1808 = vmax.bf16 %v341, %v1803
        %v1809 = vmax.bf16 %v342, %v1805
        %v1810 = vunpack.c.l.bf16 %v1808
        %v1811 = vunpack.c.l.bf16 %v1809
        %vm1812 = vcmask 64512
        %v1813 = vsel %vm1812, %v1810, 0.0
        %1814 = vadd.xlane.f32.xlu0 %v1813
        %v1815 = vpop.xlane.xlu0 %1814
        %v1816 = vsel %vm1812, %v1811, 0.0
        %1817 = vadd.xlane.f32.xlu0 %v1816
        %v1818 = vpop.xlane.xlu0 %1817
        %v1819 = vmul.f32 %v1815, 0.125
        %v1820 = vmul.f32 %v1818, 0.125
        %v1821 = vsub.f32 %v1810, %v1819
        %v1822 = vsub.f32 %v1811, %v1820
        %v1823 = vmul.f32 %v1821, %v1821
        %v1824 = vmul.f32 %v1822, %v1822
        %v1825 = vsel %vm1812, %v1823, 0.0
        %1826 = vadd.xlane.f32.xlu0 %v1825
        %v1827 = vpop.xlane.xlu0 %1826
        %v1828 = vsel %vm1812, %v1824, 0.0
        %1829 = vadd.xlane.f32.xlu0 %v1828
        %v1830 = vpop.xlane.xlu0 %1829
        %v1831 = vmul.f32 %v1827, 0.125
        %v1832 = vmul.f32 %v1830, 0.125
        %v1833 = vld [vmem:[%s7 + $0x30] sm:$0xff]
        %v1834 = vld [vmem:[%s7 + $0x38] sm:$0xff]
        %v1835 = vadd.f32 %v1831, 1e-05
        %v1836 = vadd.f32 %v1832, 1e-05
        %v1837 = vrsqrt.pop %v1835
        %v1838 = vrsqrt.pop %v1836
        %v1839 = vmul.f32 %v1833, %v1837
        %v1840 = vmul.f32 %v1834, %v1838
        %1842 = vset.pattern.permute.xlu0 0
        %1843 = vperm.xlu0 %1842, %v1839
        %v1844 = vpop.permute.xlu0 %1843
        %1847 = vset.pattern.permute.xlu0 0
        %1848 = vperm.xlu0 %1847, %v1840
        %v1849 = vpop.permute.xlu0 %1848
        %v1851 = vmul.f32 %v1821, %v1844
        %v1852 = vmul.f32 %v1822, %v1849
        %v1853 = vld [vmem:[%s8 + $0x30] sm:$0xff]
        %v1854 = vld [vmem:[%s8 + $0x38] sm:$0xff]
        %1856 = vset.pattern.permute.xlu0 0
        %1857 = vperm.xlu0 %1856, %v1853
        %v1858 = vpop.permute.xlu0 %1857
        %1861 = vset.pattern.permute.xlu0 0
        %1862 = vperm.xlu0 %1861, %v1854
        %v1863 = vpop.permute.xlu0 %1862
        %v1865 = vadd.f32 %v1851, %v1858
        %v1866 = vadd.f32 %v1852, %v1863
        %vm1867 = vcmp.gt.f32.partialorder %v1865, 0.0
        %vm1868 = vcmp.gt.f32.partialorder %v1866, 0.0
        %v1869 = vmin.f32 %v1865, 0.0
        %v1870 = vmin.f32 %v1866, 0.0
        %v1871 = vmul.f32 %v1869, 1.442695
        %v1872 = vpow.pop %v1871
        %v1873 = vmul.f32 %v1870, 1.442695
        %v1874 = vpow.pop %v1873
        %v1875 = vsub.f32 %v1872, 1.0
        %v1876 = vsub.f32 %v1874, 1.0
        %v1877 = vsel %vm1867, %v1865, %v1875
        %v1878 = vsel %vm1868, %v1866, %v1876
        %1879 = vst.msk [vmem:[%s339] sm:$0xff] %vm1812, %v1877
        %1880 = vst.msk [vmem:[%s339 + $0x8] sm:$0xff] %vm1812, %v1878
      $region76: #{multi_kernel_forward.3} parent=59 // pred_fallthru
        _
      %p1881 = scmp.lt.s32.totalorder %s21, 3
      %s1882 = scalar_select %p1881, %s21, 3
      %s1883 = smul.addr %s1882, 2
      %s1884 = smul.addr %s1883, 8
      %s1885 = scalar_lea.vmem %s10, %s1884
      // Predicated region
      $region77: #{multi_kernel_forward.3} parent=59 // pred_check
        %p1886 = pneg %p249
      $region78: #{multi_kernel_forward.3} parent=59 // pred_check_branch
        %1888 = sbr.rel (%p1886) target = $region80
      $region79: #{multi_kernel_forward.3} parent=59 // pred_region
        _
      $region80: #{multi_kernel_forward.3} parent=59 // pred_fallthru
        _
    $region60: #{multi_kernel_forward.3} parent=5 // pred_fallthru
      _
    %p1889 = scmp.le.s32.totalorder 2, %s16
    // Predicated region
    $region81: #{multi_kernel_forward.3} parent=5 // pred_check
      %p1890 = pneg %p1889
    $region82: #{multi_kernel_forward.3} parent=5 // pred_check_branch
      %1892 = sbr.rel (%p1890) target = $region84
    $region83: #{multi_kernel_forward.3} parent=5 // pred_region
      %s1893 = ssub.s32 %s16, 2
      // Predicated region
      $region85: #{multi_kernel_forward.3} parent=83 // pred_check
        %p1894 = pneg %p255
      $region86: #{multi_kernel_forward.3} parent=83 // pred_check_branch
        %1896 = sbr.rel (%p1894) target = $region88
      $region87: #{multi_kernel_forward.3} parent=83 // pred_region
        %p1897 = scmp.lt.s32.totalorder %s22, 3
        %s1898 = scalar_select %p1897, %s22, 3
        %s1899 = smul.addr %s1898, 2
        %s1900 = smul.addr %s1899, 8
        %s1901 = scalar_lea.vmem %s10, %s1900
      $region88: #{multi_kernel_forward.3} parent=83 // pred_fallthru
        _
    $region84: #{multi_kernel_forward.3} parent=5 // pred_fallthru
      _
  $region6: #{multi_kernel_forward.3} parent=0 // loop_footer
    %s20 = sadd.s32 1, %s16
  $region7: #{multi_kernel_forward.3} parent=0 // loop_footer_branch
    %15 = sbr.rel target = $region3
  $region8: #{multi_kernel_forward.3} parent=0 // loop_exit
    _

</llo_original>
